<compile_context>
chip_gen: v5e
topology: v5e:2x2
jax: 0.10.0
libtpu: 0.0.40
codegen_flags: <defaults>
</compile_context>

<pallas_src>
import jax
import jax.numpy as jnp
from jax.experimental import pallas as pl
from jax.experimental.pallas import tpu as pltpu

# ---- small ViT configuration consistent with the PyTorch module ----
IMG, PATCH, CHANNELS = 16, 4, 4
DIM, DEPTH, HEADS, DIM_HEAD, MLP_DIM = 32, 2, 4, 8, 64
GRID_HW = IMG // PATCH
N_PATCH = GRID_HW * GRID_HW            # 16 patches
SEQ = N_PATCH + 1                      # 17 real tokens (cls + patches)
PAD = 7                                # pad token rows placed at 1..7 (sublane-aligned layout)
SEQ_P = SEQ + PAD                      # 24 padded tokens (3 full 8-row sublane tiles)
PATCH_DIM = CHANNELS * PATCH * PATCH   # 64
INNER = HEADS * DIM_HEAD               # 32
SCALE = DIM_HEAD ** -0.5
LN_EPS = 1e-5
F32 = jnp.float32
BF16 = jnp.bfloat16
MAX_TB = 64                            # batch tile cap (>= 2 grid steps on larger batches)


def _ln(x, w, b):
    """LayerNorm over the last dim (PyTorch semantics: biased var, eps=1e-5), f32 math."""
    mu = jnp.mean(x, axis=-1, keepdims=True)
    var = jnp.mean((x - mu) ** 2, axis=-1, keepdims=True)
    return (x - mu) * jax.lax.rsqrt(var + LN_EPS) * w + b


def _gelu_exact(x):
    # nn.GELU() default is the exact erf-based GELU (kept for semantic fidelity).
    return 0.5 * x * (1.0 + jax.lax.erf(x * (2.0 ** -0.5)))


# ---------------- single fused kernel: whole ViT forward for one batch tile ----------------
def _vit_kernel(p_ref,
                ln1w_ref, ln1b_ref, wemb_ref, bemb_ref, ln2w_ref, ln2b_ref,
                clsp_ref, posp_ref,
                alnw_ref, alnb_ref, wqkv_ref, wout_ref, bout_ref,
                flnw_ref, flnb_ref, w1_ref, b1_ref, w2_ref, b2_ref,
                lnfw_ref, lnfb_ref,
                o_ref):
    TB = p_ref.shape[0]

    # ---- patch embedding: LN -> Linear(bf16 MXU, f32 acc) -> LN ----
    pfl = p_ref[...].reshape(TB * N_PATCH, PATCH_DIM).astype(F32)     # bf16 input -> f32 math
    xn = _ln(pfl, ln1w_ref[...], ln1b_ref[...]).astype(BF16)
    emb = jnp.dot(xn, wemb_ref[...], preferred_element_type=F32) + bemb_ref[...]
    emb = _ln(emb, ln2w_ref[...], ln2b_ref[...])                      # (TB*N_PATCH, DIM) f32
    tok = emb.reshape(TB, N_PATCH, DIM) + posp_ref[...]               # + pos[1:17]

    # ---- sublane-aligned token assembly (built as a value, no scratch round-trip) ----
    # row 0 = cls (+pos[0] pre-folded), rows 1..7 = zero pad, rows 8..23 = patches
    head8 = jnp.concatenate([clsp_ref[...], jnp.zeros((PAD, DIM), F32)], axis=0)   # (8, DIM)
    x = jnp.concatenate([jnp.broadcast_to(head8[None], (TB, 8, DIM)), tok], axis=1)
    x = x.reshape(TB * SEQ_P, DIM)                                    # resident f32 tokens

    # key-column mask for the pad rows 1..7 (applied to exp(.), not an additive -1e30 mask)
    col = jax.lax.broadcasted_iota(jnp.int32, (SEQ_P, SEQ_P), 1)
    pad_col = jnp.logical_and(col >= 1, col < 1 + PAD)                # (SEQ_P, SEQ_P) bool

    for l in range(DEPTH):                                            # DEPTH=2, static unroll
        # ---------------- attention (pre-LN, residual), heads merged into batch ----------------
        xn = _ln(x, alnw_ref[l], alnb_ref[l]).astype(BF16)
        qkv = jnp.dot(xn, wqkv_ref[l], preferred_element_type=F32)    # (TB*SEQ_P, 3*INNER)
        qkv = qkv.astype(BF16).reshape(TB, SEQ_P, 3 * INNER)          # scale already in Q cols

        def heads_of(base, qkv=qkv):
            return [qkv[..., base + h * DIM_HEAD: base + (h + 1) * DIM_HEAD]
                    for h in range(HEADS)]
        # fold heads into the leading batch dim (head-major): (HEADS*TB, SEQ_P, DIM_HEAD)
        qb = jnp.concatenate(heads_of(0), axis=0)
        kb = jnp.concatenate(heads_of(INNER), axis=0)
        vb = jnp.concatenate(heads_of(2 * INNER), axis=0)

        dots = jax.lax.dot_general(qb, kb, (((2,), (2,)), ((0,), (0,))),
                                   preferred_element_type=F32)        # (H*TB, SEQ_P, SEQ_P)
        dots = dots - jnp.max(dots, axis=-1, keepdims=True)           # one merged XLU reduce
        e = jnp.where(pad_col, jnp.float32(0.0), jnp.exp(dots))       # zero pad key columns
        attn = e * pl.reciprocal(jnp.sum(e, axis=-1, keepdims=True), approx=True)
        ob = jax.lax.dot_general(attn.astype(BF16), vb, (((2,), (1,)), ((0,), (0,))),
                                 preferred_element_type=F32)          # (H*TB, SEQ_P, DIM_HEAD)

        # un-fold heads onto lanes and do ONE K=32 output projection
        oh = jnp.concatenate([ob[h * TB:(h + 1) * TB] for h in range(HEADS)], axis=-1)
        oh = oh.reshape(TB * SEQ_P, INNER).astype(BF16)
        x = jnp.dot(oh, wout_ref[l], preferred_element_type=F32) + bout_ref[l] + x

        # ---------------- feed-forward (pre-LN, residual) ----------------
        xn = _ln(x, flnw_ref[l], flnb_ref[l]).astype(BF16)
        hdn = _gelu_exact(jnp.dot(xn, w1_ref[l], preferred_element_type=F32) + b1_ref[l])
        x = jnp.dot(hdn.astype(BF16), w2_ref[l], preferred_element_type=F32) + b2_ref[l] + x

    # ---- final LayerNorm applied only to the 'cls' token + pooling ----
    cls_tok = x.reshape(TB, SEQ_P, DIM)[:, 0, :]                      # (TB, DIM)
    o_ref[...] = _ln(cls_tok, lnfw_ref[...], lnfb_ref[...])


# ---------------- wrapper: one pallas_call for the whole forward ----------------
def _full_spec(arr):
    n = arr.ndim
    return pl.BlockSpec(arr.shape, lambda b, _n=n: (0,) * _n)


def to_patches(img):
    # einops: 'b c (h p1) (w p2) -> b (h w) (p1 p2 c)'
    B, C, H, W = img.shape
    gh, gw = H // PATCH, W // PATCH
    x = img.reshape(B, C, gh, PATCH, gw, PATCH)
    x = x.transpose(0, 2, 4, 3, 5, 1)                  # b, h, w, p1, p2, c
    return x.reshape(B, gh * gw, PATCH * PATCH * C)


def _pick_tb(B):
    if B <= 8:
        return B
    tb = -(-B // 2)             # at least 2 grid steps -> both v7x TensorCores get work
    tb = -(-tb // 8) * 8        # sublane-aligned batch tile
    return min(tb, MAX_TB)


def vit_forward(img, p):
    B = img.shape[0]
    patches = to_patches(img).astype(BF16)             # bf16 input DMA (halves HBM traffic)
    TB = _pick_tb(B)
    nb = -(-B // TB)
    B_pad = nb * TB
    if B_pad != B:
        patches = jnp.pad(patches, ((0, B_pad - B), (0, 0), (0, 0)))

    args = (patches,
            p["ln1_w"], p["ln1_b"], p["w_emb"], p["b_emb"], p["ln2_w"], p["ln2_b"],
            p["cls_pos0"], p["pos_patch"],
            p["attn_ln_w"], p["attn_ln_b"], p["w_qkv"], p["w_out"], p["b_out"],
            p["ff_ln_w"], p["ff_ln_b"], p["w1"], p["b1"], p["w2"], p["b2"],
            p["lnf_w"], p["lnf_b"])
    in_specs = ([pl.BlockSpec((TB, N_PATCH, PATCH_DIM), lambda b: (b, 0, 0))]
                + [_full_spec(a) for a in args[1:]])

    out = pl.pallas_call(
        _vit_kernel,
        out_shape=jax.ShapeDtypeStruct((B_pad, DIM), F32),
        grid=(nb,),
        in_specs=in_specs,
        out_specs=pl.BlockSpec((TB, DIM), lambda b: (b, 0)),
        compiler_params=pltpu.CompilerParams(
            dimension_semantics=("parallel",),
            vmem_limit_bytes=32 * 1024 * 1024),
    )(*args)
    return out[:B]


# ---------------- params (f32, per-layer tensors stacked on a leading DEPTH axis) ----------------
def init_params(key):
    keys = iter(jax.random.split(key, 8))

    def nrm(shape, scale=0.02):
        return (scale * jax.random.normal(next(keys), shape)).astype(F32)

    ones = lambda s: jnp.ones(s, F32)
    zeros = lambda s: jnp.zeros(s, F32)
    return {
        "ln1_w": ones((1, PATCH_DIM)), "ln1_b": zeros((1, PATCH_DIM)),
        "w_emb": nrm((PATCH_DIM, DIM)), "b_emb": zeros((1, DIM)),
        "ln2_w": ones((1, DIM)), "ln2_b": zeros((1, DIM)),
        "cls": nrm((1, DIM), 1.0), "pos": nrm((SEQ, DIM), 1.0),
        "lnf_w": ones((1, DIM)), "lnf_b": zeros((1, DIM)),
        "attn_ln_w": ones((DEPTH, 1, DIM)), "attn_ln_b": zeros((DEPTH, 1, DIM)),
        "w_qkv": nrm((DEPTH, DIM, 3 * INNER)),
        "w_out": nrm((DEPTH, INNER, DIM)), "b_out": zeros((DEPTH, 1, DIM)),
        "ff_ln_w": ones((DEPTH, 1, DIM)), "ff_ln_b": zeros((DEPTH, 1, DIM)),
        "w1": nrm((DEPTH, DIM, MLP_DIM)), "b1": zeros((DEPTH, 1, MLP_DIM)),
        "w2": nrm((DEPTH, MLP_DIM, DIM)), "b2": zeros((DEPTH, 1, DIM)),
    }


def prepare_params(p):
    """One-time host transform: fold softmax scale into Q weights, fold pos[0] into cls,
    pre-slice pos for patches, store matmul weights in bf16."""
    kp = dict(p)
    w_qkv = p["w_qkv"].at[:, :, 0:INNER].multiply(jnp.float32(SCALE))   # fold 1/sqrt(d) into Q
    kp["w_qkv"] = w_qkv.astype(BF16)
    kp["w_emb"] = p["w_emb"].astype(BF16)
    kp["w_out"] = p["w_out"].astype(BF16)
    kp["w1"] = p["w1"].astype(BF16)
    kp["w2"] = p["w2"].astype(BF16)
    kp["cls_pos0"] = (p["cls"] + p["pos"][0:1]).astype(F32)             # (1, DIM)
    kp["pos_patch"] = p["pos"][1:SEQ].astype(F32)                       # (N_PATCH, DIM)
    del kp["cls"], kp["pos"]
    return kp


# ---------------- pure-JAX f32 reference (same semantics as the PyTorch module) ----------------
def ref_forward(img, p):
    B = img.shape[0]
    x = to_patches(img)
    x = _ln(x, p["ln1_w"], p["ln1_b"])
    x = x @ p["w_emb"] + p["b_emb"]
    x = _ln(x, p["ln2_w"], p["ln2_b"])
    cls = jnp.broadcast_to(p["cls"][None], (B, 1, DIM))
    x = jnp.concatenate([cls, x], axis=1) + p["pos"][None]
    for l in range(DEPTH):
        xn = _ln(x, p["attn_ln_w"][l], p["attn_ln_b"][l])
        qkv = xn @ p["w_qkv"][l]
        q, k, v = jnp.split(qkv, 3, axis=-1)
        r = lambda t: t.reshape(B, SEQ, HEADS, DIM_HEAD).transpose(0, 2, 1, 3)
        q, k, v = r(q), r(k), r(v)
        dots = jnp.einsum("bhnd,bhmd->bhnm", q, k) * SCALE
        attn = jax.nn.softmax(dots, axis=-1)
        o = jnp.einsum("bhnm,bhmd->bhnd", attn, v).transpose(0, 2, 1, 3).reshape(B, SEQ, INNER)
        x = o @ p["w_out"][l] + p["b_out"][l] + x
        xn = _ln(x, p["ff_ln_w"][l], p["ff_ln_b"][l])
        h = _gelu_exact(xn @ p["w1"][l] + p["b1"][l])
        x = h @ p["w2"][l] + p["b2"][l] + x
    x = _ln(x, p["lnf_w"], p["lnf_b"])
    return x[:, 0]


if __name__ == "__main__":
    key = jax.random.PRNGKey(0)
    k_img, k_param = jax.random.split(key)
    img = jax.random.normal(k_img, (2, CHANNELS, IMG, IMG), F32)   # NCHW, like PyTorch
    params = init_params(k_param)
    kparams = prepare_params(params)                               # one-time host transform

    out = jax.block_until_ready(jax.jit(vit_forward)(img, kparams))
    assert out.shape == (2, DIM), out.shape

    ref = ref_forward(img, params)
    # bf16 operand storage + approx reciprocal -> slightly looser tolerance than pure-f32.
    assert jnp.allclose(out, ref, atol=2e-2, rtol=2e-2), float(jnp.max(jnp.abs(out - ref)))
    print("KERNEL_OK")
</pallas_src>

<mosaic_0001>
module attributes {stable_mosaic.version = 11 : i64} {
  func.func @_vit_kernel(%arg0: i32, %arg1: memref<2x16x64xbf16, #tpu.memory_space<vmem>>, %arg2: memref<1x64xf32, #tpu.memory_space<vmem>>, %arg3: memref<1x64xf32, #tpu.memory_space<vmem>>, %arg4: memref<64x32xbf16, #tpu.memory_space<vmem>>, %arg5: memref<1x32xf32, #tpu.memory_space<vmem>>, %arg6: memref<1x32xf32, #tpu.memory_space<vmem>>, %arg7: memref<1x32xf32, #tpu.memory_space<vmem>>, %arg8: memref<1x32xf32, #tpu.memory_space<vmem>>, %arg9: memref<16x32xf32, #tpu.memory_space<vmem>>, %arg10: memref<2x1x32xf32, #tpu.memory_space<vmem>>, %arg11: memref<2x1x32xf32, #tpu.memory_space<vmem>>, %arg12: memref<2x32x96xbf16, #tpu.memory_space<vmem>>, %arg13: memref<2x32x32xbf16, #tpu.memory_space<vmem>>, %arg14: memref<2x1x32xf32, #tpu.memory_space<vmem>>, %arg15: memref<2x1x32xf32, #tpu.memory_space<vmem>>, %arg16: memref<2x1x32xf32, #tpu.memory_space<vmem>>, %arg17: memref<2x32x64xbf16, #tpu.memory_space<vmem>>, %arg18: memref<2x1x64xf32, #tpu.memory_space<vmem>>, %arg19: memref<2x64x32xbf16, #tpu.memory_space<vmem>>, %arg20: memref<2x1x32xf32, #tpu.memory_space<vmem>>, %arg21: memref<1x32xf32, #tpu.memory_space<vmem>>, %arg22: memref<1x32xf32, #tpu.memory_space<vmem>>, %arg23: memref<2x32xf32, #tpu.memory_space<vmem>>) attributes {dimension_semantics = [#tpu.dimension_semantics<parallel>], iteration_bounds = array<i64: 1>, scalar_prefetch = 0 : i64, scratch_operands = 0 : i64, tpu.core_type = #tpu.core_type<tc>, window_params = [{transform_indices = @transform_0, window_bounds = array<i64: 2, 16, 64>}, {pipeline_mode = #tpu.pipeline_mode<synchronous>, transform_indices = @transform_1, window_bounds = array<i64: 1, 64>}, {pipeline_mode = #tpu.pipeline_mode<synchronous>, transform_indices = @transform_2, window_bounds = array<i64: 1, 64>}, {pipeline_mode = #tpu.pipeline_mode<synchronous>, transform_indices = @transform_3, window_bounds = array<i64: 64, 32>}, {pipeline_mode = #tpu.pipeline_mode<synchronous>, transform_indices = @transform_4, window_bounds = array<i64: 1, 32>}, {pipeline_mode = #tpu.pipeline_mode<synchronous>, transform_indices = @transform_5, window_bounds = array<i64: 1, 32>}, {pipeline_mode = #tpu.pipeline_mode<synchronous>, transform_indices = @transform_6, window_bounds = array<i64: 1, 32>}, {pipeline_mode = #tpu.pipeline_mode<synchronous>, transform_indices = @transform_7, window_bounds = array<i64: 1, 32>}, {pipeline_mode = #tpu.pipeline_mode<synchronous>, transform_indices = @transform_8, window_bounds = array<i64: 16, 32>}, {pipeline_mode = #tpu.pipeline_mode<synchronous>, transform_indices = @transform_9, window_bounds = array<i64: 2, 1, 32>}, {pipeline_mode = #tpu.pipeline_mode<synchronous>, transform_indices = @transform_10, window_bounds = array<i64: 2, 1, 32>}, {pipeline_mode = #tpu.pipeline_mode<synchronous>, transform_indices = @transform_11, window_bounds = array<i64: 2, 32, 96>}, {pipeline_mode = #tpu.pipeline_mode<synchronous>, transform_indices = @transform_12, window_bounds = array<i64: 2, 32, 32>}, {pipeline_mode = #tpu.pipeline_mode<synchronous>, transform_indices = @transform_13, window_bounds = array<i64: 2, 1, 32>}, {pipeline_mode = #tpu.pipeline_mode<synchronous>, transform_indices = @transform_14, window_bounds = array<i64: 2, 1, 32>}, {pipeline_mode = #tpu.pipeline_mode<synchronous>, transform_indices = @transform_15, window_bounds = array<i64: 2, 1, 32>}, {pipeline_mode = #tpu.pipeline_mode<synchronous>, transform_indices = @transform_16, window_bounds = array<i64: 2, 32, 64>}, {pipeline_mode = #tpu.pipeline_mode<synchronous>, transform_indices = @transform_17, window_bounds = array<i64: 2, 1, 64>}, {pipeline_mode = #tpu.pipeline_mode<synchronous>, transform_indices = @transform_18, window_bounds = array<i64: 2, 64, 32>}, {pipeline_mode = #tpu.pipeline_mode<synchronous>, transform_indices = @transform_19, window_bounds = array<i64: 2, 1, 32>}, {pipeline_mode = #tpu.pipeline_mode<synchronous>, transform_indices = @transform_20, window_bounds = array<i64: 1, 32>}, {pipeline_mode = #tpu.pipeline_mode<synchronous>, transform_indices = @transform_21, window_bounds = array<i64: 1, 32>}, {transform_indices = @transform_22, window_bounds = array<i64: 2, 32>}]} {
    %c0 = arith.constant 0 : index
    %c0_0 = arith.constant 0 : index
    %c0_1 = arith.constant 0 : index
    %0 = vector.load %arg1[%c0, %c0_0, %c0_1] : memref<2x16x64xbf16, #tpu.memory_space<vmem>>, vector<2x16x64xbf16>
    %1 = vector.shape_cast %0 : vector<2x16x64xbf16> to vector<32x64xbf16>
    %2 = arith.extf %1 : vector<32x64xbf16> to vector<32x64xf32>
    %c0_2 = arith.constant 0 : index
    %c0_3 = arith.constant 0 : index
    %3 = vector.load %arg2[%c0_2, %c0_3] : memref<1x64xf32, #tpu.memory_space<vmem>>, vector<1x64xf32>
    %c0_4 = arith.constant 0 : index
    %c0_5 = arith.constant 0 : index
    %4 = vector.load %arg3[%c0_4, %c0_5] : memref<1x64xf32, #tpu.memory_space<vmem>>, vector<1x64xf32>
    %cst = arith.constant dense<0.000000e+00> : vector<32xf32>
    %5 = vector.multi_reduction <add>, %2, %cst [1] : vector<32x64xf32> to vector<32xf32>
    %6 = vector.shape_cast %5 : vector<32xf32> to vector<32x1xf32>
    %cst_6 = arith.constant 6.400000e+01 : f32
    %7 = vector.broadcast %cst_6 : f32 to vector<32x1xf32>
    %8 = arith.divf %6, %7 : vector<32x1xf32>
    %9 = vector.broadcast %8 : vector<32x1xf32> to vector<32x64xf32>
    %10 = arith.subf %2, %9 : vector<32x64xf32>
    %11 = arith.mulf %10, %10 : vector<32x64xf32>
    %cst_7 = arith.constant dense<0.000000e+00> : vector<32xf32>
    %12 = vector.multi_reduction <add>, %11, %cst_7 [1] : vector<32x64xf32> to vector<32xf32>
    %13 = vector.shape_cast %12 : vector<32xf32> to vector<32x1xf32>
    %cst_8 = arith.constant 6.400000e+01 : f32
    %14 = vector.broadcast %cst_8 : f32 to vector<32x1xf32>
    %15 = arith.divf %13, %14 : vector<32x1xf32>
    %16 = vector.broadcast %8 : vector<32x1xf32> to vector<32x64xf32>
    %17 = arith.subf %2, %16 : vector<32x64xf32>
    %cst_9 = arith.constant 9.99999974E-6 : f32
    %18 = vector.broadcast %cst_9 : f32 to vector<32x1xf32>
    %19 = arith.addf %15, %18 : vector<32x1xf32>
    %20 = math.rsqrt %19 : vector<32x1xf32>
    %21 = vector.broadcast %20 : vector<32x1xf32> to vector<32x64xf32>
    %22 = arith.mulf %17, %21 : vector<32x64xf32>
    %23 = vector.broadcast %3 : vector<1x64xf32> to vector<32x64xf32>
    %24 = arith.mulf %22, %23 : vector<32x64xf32>
    %25 = vector.broadcast %4 : vector<1x64xf32> to vector<32x64xf32>
    %26 = arith.addf %24, %25 : vector<32x64xf32>
    %27 = arith.truncf %26 : vector<32x64xf32> to vector<32x64xbf16>
    %c0_10 = arith.constant 0 : index
    %c0_11 = arith.constant 0 : index
    %28 = vector.load %arg4[%c0_10, %c0_11] : memref<64x32xbf16, #tpu.memory_space<vmem>>, vector<64x32xbf16>
    %cst_12 = arith.constant dense<0.000000e+00> : vector<32x32xf32>
    %29 = tpu.matmul %27, %28, %cst_12 {dimension_numbers = #tpu.dot_dimension_numbers<[1], [0], [0], [1], [0, 0, 1, 1], [], []>} : vector<32x64xbf16>, vector<64x32xbf16>, vector<32x32xf32> -> vector<32x32xf32>
    %c0_13 = arith.constant 0 : index
    %c0_14 = arith.constant 0 : index
    %30 = vector.load %arg5[%c0_13, %c0_14] : memref<1x32xf32, #tpu.memory_space<vmem>>, vector<1x32xf32>
    %31 = vector.broadcast %30 : vector<1x32xf32> to vector<32x32xf32>
    %32 = arith.addf %29, %31 : vector<32x32xf32>
    %c0_15 = arith.constant 0 : index
    %c0_16 = arith.constant 0 : index
    %33 = vector.load %arg6[%c0_15, %c0_16] : memref<1x32xf32, #tpu.memory_space<vmem>>, vector<1x32xf32>
    %c0_17 = arith.constant 0 : index
    %c0_18 = arith.constant 0 : index
    %34 = vector.load %arg7[%c0_17, %c0_18] : memref<1x32xf32, #tpu.memory_space<vmem>>, vector<1x32xf32>
    %cst_19 = arith.constant dense<0.000000e+00> : vector<32xf32>
    %35 = vector.multi_reduction <add>, %32, %cst_19 [1] : vector<32x32xf32> to vector<32xf32>
    %36 = vector.shape_cast %35 : vector<32xf32> to vector<32x1xf32>
    %cst_20 = arith.constant 3.200000e+01 : f32
    %37 = vector.broadcast %cst_20 : f32 to vector<32x1xf32>
    %38 = arith.divf %36, %37 : vector<32x1xf32>
    %39 = vector.broadcast %38 : vector<32x1xf32> to vector<32x32xf32>
    %40 = arith.subf %32, %39 : vector<32x32xf32>
    %41 = arith.mulf %40, %40 : vector<32x32xf32>
    %cst_21 = arith.constant dense<0.000000e+00> : vector<32xf32>
    %42 = vector.multi_reduction <add>, %41, %cst_21 [1] : vector<32x32xf32> to vector<32xf32>
    %43 = vector.shape_cast %42 : vector<32xf32> to vector<32x1xf32>
    %cst_22 = arith.constant 3.200000e+01 : f32
    %44 = vector.broadcast %cst_22 : f32 to vector<32x1xf32>
    %45 = arith.divf %43, %44 : vector<32x1xf32>
    %46 = vector.broadcast %38 : vector<32x1xf32> to vector<32x32xf32>
    %47 = arith.subf %32, %46 : vector<32x32xf32>
    %cst_23 = arith.constant 9.99999974E-6 : f32
    %48 = vector.broadcast %cst_23 : f32 to vector<32x1xf32>
    %49 = arith.addf %45, %48 : vector<32x1xf32>
    %50 = math.rsqrt %49 : vector<32x1xf32>
    %51 = vector.broadcast %50 : vector<32x1xf32> to vector<32x32xf32>
    %52 = arith.mulf %47, %51 : vector<32x32xf32>
    %53 = vector.broadcast %33 : vector<1x32xf32> to vector<32x32xf32>
    %54 = arith.mulf %52, %53 : vector<32x32xf32>
    %55 = vector.broadcast %34 : vector<1x32xf32> to vector<32x32xf32>
    %56 = arith.addf %54, %55 : vector<32x32xf32>
    %57 = vector.shape_cast %56 : vector<32x32xf32> to vector<2x16x32xf32>
    %c0_24 = arith.constant 0 : index
    %c0_25 = arith.constant 0 : index
    %58 = vector.load %arg9[%c0_24, %c0_25] : memref<16x32xf32, #tpu.memory_space<vmem>>, vector<16x32xf32>
    %59 = vector.shape_cast %58 : vector<16x32xf32> to vector<1x16x32xf32>
    %60 = vector.broadcast %59 : vector<1x16x32xf32> to vector<2x16x32xf32>
    %61 = arith.addf %57, %60 : vector<2x16x32xf32>
    %c0_26 = arith.constant 0 : index
    %c0_27 = arith.constant 0 : index
    %62 = vector.load %arg8[%c0_26, %c0_27] : memref<1x32xf32, #tpu.memory_space<vmem>>, vector<1x32xf32>
    %cst_28 = arith.constant 0.000000e+00 : f32
    %63 = vector.broadcast %cst_28 : f32 to vector<7x32xf32>
    %64 = tpu.concatenate %62, %63 in 0 : vector<1x32xf32>, vector<7x32xf32> -> vector<8x32xf32>
    %65 = vector.shape_cast %64 : vector<8x32xf32> to vector<1x8x32xf32>
    %66 = vector.shape_cast %65 : vector<1x8x32xf32> to vector<1x8x32xf32>
    %67 = vector.broadcast %66 : vector<1x8x32xf32> to vector<2x8x32xf32>
    %68 = tpu.concatenate %67, %61 in 1 : vector<2x8x32xf32>, vector<2x16x32xf32> -> vector<2x24x32xf32>
    %69 = vector.shape_cast %68 : vector<2x24x32xf32> to vector<48x32xf32>
    %70 = tpu.iota {dimensions = array<i32: 1>} : vector<24x24xi32>
    %c1_i32 = arith.constant 1 : i32
    %71 = vector.broadcast %c1_i32 : i32 to vector<24x24xi32>
    %72 = arith.cmpi sge, %70, %71 : vector<24x24xi32>
    %c8_i32 = arith.constant 8 : i32
    %73 = vector.broadcast %c8_i32 : i32 to vector<24x24xi32>
    %74 = arith.cmpi slt, %70, %73 : vector<24x24xi32>
    %75 = arith.andi %72, %74 : vector<24x24xi1>
    %c0_29 = arith.constant 0 : index
    %c0_30 = arith.constant 0 : index
    %c0_31 = arith.constant 0 : index
    %76 = vector.load %arg10[%c0_29, %c0_30, %c0_31] : memref<2x1x32xf32, #tpu.memory_space<vmem>>, vector<1x1x32xf32>
    %77 = vector.shape_cast %76 : vector<1x1x32xf32> to vector<1x32xf32>
    %c0_32 = arith.constant 0 : index
    %c0_33 = arith.constant 0 : index
    %c0_34 = arith.constant 0 : index
    %78 = vector.load %arg11[%c0_32, %c0_33, %c0_34] : memref<2x1x32xf32, #tpu.memory_space<vmem>>, vector<1x1x32xf32>
    %79 = vector.shape_cast %78 : vector<1x1x32xf32> to vector<1x32xf32>
    %cst_35 = arith.constant dense<0.000000e+00> : vector<48xf32>
    %80 = vector.multi_reduction <add>, %69, %cst_35 [1] : vector<48x32xf32> to vector<48xf32>
    %81 = vector.shape_cast %80 : vector<48xf32> to vector<48x1xf32>
    %cst_36 = arith.constant 3.200000e+01 : f32
    %82 = vector.broadcast %cst_36 : f32 to vector<48x1xf32>
    %83 = arith.divf %81, %82 : vector<48x1xf32>
    %84 = vector.broadcast %83 : vector<48x1xf32> to vector<48x32xf32>
    %85 = arith.subf %69, %84 : vector<48x32xf32>
    %86 = arith.mulf %85, %85 : vector<48x32xf32>
    %cst_37 = arith.constant dense<0.000000e+00> : vector<48xf32>
    %87 = vector.multi_reduction <add>, %86, %cst_37 [1] : vector<48x32xf32> to vector<48xf32>
    %88 = vector.shape_cast %87 : vector<48xf32> to vector<48x1xf32>
    %cst_38 = arith.constant 3.200000e+01 : f32
    %89 = vector.broadcast %cst_38 : f32 to vector<48x1xf32>
    %90 = arith.divf %88, %89 : vector<48x1xf32>
    %91 = vector.broadcast %83 : vector<48x1xf32> to vector<48x32xf32>
    %92 = arith.subf %69, %91 : vector<48x32xf32>
    %cst_39 = arith.constant 9.99999974E-6 : f32
    %93 = vector.broadcast %cst_39 : f32 to vector<48x1xf32>
    %94 = arith.addf %90, %93 : vector<48x1xf32>
    %95 = math.rsqrt %94 : vector<48x1xf32>
    %96 = vector.broadcast %95 : vector<48x1xf32> to vector<48x32xf32>
    %97 = arith.mulf %92, %96 : vector<48x32xf32>
    %98 = vector.broadcast %77 : vector<1x32xf32> to vector<48x32xf32>
    %99 = arith.mulf %97, %98 : vector<48x32xf32>
    %100 = vector.broadcast %79 : vector<1x32xf32> to vector<48x32xf32>
    %101 = arith.addf %99, %100 : vector<48x32xf32>
    %102 = arith.truncf %101 : vector<48x32xf32> to vector<48x32xbf16>
    %c0_40 = arith.constant 0 : index
    %c0_41 = arith.constant 0 : index
    %c0_42 = arith.constant 0 : index
    %103 = vector.load %arg12[%c0_40, %c0_41, %c0_42] : memref<2x32x96xbf16, #tpu.memory_space<vmem>>, vector<1x32x96xbf16>
    %104 = vector.shape_cast %103 : vector<1x32x96xbf16> to vector<32x96xbf16>
    %cst_43 = arith.constant dense<0.000000e+00> : vector<48x96xf32>
    %105 = tpu.matmul %102, %104, %cst_43 {dimension_numbers = #tpu.dot_dimension_numbers<[1], [0], [0], [1], [0, 0, 1, 1], [], []>} : vector<48x32xbf16>, vector<32x96xbf16>, vector<48x96xf32> -> vector<48x96xf32>
    %106 = arith.truncf %105 : vector<48x96xf32> to vector<48x96xbf16>
    %107 = vector.shape_cast %106 : vector<48x96xbf16> to vector<2x24x96xbf16>
    %108 = vector.extract_strided_slice %107 {offsets = [0, 0, 0], sizes = [2, 24, 8], strides = [1, 1, 1]} : vector<2x24x96xbf16> to vector<2x24x8xbf16>
    %109 = vector.extract_strided_slice %107 {offsets = [0, 0, 8], sizes = [2, 24, 8], strides = [1, 1, 1]} : vector<2x24x96xbf16> to vector<2x24x8xbf16>
    %110 = vector.extract_strided_slice %107 {offsets = [0, 0, 16], sizes = [2, 24, 8], strides = [1, 1, 1]} : vector<2x24x96xbf16> to vector<2x24x8xbf16>
    %111 = vector.extract_strided_slice %107 {offsets = [0, 0, 24], sizes = [2, 24, 8], strides = [1, 1, 1]} : vector<2x24x96xbf16> to vector<2x24x8xbf16>
    %112 = tpu.concatenate %108, %109, %110, %111 in 0 : vector<2x24x8xbf16>, vector<2x24x8xbf16>, vector<2x24x8xbf16>, vector<2x24x8xbf16> -> vector<8x24x8xbf16>
    %113 = vector.extract_strided_slice %107 {offsets = [0, 0, 32], sizes = [2, 24, 8], strides = [1, 1, 1]} : vector<2x24x96xbf16> to vector<2x24x8xbf16>
    %114 = vector.extract_strided_slice %107 {offsets = [0, 0, 40], sizes = [2, 24, 8], strides = [1, 1, 1]} : vector<2x24x96xbf16> to vector<2x24x8xbf16>
    %115 = vector.extract_strided_slice %107 {offsets = [0, 0, 48], sizes = [2, 24, 8], strides = [1, 1, 1]} : vector<2x24x96xbf16> to vector<2x24x8xbf16>
    %116 = vector.extract_strided_slice %107 {offsets = [0, 0, 56], sizes = [2, 24, 8], strides = [1, 1, 1]} : vector<2x24x96xbf16> to vector<2x24x8xbf16>
    %117 = tpu.concatenate %113, %114, %115, %116 in 0 : vector<2x24x8xbf16>, vector<2x24x8xbf16>, vector<2x24x8xbf16>, vector<2x24x8xbf16> -> vector<8x24x8xbf16>
    %118 = vector.extract_strided_slice %107 {offsets = [0, 0, 64], sizes = [2, 24, 8], strides = [1, 1, 1]} : vector<2x24x96xbf16> to vector<2x24x8xbf16>
    %119 = vector.extract_strided_slice %107 {offsets = [0, 0, 72], sizes = [2, 24, 8], strides = [1, 1, 1]} : vector<2x24x96xbf16> to vector<2x24x8xbf16>
    %120 = vector.extract_strided_slice %107 {offsets = [0, 0, 80], sizes = [2, 24, 8], strides = [1, 1, 1]} : vector<2x24x96xbf16> to vector<2x24x8xbf16>
    %121 = vector.extract_strided_slice %107 {offsets = [0, 0, 88], sizes = [2, 24, 8], strides = [1, 1, 1]} : vector<2x24x96xbf16> to vector<2x24x8xbf16>
    %122 = tpu.concatenate %118, %119, %120, %121 in 0 : vector<2x24x8xbf16>, vector<2x24x8xbf16>, vector<2x24x8xbf16>, vector<2x24x8xbf16> -> vector<8x24x8xbf16>
    %cst_44 = arith.constant dense<0.000000e+00> : vector<8x24x24xf32>
    %123 = tpu.matmul %112, %117, %cst_44 {dimension_numbers = #tpu.dot_dimension_numbers<[2], [2], [1], [1], [0, 0, 0, 1, 1, 1], [0], [0]>} : vector<8x24x8xbf16>, vector<8x24x8xbf16>, vector<8x24x24xf32> -> vector<8x24x24xf32>
    %cst_45 = arith.constant dense<0xFF800000> : vector<8x24xf32>
    %124 = vector.multi_reduction <maximumf>, %123, %cst_45 [2] : vector<8x24x24xf32> to vector<8x24xf32>
    %125 = vector.shape_cast %124 : vector<8x24xf32> to vector<8x24x1xf32>
    %126 = vector.broadcast %125 : vector<8x24x1xf32> to vector<8x24x24xf32>
    %127 = arith.subf %123, %126 : vector<8x24x24xf32>
    %128 = math.exp %127 : vector<8x24x24xf32>
    %cst_46 = arith.constant 0.000000e+00 : f32
    %129 = vector.shape_cast %75 : vector<24x24xi1> to vector<1x24x24xi1>
    %130 = vector.broadcast %129 : vector<1x24x24xi1> to vector<8x24x24xi1>
    %131 = vector.broadcast %cst_46 : f32 to vector<8x24x24xf32>
    %132 = arith.select %130, %131, %128 : vector<8x24x24xi1>, vector<8x24x24xf32>
    %cst_47 = arith.constant dense<0.000000e+00> : vector<8x24xf32>
    %133 = vector.multi_reduction <add>, %132, %cst_47 [2] : vector<8x24x24xf32> to vector<8x24xf32>
    %134 = vector.shape_cast %133 : vector<8x24xf32> to vector<8x24x1xf32>
    %135 = tpu.reciprocal %134 {approx = true} : vector<8x24x1xf32> -> vector<8x24x1xf32>
    %136 = vector.broadcast %135 : vector<8x24x1xf32> to vector<8x24x24xf32>
    %137 = arith.mulf %132, %136 : vector<8x24x24xf32>
    %138 = arith.truncf %137 : vector<8x24x24xf32> to vector<8x24x24xbf16>
    %cst_48 = arith.constant dense<0.000000e+00> : vector<8x24x8xf32>
    %139 = tpu.matmul %138, %122, %cst_48 {dimension_numbers = #tpu.dot_dimension_numbers<[2], [1], [1], [2], [0, 0, 0, 1, 1, 2], [0], [0]>} : vector<8x24x24xbf16>, vector<8x24x8xbf16>, vector<8x24x8xf32> -> vector<8x24x8xf32>
    %140 = vector.extract_strided_slice %139 {offsets = [0, 0, 0], sizes = [2, 24, 8], strides = [1, 1, 1]} : vector<8x24x8xf32> to vector<2x24x8xf32>
    %141 = vector.extract_strided_slice %139 {offsets = [2, 0, 0], sizes = [2, 24, 8], strides = [1, 1, 1]} : vector<8x24x8xf32> to vector<2x24x8xf32>
    %142 = vector.extract_strided_slice %139 {offsets = [4, 0, 0], sizes = [2, 24, 8], strides = [1, 1, 1]} : vector<8x24x8xf32> to vector<2x24x8xf32>
    %143 = vector.extract_strided_slice %139 {offsets = [6, 0, 0], sizes = [2, 24, 8], strides = [1, 1, 1]} : vector<8x24x8xf32> to vector<2x24x8xf32>
    %144 = tpu.concatenate %140, %141, %142, %143 in 2 : vector<2x24x8xf32>, vector<2x24x8xf32>, vector<2x24x8xf32>, vector<2x24x8xf32> -> vector<2x24x32xf32>
    %145 = vector.shape_cast %144 : vector<2x24x32xf32> to vector<48x32xf32>
    %146 = arith.truncf %145 : vector<48x32xf32> to vector<48x32xbf16>
    %c0_49 = arith.constant 0 : index
    %c0_50 = arith.constant 0 : index
    %c0_51 = arith.constant 0 : index
    %147 = vector.load %arg13[%c0_49, %c0_50, %c0_51] : memref<2x32x32xbf16, #tpu.memory_space<vmem>>, vector<1x32x32xbf16>
    %148 = vector.shape_cast %147 : vector<1x32x32xbf16> to vector<32x32xbf16>
    %cst_52 = arith.constant dense<0.000000e+00> : vector<48x32xf32>
    %149 = tpu.matmul %146, %148, %cst_52 {dimension_numbers = #tpu.dot_dimension_numbers<[1], [0], [0], [1], [0, 0, 1, 1], [], []>} : vector<48x32xbf16>, vector<32x32xbf16>, vector<48x32xf32> -> vector<48x32xf32>
    %c0_53 = arith.constant 0 : index
    %c0_54 = arith.constant 0 : index
    %c0_55 = arith.constant 0 : index
    %150 = vector.load %arg14[%c0_53, %c0_54, %c0_55] : memref<2x1x32xf32, #tpu.memory_space<vmem>>, vector<1x1x32xf32>
    %151 = vector.shape_cast %150 : vector<1x1x32xf32> to vector<1x32xf32>
    %152 = vector.broadcast %151 : vector<1x32xf32> to vector<48x32xf32>
    %153 = arith.addf %149, %152 : vector<48x32xf32>
    %154 = arith.addf %153, %69 : vector<48x32xf32>
    %c0_56 = arith.constant 0 : index
    %c0_57 = arith.constant 0 : index
    %c0_58 = arith.constant 0 : index
    %155 = vector.load %arg15[%c0_56, %c0_57, %c0_58] : memref<2x1x32xf32, #tpu.memory_space<vmem>>, vector<1x1x32xf32>
    %156 = vector.shape_cast %155 : vector<1x1x32xf32> to vector<1x32xf32>
    %c0_59 = arith.constant 0 : index
    %c0_60 = arith.constant 0 : index
    %c0_61 = arith.constant 0 : index
    %157 = vector.load %arg16[%c0_59, %c0_60, %c0_61] : memref<2x1x32xf32, #tpu.memory_space<vmem>>, vector<1x1x32xf32>
    %158 = vector.shape_cast %157 : vector<1x1x32xf32> to vector<1x32xf32>
    %cst_62 = arith.constant dense<0.000000e+00> : vector<48xf32>
    %159 = vector.multi_reduction <add>, %154, %cst_62 [1] : vector<48x32xf32> to vector<48xf32>
    %160 = vector.shape_cast %159 : vector<48xf32> to vector<48x1xf32>
    %cst_63 = arith.constant 3.200000e+01 : f32
    %161 = vector.broadcast %cst_63 : f32 to vector<48x1xf32>
    %162 = arith.divf %160, %161 : vector<48x1xf32>
    %163 = vector.broadcast %162 : vector<48x1xf32> to vector<48x32xf32>
    %164 = arith.subf %154, %163 : vector<48x32xf32>
    %165 = arith.mulf %164, %164 : vector<48x32xf32>
    %cst_64 = arith.constant dense<0.000000e+00> : vector<48xf32>
    %166 = vector.multi_reduction <add>, %165, %cst_64 [1] : vector<48x32xf32> to vector<48xf32>
    %167 = vector.shape_cast %166 : vector<48xf32> to vector<48x1xf32>
    %cst_65 = arith.constant 3.200000e+01 : f32
    %168 = vector.broadcast %cst_65 : f32 to vector<48x1xf32>
    %169 = arith.divf %167, %168 : vector<48x1xf32>
    %170 = vector.broadcast %162 : vector<48x1xf32> to vector<48x32xf32>
    %171 = arith.subf %154, %170 : vector<48x32xf32>
    %cst_66 = arith.constant 9.99999974E-6 : f32
    %172 = vector.broadcast %cst_66 : f32 to vector<48x1xf32>
    %173 = arith.addf %169, %172 : vector<48x1xf32>
    %174 = math.rsqrt %173 : vector<48x1xf32>
    %175 = vector.broadcast %174 : vector<48x1xf32> to vector<48x32xf32>
    %176 = arith.mulf %171, %175 : vector<48x32xf32>
    %177 = vector.broadcast %156 : vector<1x32xf32> to vector<48x32xf32>
    %178 = arith.mulf %176, %177 : vector<48x32xf32>
    %179 = vector.broadcast %158 : vector<1x32xf32> to vector<48x32xf32>
    %180 = arith.addf %178, %179 : vector<48x32xf32>
    %181 = arith.truncf %180 : vector<48x32xf32> to vector<48x32xbf16>
    %c0_67 = arith.constant 0 : index
    %c0_68 = arith.constant 0 : index
    %c0_69 = arith.constant 0 : index
    %182 = vector.load %arg17[%c0_67, %c0_68, %c0_69] : memref<2x32x64xbf16, #tpu.memory_space<vmem>>, vector<1x32x64xbf16>
    %183 = vector.shape_cast %182 : vector<1x32x64xbf16> to vector<32x64xbf16>
    %cst_70 = arith.constant dense<0.000000e+00> : vector<48x64xf32>
    %184 = tpu.matmul %181, %183, %cst_70 {dimension_numbers = #tpu.dot_dimension_numbers<[1], [0], [0], [1], [0, 0, 1, 1], [], []>} : vector<48x32xbf16>, vector<32x64xbf16>, vector<48x64xf32> -> vector<48x64xf32>
    %c0_71 = arith.constant 0 : index
    %c0_72 = arith.constant 0 : index
    %c0_73 = arith.constant 0 : index
    %185 = vector.load %arg18[%c0_71, %c0_72, %c0_73] : memref<2x1x64xf32, #tpu.memory_space<vmem>>, vector<1x1x64xf32>
    %186 = vector.shape_cast %185 : vector<1x1x64xf32> to vector<1x64xf32>
    %187 = vector.broadcast %186 : vector<1x64xf32> to vector<48x64xf32>
    %188 = arith.addf %184, %187 : vector<48x64xf32>
    %cst_74 = arith.constant 5.000000e-01 : f32
    %189 = vector.broadcast %cst_74 : f32 to vector<48x64xf32>
    %190 = arith.mulf %189, %188 : vector<48x64xf32>
    %cst_75 = arith.constant 0.707106769 : f32
    %191 = vector.broadcast %cst_75 : f32 to vector<48x64xf32>
    %192 = arith.mulf %188, %191 : vector<48x64xf32>
    %193 = math.erf %192 : vector<48x64xf32>
    %cst_76 = arith.constant 1.000000e+00 : f32
    %194 = vector.broadcast %cst_76 : f32 to vector<48x64xf32>
    %195 = arith.addf %194, %193 : vector<48x64xf32>
    %196 = arith.mulf %190, %195 : vector<48x64xf32>
    %197 = arith.truncf %196 : vector<48x64xf32> to vector<48x64xbf16>
    %c0_77 = arith.constant 0 : index
    %c0_78 = arith.constant 0 : index
    %c0_79 = arith.constant 0 : index
    %198 = vector.load %arg19[%c0_77, %c0_78, %c0_79] : memref<2x64x32xbf16, #tpu.memory_space<vmem>>, vector<1x64x32xbf16>
    %199 = vector.shape_cast %198 : vector<1x64x32xbf16> to vector<64x32xbf16>
    %cst_80 = arith.constant dense<0.000000e+00> : vector<48x32xf32>
    %200 = tpu.matmul %197, %199, %cst_80 {dimension_numbers = #tpu.dot_dimension_numbers<[1], [0], [0], [1], [0, 0, 1, 1], [], []>} : vector<48x64xbf16>, vector<64x32xbf16>, vector<48x32xf32> -> vector<48x32xf32>
    %c0_81 = arith.constant 0 : index
    %c0_82 = arith.constant 0 : index
    %c0_83 = arith.constant 0 : index
    %201 = vector.load %arg20[%c0_81, %c0_82, %c0_83] : memref<2x1x32xf32, #tpu.memory_space<vmem>>, vector<1x1x32xf32>
    %202 = vector.shape_cast %201 : vector<1x1x32xf32> to vector<1x32xf32>
    %203 = vector.broadcast %202 : vector<1x32xf32> to vector<48x32xf32>
    %204 = arith.addf %200, %203 : vector<48x32xf32>
    %205 = arith.addf %204, %154 : vector<48x32xf32>
    %c1 = arith.constant 1 : index
    %c0_84 = arith.constant 0 : index
    %c0_85 = arith.constant 0 : index
    %206 = vector.load %arg10[%c1, %c0_84, %c0_85] : memref<2x1x32xf32, #tpu.memory_space<vmem>>, vector<1x1x32xf32>
    %207 = vector.shape_cast %206 : vector<1x1x32xf32> to vector<1x32xf32>
    %c1_86 = arith.constant 1 : index
    %c0_87 = arith.constant 0 : index
    %c0_88 = arith.constant 0 : index
    %208 = vector.load %arg11[%c1_86, %c0_87, %c0_88] : memref<2x1x32xf32, #tpu.memory_space<vmem>>, vector<1x1x32xf32>
    %209 = vector.shape_cast %208 : vector<1x1x32xf32> to vector<1x32xf32>
    %cst_89 = arith.constant dense<0.000000e+00> : vector<48xf32>
    %210 = vector.multi_reduction <add>, %205, %cst_89 [1] : vector<48x32xf32> to vector<48xf32>
    %211 = vector.shape_cast %210 : vector<48xf32> to vector<48x1xf32>
    %cst_90 = arith.constant 3.200000e+01 : f32
    %212 = vector.broadcast %cst_90 : f32 to vector<48x1xf32>
    %213 = arith.divf %211, %212 : vector<48x1xf32>
    %214 = vector.broadcast %213 : vector<48x1xf32> to vector<48x32xf32>
    %215 = arith.subf %205, %214 : vector<48x32xf32>
    %216 = arith.mulf %215, %215 : vector<48x32xf32>
    %cst_91 = arith.constant dense<0.000000e+00> : vector<48xf32>
    %217 = vector.multi_reduction <add>, %216, %cst_91 [1] : vector<48x32xf32> to vector<48xf32>
    %218 = vector.shape_cast %217 : vector<48xf32> to vector<48x1xf32>
    %cst_92 = arith.constant 3.200000e+01 : f32
    %219 = vector.broadcast %cst_92 : f32 to vector<48x1xf32>
    %220 = arith.divf %218, %219 : vector<48x1xf32>
    %221 = vector.broadcast %213 : vector<48x1xf32> to vector<48x32xf32>
    %222 = arith.subf %205, %221 : vector<48x32xf32>
    %cst_93 = arith.constant 9.99999974E-6 : f32
    %223 = vector.broadcast %cst_93 : f32 to vector<48x1xf32>
    %224 = arith.addf %220, %223 : vector<48x1xf32>
    %225 = math.rsqrt %224 : vector<48x1xf32>
    %226 = vector.broadcast %225 : vector<48x1xf32> to vector<48x32xf32>
    %227 = arith.mulf %222, %226 : vector<48x32xf32>
    %228 = vector.broadcast %207 : vector<1x32xf32> to vector<48x32xf32>
    %229 = arith.mulf %227, %228 : vector<48x32xf32>
    %230 = vector.broadcast %209 : vector<1x32xf32> to vector<48x32xf32>
    %231 = arith.addf %229, %230 : vector<48x32xf32>
    %232 = arith.truncf %231 : vector<48x32xf32> to vector<48x32xbf16>
    %c1_94 = arith.constant 1 : index
    %c0_95 = arith.constant 0 : index
    %c0_96 = arith.constant 0 : index
    %233 = vector.load %arg12[%c1_94, %c0_95, %c0_96] : memref<2x32x96xbf16, #tpu.memory_space<vmem>>, vector<1x32x96xbf16>
    %234 = vector.shape_cast %233 : vector<1x32x96xbf16> to vector<32x96xbf16>
    %cst_97 = arith.constant dense<0.000000e+00> : vector<48x96xf32>
    %235 = tpu.matmul %232, %234, %cst_97 {dimension_numbers = #tpu.dot_dimension_numbers<[1], [0], [0], [1], [0, 0, 1, 1], [], []>} : vector<48x32xbf16>, vector<32x96xbf16>, vector<48x96xf32> -> vector<48x96xf32>
    %236 = arith.truncf %235 : vector<48x96xf32> to vector<48x96xbf16>
    %237 = vector.shape_cast %236 : vector<48x96xbf16> to vector<2x24x96xbf16>
    %238 = vector.extract_strided_slice %237 {offsets = [0, 0, 0], sizes = [2, 24, 8], strides = [1, 1, 1]} : vector<2x24x96xbf16> to vector<2x24x8xbf16>
    %239 = vector.extract_strided_slice %237 {offsets = [0, 0, 8], sizes = [2, 24, 8], strides = [1, 1, 1]} : vector<2x24x96xbf16> to vector<2x24x8xbf16>
    %240 = vector.extract_strided_slice %237 {offsets = [0, 0, 16], sizes = [2, 24, 8], strides = [1, 1, 1]} : vector<2x24x96xbf16> to vector<2x24x8xbf16>
    %241 = vector.extract_strided_slice %237 {offsets = [0, 0, 24], sizes = [2, 24, 8], strides = [1, 1, 1]} : vector<2x24x96xbf16> to vector<2x24x8xbf16>
    %242 = tpu.concatenate %238, %239, %240, %241 in 0 : vector<2x24x8xbf16>, vector<2x24x8xbf16>, vector<2x24x8xbf16>, vector<2x24x8xbf16> -> vector<8x24x8xbf16>
    %243 = vector.extract_strided_slice %237 {offsets = [0, 0, 32], sizes = [2, 24, 8], strides = [1, 1, 1]} : vector<2x24x96xbf16> to vector<2x24x8xbf16>
    %244 = vector.extract_strided_slice %237 {offsets = [0, 0, 40], sizes = [2, 24, 8], strides = [1, 1, 1]} : vector<2x24x96xbf16> to vector<2x24x8xbf16>
    %245 = vector.extract_strided_slice %237 {offsets = [0, 0, 48], sizes = [2, 24, 8], strides = [1, 1, 1]} : vector<2x24x96xbf16> to vector<2x24x8xbf16>
    %246 = vector.extract_strided_slice %237 {offsets = [0, 0, 56], sizes = [2, 24, 8], strides = [1, 1, 1]} : vector<2x24x96xbf16> to vector<2x24x8xbf16>
    %247 = tpu.concatenate %243, %244, %245, %246 in 0 : vector<2x24x8xbf16>, vector<2x24x8xbf16>, vector<2x24x8xbf16>, vector<2x24x8xbf16> -> vector<8x24x8xbf16>
    %248 = vector.extract_strided_slice %237 {offsets = [0, 0, 64], sizes = [2, 24, 8], strides = [1, 1, 1]} : vector<2x24x96xbf16> to vector<2x24x8xbf16>
    %249 = vector.extract_strided_slice %237 {offsets = [0, 0, 72], sizes = [2, 24, 8], strides = [1, 1, 1]} : vector<2x24x96xbf16> to vector<2x24x8xbf16>
    %250 = vector.extract_strided_slice %237 {offsets = [0, 0, 80], sizes = [2, 24, 8], strides = [1, 1, 1]} : vector<2x24x96xbf16> to vector<2x24x8xbf16>
    %251 = vector.extract_strided_slice %237 {offsets = [0, 0, 88], sizes = [2, 24, 8], strides = [1, 1, 1]} : vector<2x24x96xbf16> to vector<2x24x8xbf16>
    %252 = tpu.concatenate %248, %249, %250, %251 in 0 : vector<2x24x8xbf16>, vector<2x24x8xbf16>, vector<2x24x8xbf16>, vector<2x24x8xbf16> -> vector<8x24x8xbf16>
    %cst_98 = arith.constant dense<0.000000e+00> : vector<8x24x24xf32>
    %253 = tpu.matmul %242, %247, %cst_98 {dimension_numbers = #tpu.dot_dimension_numbers<[2], [2], [1], [1], [0, 0, 0, 1, 1, 1], [0], [0]>} : vector<8x24x8xbf16>, vector<8x24x8xbf16>, vector<8x24x24xf32> -> vector<8x24x24xf32>
    %cst_99 = arith.constant dense<0xFF800000> : vector<8x24xf32>
    %254 = vector.multi_reduction <maximumf>, %253, %cst_99 [2] : vector<8x24x24xf32> to vector<8x24xf32>
    %255 = vector.shape_cast %254 : vector<8x24xf32> to vector<8x24x1xf32>
    %256 = vector.broadcast %255 : vector<8x24x1xf32> to vector<8x24x24xf32>
    %257 = arith.subf %253, %256 : vector<8x24x24xf32>
    %258 = math.exp %257 : vector<8x24x24xf32>
    %cst_100 = arith.constant 0.000000e+00 : f32
    %259 = vector.shape_cast %75 : vector<24x24xi1> to vector<1x24x24xi1>
    %260 = vector.broadcast %259 : vector<1x24x24xi1> to vector<8x24x24xi1>
    %261 = vector.broadcast %cst_100 : f32 to vector<8x24x24xf32>
    %262 = arith.select %260, %261, %258 : vector<8x24x24xi1>, vector<8x24x24xf32>
    %cst_101 = arith.constant dense<0.000000e+00> : vector<8x24xf32>
    %263 = vector.multi_reduction <add>, %262, %cst_101 [2] : vector<8x24x24xf32> to vector<8x24xf32>
    %264 = vector.shape_cast %263 : vector<8x24xf32> to vector<8x24x1xf32>
    %265 = tpu.reciprocal %264 {approx = true} : vector<8x24x1xf32> -> vector<8x24x1xf32>
    %266 = vector.broadcast %265 : vector<8x24x1xf32> to vector<8x24x24xf32>
    %267 = arith.mulf %262, %266 : vector<8x24x24xf32>
    %268 = arith.truncf %267 : vector<8x24x24xf32> to vector<8x24x24xbf16>
    %cst_102 = arith.constant dense<0.000000e+00> : vector<8x24x8xf32>
    %269 = tpu.matmul %268, %252, %cst_102 {dimension_numbers = #tpu.dot_dimension_numbers<[2], [1], [1], [2], [0, 0, 0, 1, 1, 2], [0], [0]>} : vector<8x24x24xbf16>, vector<8x24x8xbf16>, vector<8x24x8xf32> -> vector<8x24x8xf32>
    %270 = vector.extract_strided_slice %269 {offsets = [0, 0, 0], sizes = [2, 24, 8], strides = [1, 1, 1]} : vector<8x24x8xf32> to vector<2x24x8xf32>
    %271 = vector.extract_strided_slice %269 {offsets = [2, 0, 0], sizes = [2, 24, 8], strides = [1, 1, 1]} : vector<8x24x8xf32> to vector<2x24x8xf32>
    %272 = vector.extract_strided_slice %269 {offsets = [4, 0, 0], sizes = [2, 24, 8], strides = [1, 1, 1]} : vector<8x24x8xf32> to vector<2x24x8xf32>
    %273 = vector.extract_strided_slice %269 {offsets = [6, 0, 0], sizes = [2, 24, 8], strides = [1, 1, 1]} : vector<8x24x8xf32> to vector<2x24x8xf32>
    %274 = tpu.concatenate %270, %271, %272, %273 in 2 : vector<2x24x8xf32>, vector<2x24x8xf32>, vector<2x24x8xf32>, vector<2x24x8xf32> -> vector<2x24x32xf32>
    %275 = vector.shape_cast %274 : vector<2x24x32xf32> to vector<48x32xf32>
    %276 = arith.truncf %275 : vector<48x32xf32> to vector<48x32xbf16>
    %c1_103 = arith.constant 1 : index
    %c0_104 = arith.constant 0 : index
    %c0_105 = arith.constant 0 : index
    %277 = vector.load %arg13[%c1_103, %c0_104, %c0_105] : memref<2x32x32xbf16, #tpu.memory_space<vmem>>, vector<1x32x32xbf16>
    %278 = vector.shape_cast %277 : vector<1x32x32xbf16> to vector<32x32xbf16>
    %cst_106 = arith.constant dense<0.000000e+00> : vector<48x32xf32>
    %279 = tpu.matmul %276, %278, %cst_106 {dimension_numbers = #tpu.dot_dimension_numbers<[1], [0], [0], [1], [0, 0, 1, 1], [], []>} : vector<48x32xbf16>, vector<32x32xbf16>, vector<48x32xf32> -> vector<48x32xf32>
    %c1_107 = arith.constant 1 : index
    %c0_108 = arith.constant 0 : index
    %c0_109 = arith.constant 0 : index
    %280 = vector.load %arg14[%c1_107, %c0_108, %c0_109] : memref<2x1x32xf32, #tpu.memory_space<vmem>>, vector<1x1x32xf32>
    %281 = vector.shape_cast %280 : vector<1x1x32xf32> to vector<1x32xf32>
    %282 = vector.broadcast %281 : vector<1x32xf32> to vector<48x32xf32>
    %283 = arith.addf %279, %282 : vector<48x32xf32>
    %284 = arith.addf %283, %205 : vector<48x32xf32>
    %c1_110 = arith.constant 1 : index
    %c0_111 = arith.constant 0 : index
    %c0_112 = arith.constant 0 : index
    %285 = vector.load %arg15[%c1_110, %c0_111, %c0_112] : memref<2x1x32xf32, #tpu.memory_space<vmem>>, vector<1x1x32xf32>
    %286 = vector.shape_cast %285 : vector<1x1x32xf32> to vector<1x32xf32>
    %c1_113 = arith.constant 1 : index
    %c0_114 = arith.constant 0 : index
    %c0_115 = arith.constant 0 : index
    %287 = vector.load %arg16[%c1_113, %c0_114, %c0_115] : memref<2x1x32xf32, #tpu.memory_space<vmem>>, vector<1x1x32xf32>
    %288 = vector.shape_cast %287 : vector<1x1x32xf32> to vector<1x32xf32>
    %cst_116 = arith.constant dense<0.000000e+00> : vector<48xf32>
    %289 = vector.multi_reduction <add>, %284, %cst_116 [1] : vector<48x32xf32> to vector<48xf32>
    %290 = vector.shape_cast %289 : vector<48xf32> to vector<48x1xf32>
    %cst_117 = arith.constant 3.200000e+01 : f32
    %291 = vector.broadcast %cst_117 : f32 to vector<48x1xf32>
    %292 = arith.divf %290, %291 : vector<48x1xf32>
    %293 = vector.broadcast %292 : vector<48x1xf32> to vector<48x32xf32>
    %294 = arith.subf %284, %293 : vector<48x32xf32>
    %295 = arith.mulf %294, %294 : vector<48x32xf32>
    %cst_118 = arith.constant dense<0.000000e+00> : vector<48xf32>
    %296 = vector.multi_reduction <add>, %295, %cst_118 [1] : vector<48x32xf32> to vector<48xf32>
    %297 = vector.shape_cast %296 : vector<48xf32> to vector<48x1xf32>
    %cst_119 = arith.constant 3.200000e+01 : f32
    %298 = vector.broadcast %cst_119 : f32 to vector<48x1xf32>
    %299 = arith.divf %297, %298 : vector<48x1xf32>
    %300 = vector.broadcast %292 : vector<48x1xf32> to vector<48x32xf32>
    %301 = arith.subf %284, %300 : vector<48x32xf32>
    %cst_120 = arith.constant 9.99999974E-6 : f32
    %302 = vector.broadcast %cst_120 : f32 to vector<48x1xf32>
    %303 = arith.addf %299, %302 : vector<48x1xf32>
    %304 = math.rsqrt %303 : vector<48x1xf32>
    %305 = vector.broadcast %304 : vector<48x1xf32> to vector<48x32xf32>
    %306 = arith.mulf %301, %305 : vector<48x32xf32>
    %307 = vector.broadcast %286 : vector<1x32xf32> to vector<48x32xf32>
    %308 = arith.mulf %306, %307 : vector<48x32xf32>
    %309 = vector.broadcast %288 : vector<1x32xf32> to vector<48x32xf32>
    %310 = arith.addf %308, %309 : vector<48x32xf32>
    %311 = arith.truncf %310 : vector<48x32xf32> to vector<48x32xbf16>
    %c1_121 = arith.constant 1 : index
    %c0_122 = arith.constant 0 : index
    %c0_123 = arith.constant 0 : index
    %312 = vector.load %arg17[%c1_121, %c0_122, %c0_123] : memref<2x32x64xbf16, #tpu.memory_space<vmem>>, vector<1x32x64xbf16>
    %313 = vector.shape_cast %312 : vector<1x32x64xbf16> to vector<32x64xbf16>
    %cst_124 = arith.constant dense<0.000000e+00> : vector<48x64xf32>
    %314 = tpu.matmul %311, %313, %cst_124 {dimension_numbers = #tpu.dot_dimension_numbers<[1], [0], [0], [1], [0, 0, 1, 1], [], []>} : vector<48x32xbf16>, vector<32x64xbf16>, vector<48x64xf32> -> vector<48x64xf32>
    %c1_125 = arith.constant 1 : index
    %c0_126 = arith.constant 0 : index
    %c0_127 = arith.constant 0 : index
    %315 = vector.load %arg18[%c1_125, %c0_126, %c0_127] : memref<2x1x64xf32, #tpu.memory_space<vmem>>, vector<1x1x64xf32>
    %316 = vector.shape_cast %315 : vector<1x1x64xf32> to vector<1x64xf32>
    %317 = vector.broadcast %316 : vector<1x64xf32> to vector<48x64xf32>
    %318 = arith.addf %314, %317 : vector<48x64xf32>
    %cst_128 = arith.constant 5.000000e-01 : f32
    %319 = vector.broadcast %cst_128 : f32 to vector<48x64xf32>
    %320 = arith.mulf %319, %318 : vector<48x64xf32>
    %cst_129 = arith.constant 0.707106769 : f32
    %321 = vector.broadcast %cst_129 : f32 to vector<48x64xf32>
    %322 = arith.mulf %318, %321 : vector<48x64xf32>
    %323 = math.erf %322 : vector<48x64xf32>
    %cst_130 = arith.constant 1.000000e+00 : f32
    %324 = vector.broadcast %cst_130 : f32 to vector<48x64xf32>
    %325 = arith.addf %324, %323 : vector<48x64xf32>
    %326 = arith.mulf %320, %325 : vector<48x64xf32>
    %327 = arith.truncf %326 : vector<48x64xf32> to vector<48x64xbf16>
    %c1_131 = arith.constant 1 : index
    %c0_132 = arith.constant 0 : index
    %c0_133 = arith.constant 0 : index
    %328 = vector.load %arg19[%c1_131, %c0_132, %c0_133] : memref<2x64x32xbf16, #tpu.memory_space<vmem>>, vector<1x64x32xbf16>
    %329 = vector.shape_cast %328 : vector<1x64x32xbf16> to vector<64x32xbf16>
    %cst_134 = arith.constant dense<0.000000e+00> : vector<48x32xf32>
    %330 = tpu.matmul %327, %329, %cst_134 {dimension_numbers = #tpu.dot_dimension_numbers<[1], [0], [0], [1], [0, 0, 1, 1], [], []>} : vector<48x64xbf16>, vector<64x32xbf16>, vector<48x32xf32> -> vector<48x32xf32>
    %c1_135 = arith.constant 1 : index
    %c0_136 = arith.constant 0 : index
    %c0_137 = arith.constant 0 : index
    %331 = vector.load %arg20[%c1_135, %c0_136, %c0_137] : memref<2x1x32xf32, #tpu.memory_space<vmem>>, vector<1x1x32xf32>
    %332 = vector.shape_cast %331 : vector<1x1x32xf32> to vector<1x32xf32>
    %333 = vector.broadcast %332 : vector<1x32xf32> to vector<48x32xf32>
    %334 = arith.addf %330, %333 : vector<48x32xf32>
    %335 = arith.addf %334, %284 : vector<48x32xf32>
    %336 = vector.shape_cast %335 : vector<48x32xf32> to vector<2x24x32xf32>
    %337 = vector.extract_strided_slice %336 {offsets = [0, 0, 0], sizes = [2, 1, 32], strides = [1, 1, 1]} : vector<2x24x32xf32> to vector<2x1x32xf32>
    %338 = vector.shape_cast %337 : vector<2x1x32xf32> to vector<2x32xf32>
    %c0_138 = arith.constant 0 : index
    %c0_139 = arith.constant 0 : index
    %339 = vector.load %arg21[%c0_138, %c0_139] : memref<1x32xf32, #tpu.memory_space<vmem>>, vector<1x32xf32>
    %c0_140 = arith.constant 0 : index
    %c0_141 = arith.constant 0 : index
    %340 = vector.load %arg22[%c0_140, %c0_141] : memref<1x32xf32, #tpu.memory_space<vmem>>, vector<1x32xf32>
    %cst_142 = arith.constant dense<0.000000e+00> : vector<2xf32>
    %341 = vector.multi_reduction <add>, %338, %cst_142 [1] : vector<2x32xf32> to vector<2xf32>
    %342 = vector.shape_cast %341 : vector<2xf32> to vector<2x1xf32>
    %cst_143 = arith.constant 3.200000e+01 : f32
    %343 = vector.broadcast %cst_143 : f32 to vector<2x1xf32>
    %344 = arith.divf %342, %343 : vector<2x1xf32>
    %345 = vector.broadcast %344 : vector<2x1xf32> to vector<2x32xf32>
    %346 = arith.subf %338, %345 : vector<2x32xf32>
    %347 = arith.mulf %346, %346 : vector<2x32xf32>
    %cst_144 = arith.constant dense<0.000000e+00> : vector<2xf32>
    %348 = vector.multi_reduction <add>, %347, %cst_144 [1] : vector<2x32xf32> to vector<2xf32>
    %349 = vector.shape_cast %348 : vector<2xf32> to vector<2x1xf32>
    %cst_145 = arith.constant 3.200000e+01 : f32
    %350 = vector.broadcast %cst_145 : f32 to vector<2x1xf32>
    %351 = arith.divf %349, %350 : vector<2x1xf32>
    %352 = vector.broadcast %344 : vector<2x1xf32> to vector<2x32xf32>
    %353 = arith.subf %338, %352 : vector<2x32xf32>
    %cst_146 = arith.constant 9.99999974E-6 : f32
    %354 = vector.broadcast %cst_146 : f32 to vector<2x1xf32>
    %355 = arith.addf %351, %354 : vector<2x1xf32>
    %356 = math.rsqrt %355 : vector<2x1xf32>
    %357 = vector.broadcast %356 : vector<2x1xf32> to vector<2x32xf32>
    %358 = arith.mulf %353, %357 : vector<2x32xf32>
    %359 = vector.broadcast %339 : vector<1x32xf32> to vector<2x32xf32>
    %360 = arith.mulf %358, %359 : vector<2x32xf32>
    %361 = vector.broadcast %340 : vector<1x32xf32> to vector<2x32xf32>
    %362 = arith.addf %360, %361 : vector<2x32xf32>
    %c0_147 = arith.constant 0 : index
    %c0_148 = arith.constant 0 : index
    %363 = vector.load %arg23[%c0_147, %c0_148] : memref<2x32xf32, #tpu.memory_space<vmem>>, vector<2x32xf32>
    tpu.vector_store %arg23[%c0_147, %c0_148], %362 {strides = array<i32>} : memref<2x32xf32, #tpu.memory_space<vmem>>, vector<2x32xf32>,
    return
  }
  func.func @transform_0(%arg0: i32) -> (i32, i32, i32) {
    %c0_i32 = arith.constant 0 : i32
    %c0_i32_0 = arith.constant 0 : i32
    %c0_i32_1 = arith.constant 0 : i32
    return %arg0, %c0_i32, %c0_i32_0 : i32, i32, i32
  }
  func.func @transform_1(%arg0: i32) -> (i32, i32) {
    %c0_i32 = arith.constant 0 : i32
    %c0_i32_0 = arith.constant 0 : i32
    %c0_i32_1 = arith.constant 0 : i32
    return %c0_i32, %c0_i32_0 : i32, i32
  }
  func.func @transform_2(%arg0: i32) -> (i32, i32) {
    %c0_i32 = arith.constant 0 : i32
    %c0_i32_0 = arith.constant 0 : i32
    %c0_i32_1 = arith.constant 0 : i32
    return %c0_i32, %c0_i32_0 : i32, i32
  }
  func.func @transform_3(%arg0: i32) -> (i32, i32) {
    %c0_i32 = arith.constant 0 : i32
    %c0_i32_0 = arith.constant 0 : i32
    %c0_i32_1 = arith.constant 0 : i32
    return %c0_i32, %c0_i32_0 : i32, i32
  }
  func.func @transform_4(%arg0: i32) -> (i32, i32) {
    %c0_i32 = arith.constant 0 : i32
    %c0_i32_0 = arith.constant 0 : i32
    %c0_i32_1 = arith.constant 0 : i32
    return %c0_i32, %c0_i32_0 : i32, i32
  }
  func.func @transform_5(%arg0: i32) -> (i32, i32) {
    %c0_i32 = arith.constant 0 : i32
    %c0_i32_0 = arith.constant 0 : i32
    %c0_i32_1 = arith.constant 0 : i32
    return %c0_i32, %c0_i32_0 : i32, i32
  }
  func.func @transform_6(%arg0: i32) -> (i32, i32) {
    %c0_i32 = arith.constant 0 : i32
    %c0_i32_0 = arith.constant 0 : i32
    %c0_i32_1 = arith.constant 0 : i32
    return %c0_i32, %c0_i32_0 : i32, i32
  }
  func.func @transform_7(%arg0: i32) -> (i32, i32) {
    %c0_i32 = arith.constant 0 : i32
    %c0_i32_0 = arith.constant 0 : i32
    %c0_i32_1 = arith.constant 0 : i32
    return %c0_i32, %c0_i32_0 : i32, i32
  }
  func.func @transform_8(%arg0: i32) -> (i32, i32) {
    %c0_i32 = arith.constant 0 : i32
    %c0_i32_0 = arith.constant 0 : i32
    %c0_i32_1 = arith.constant 0 : i32
    return %c0_i32, %c0_i32_0 : i32, i32
  }
  func.func @transform_9(%arg0: i32) -> (i32, i32, i32) {
    %c0_i32 = arith.constant 0 : i32
    %c0_i32_0 = arith.constant 0 : i32
    %c0_i32_1 = arith.constant 0 : i32
    %c0_i32_2 = arith.constant 0 : i32
    return %c0_i32, %c0_i32_0, %c0_i32_1 : i32, i32, i32
  }
  func.func @transform_10(%arg0: i32) -> (i32, i32, i32) {
    %c0_i32 = arith.constant 0 : i32
    %c0_i32_0 = arith.constant 0 : i32
    %c0_i32_1 = arith.constant 0 : i32
    %c0_i32_2 = arith.constant 0 : i32
    return %c0_i32, %c0_i32_0, %c0_i32_1 : i32, i32, i32
  }
  func.func @transform_11(%arg0: i32) -> (i32, i32, i32) {
    %c0_i32 = arith.constant 0 : i32
    %c0_i32_0 = arith.constant 0 : i32
    %c0_i32_1 = arith.constant 0 : i32
    %c0_i32_2 = arith.constant 0 : i32
    return %c0_i32, %c0_i32_0, %c0_i32_1 : i32, i32, i32
  }
  func.func @transform_12(%arg0: i32) -> (i32, i32, i32) {
    %c0_i32 = arith.constant 0 : i32
    %c0_i32_0 = arith.constant 0 : i32
    %c0_i32_1 = arith.constant 0 : i32
    %c0_i32_2 = arith.constant 0 : i32
    return %c0_i32, %c0_i32_0, %c0_i32_1 : i32, i32, i32
  }
  func.func @transform_13(%arg0: i32) -> (i32, i32, i32) {
    %c0_i32 = arith.constant 0 : i32
    %c0_i32_0 = arith.constant 0 : i32
    %c0_i32_1 = arith.constant 0 : i32
    %c0_i32_2 = arith.constant 0 : i32
    return %c0_i32, %c0_i32_0, %c0_i32_1 : i32, i32, i32
  }
  func.func @transform_14(%arg0: i32) -> (i32, i32, i32) {
    %c0_i32 = arith.constant 0 : i32
    %c0_i32_0 = arith.constant 0 : i32
    %c0_i32_1 = arith.constant 0 : i32
    %c0_i32_2 = arith.constant 0 : i32
    return %c0_i32, %c0_i32_0, %c0_i32_1 : i32, i32, i32
  }
  func.func @transform_15(%arg0: i32) -> (i32, i32, i32) {
    %c0_i32 = arith.constant 0 : i32
    %c0_i32_0 = arith.constant 0 : i32
    %c0_i32_1 = arith.constant 0 : i32
    %c0_i32_2 = arith.constant 0 : i32
    return %c0_i32, %c0_i32_0, %c0_i32_1 : i32, i32, i32
  }
  func.func @transform_16(%arg0: i32) -> (i32, i32, i32) {
    %c0_i32 = arith.constant 0 : i32
    %c0_i32_0 = arith.constant 0 : i32
    %c0_i32_1 = arith.constant 0 : i32
    %c0_i32_2 = arith.constant 0 : i32
    return %c0_i32, %c0_i32_0, %c0_i32_1 : i32, i32, i32
  }
  func.func @transform_17(%arg0: i32) -> (i32, i32, i32) {
    %c0_i32 = arith.constant 0 : i32
    %c0_i32_0 = arith.constant 0 : i32
    %c0_i32_1 = arith.constant 0 : i32
    %c0_i32_2 = arith.constant 0 : i32
    return %c0_i32, %c0_i32_0, %c0_i32_1 : i32, i32, i32
  }
  func.func @transform_18(%arg0: i32) -> (i32, i32, i32) {
    %c0_i32 = arith.constant 0 : i32
    %c0_i32_0 = arith.constant 0 : i32
    %c0_i32_1 = arith.constant 0 : i32
    %c0_i32_2 = arith.constant 0 : i32
    return %c0_i32, %c0_i32_0, %c0_i32_1 : i32, i32, i32
  }
  func.func @transform_19(%arg0: i32) -> (i32, i32, i32) {
    %c0_i32 = arith.constant 0 : i32
    %c0_i32_0 = arith.constant 0 : i32
    %c0_i32_1 = arith.constant 0 : i32
    %c0_i32_2 = arith.constant 0 : i32
    return %c0_i32, %c0_i32_0, %c0_i32_1 : i32, i32, i32
  }
  func.func @transform_20(%arg0: i32) -> (i32, i32) {
    %c0_i32 = arith.constant 0 : i32
    %c0_i32_0 = arith.constant 0 : i32
    %c0_i32_1 = arith.constant 0 : i32
    return %c0_i32, %c0_i32_0 : i32, i32
  }
  func.func @transform_21(%arg0: i32) -> (i32, i32) {
    %c0_i32 = arith.constant 0 : i32
    %c0_i32_0 = arith.constant 0 : i32
    %c0_i32_1 = arith.constant 0 : i32
    return %c0_i32, %c0_i32_0 : i32, i32
  }
  func.func @transform_22(%arg0: i32) -> (i32, i32) {
    %c0_i32 = arith.constant 0 : i32
    %c0_i32_0 = arith.constant 0 : i32
    return %arg0, %c0_i32 : i32, i32
  }
}

</mosaic_0001>

<llo_original>
// kernel: vit_forward.1
$region0: #{vit_forward.1}
  #allocation0 [shape = 'u32[]', space=smem, size = 0x4, offset = 0x4, fixed_abs, tag = 'smem constant byte address 0x4 - core index']
  #allocation1 [shape = 'u32[72,128]{1,0:T(1,128)}', space=vmem, size = 0x9000, scoped, tag = 'internal scratch']
  %s0 = inlined_call_operand.vmem [shape: bf16[2,16,64], index: 0, kind: input, shape index: {}]
  %s1 = inlined_call_operand.vmem [shape: f32[1,64], index: 1, kind: input, shape index: {}]
  %s2 = inlined_call_operand.vmem [shape: f32[1,64], index: 2, kind: input, shape index: {}]
  %s3 = inlined_call_operand.vmem [shape: bf16[64,32], index: 3, kind: input, shape index: {}]
  %s4 = inlined_call_operand.vmem [shape: f32[1,32], index: 4, kind: input, shape index: {}]
  %s5 = inlined_call_operand.vmem [shape: f32[1,32], index: 5, kind: input, shape index: {}]
  %s6 = inlined_call_operand.vmem [shape: f32[1,32], index: 6, kind: input, shape index: {}]
  %s7 = inlined_call_operand.vmem [shape: f32[1,32], index: 7, kind: input, shape index: {}]
  %s8 = inlined_call_operand.vmem [shape: f32[16,32], index: 8, kind: input, shape index: {}]
  %s9 = inlined_call_operand.vmem [shape: f32[2,1,32], index: 9, kind: input, shape index: {}]
  %s10 = inlined_call_operand.vmem [shape: f32[2,1,32], index: 10, kind: input, shape index: {}]
  %s11 = inlined_call_operand.vmem [shape: bf16[2,32,96], index: 11, kind: input, shape index: {}]
  %s12 = inlined_call_operand.vmem [shape: bf16[2,32,32], index: 12, kind: input, shape index: {}]
  %s13 = inlined_call_operand.vmem [shape: f32[2,1,32], index: 13, kind: input, shape index: {}]
  %s14 = inlined_call_operand.vmem [shape: f32[2,1,32], index: 14, kind: input, shape index: {}]
  %s15 = inlined_call_operand.vmem [shape: f32[2,1,32], index: 15, kind: input, shape index: {}]
  %s16 = inlined_call_operand.vmem [shape: bf16[2,32,64], index: 16, kind: input, shape index: {}]
  %s17 = inlined_call_operand.vmem [shape: f32[2,1,64], index: 17, kind: input, shape index: {}]
  %s18 = inlined_call_operand.vmem [shape: bf16[2,64,32], index: 18, kind: input, shape index: {}]
  %s19 = inlined_call_operand.vmem [shape: f32[2,1,32], index: 19, kind: input, shape index: {}]
  %s20 = inlined_call_operand.vmem [shape: f32[1,32], index: 20, kind: input, shape index: {}]
  %s21 = inlined_call_operand.vmem [shape: f32[1,32], index: 21, kind: input, shape index: {}]
  %s22 = inlined_call_operand.hbm [shape: f32[2,32], index: 22, kind: output, shape index: {}]
  %s23 = sld [smem:[#allocation0]]
  $region98: #{vit_forward.1} parent=0
    _
  %s25 = ssub.s32 1, %s23
  %s26 = scalar_select 0, %s25, %s23
  $region1: #{vit_forward.1} parent=0
    #allocation2 [shape = 'u8[1024]{0}', space=vmem, size = 0x400, scoped, tag = 'output window, operand 0, single buffered']
    #allocation3 [shape = 's32[1]{0}', space=sflag, size = 0x4, scoped, tag = 'scoped memory for vit_forward.1']
    %27 = vsyncpa [#allocation3], 0
    // Predicated region
    $region2: #{vit_forward.1} parent=1 // pred_check
      _
    $region3: #{vit_forward.1} parent=1 // pred_check_branch
      %29 = sbr.rel (0) target = $region5
    $region4: #{vit_forward.1} parent=1 // pred_region
      _
    $region5: #{vit_forward.1} parent=1 // pred_fallthru
      _
    // Predicated region
    $region6: #{vit_forward.1} parent=1 // pred_check
      _
    $region7: #{vit_forward.1} parent=1 // pred_check_branch
      %31 = sbr.rel (0) target = $region9
    $region8: #{vit_forward.1} parent=1 // pred_region
      _
    $region9: #{vit_forward.1} parent=1 // pred_fallthru
      _
    // Predicated region
    $region10: #{vit_forward.1} parent=1 // pred_check
      _
    $region11: #{vit_forward.1} parent=1 // pred_check_branch
      %33 = sbr.rel (0) target = $region13
    $region12: #{vit_forward.1} parent=1 // pred_region
      _
    $region13: #{vit_forward.1} parent=1 // pred_fallthru
      _
    // Predicated region
    $region14: #{vit_forward.1} parent=1 // pred_check
      _
    $region15: #{vit_forward.1} parent=1 // pred_check_branch
      %35 = sbr.rel (0) target = $region17
    $region16: #{vit_forward.1} parent=1 // pred_region
      _
    $region17: #{vit_forward.1} parent=1 // pred_fallthru
      _
    // Predicated region
    $region18: #{vit_forward.1} parent=1 // pred_check
      _
    $region19: #{vit_forward.1} parent=1 // pred_check_branch
      %37 = sbr.rel (0) target = $region21
    $region20: #{vit_forward.1} parent=1 // pred_region
      _
    $region21: #{vit_forward.1} parent=1 // pred_fallthru
      _
    // Predicated region
    $region22: #{vit_forward.1} parent=1 // pred_check
      _
    $region23: #{vit_forward.1} parent=1 // pred_check_branch
      %39 = sbr.rel (0) target = $region25
    $region24: #{vit_forward.1} parent=1 // pred_region
      _
    $region25: #{vit_forward.1} parent=1 // pred_fallthru
      _
    // Predicated region
    $region26: #{vit_forward.1} parent=1 // pred_check
      _
    $region27: #{vit_forward.1} parent=1 // pred_check_branch
      %41 = sbr.rel (0) target = $region29
    $region28: #{vit_forward.1} parent=1 // pred_region
      _
    $region29: #{vit_forward.1} parent=1 // pred_fallthru
      _
    // Predicated region
    $region30: #{vit_forward.1} parent=1 // pred_check
      _
    $region31: #{vit_forward.1} parent=1 // pred_check_branch
      %43 = sbr.rel (0) target = $region33
    $region32: #{vit_forward.1} parent=1 // pred_region
      _
    $region33: #{vit_forward.1} parent=1 // pred_fallthru
      _
    // Predicated region
    $region34: #{vit_forward.1} parent=1 // pred_check
      _
    $region35: #{vit_forward.1} parent=1 // pred_check_branch
      %45 = sbr.rel (0) target = $region37
    $region36: #{vit_forward.1} parent=1 // pred_region
      _
    $region37: #{vit_forward.1} parent=1 // pred_fallthru
      _
    // Predicated region
    $region38: #{vit_forward.1} parent=1 // pred_check
      _
    $region39: #{vit_forward.1} parent=1 // pred_check_branch
      %47 = sbr.rel (0) target = $region41
    $region40: #{vit_forward.1} parent=1 // pred_region
      _
    $region41: #{vit_forward.1} parent=1 // pred_fallthru
      _
    // Predicated region
    $region42: #{vit_forward.1} parent=1 // pred_check
      _
    $region43: #{vit_forward.1} parent=1 // pred_check_branch
      %49 = sbr.rel (0) target = $region45
    $region44: #{vit_forward.1} parent=1 // pred_region
      _
    $region45: #{vit_forward.1} parent=1 // pred_fallthru
      _
    // Predicated region
    $region46: #{vit_forward.1} parent=1 // pred_check
      _
    $region47: #{vit_forward.1} parent=1 // pred_check_branch
      %51 = sbr.rel (0) target = $region49
    $region48: #{vit_forward.1} parent=1 // pred_region
      _
    $region49: #{vit_forward.1} parent=1 // pred_fallthru
      _
    // Predicated region
    $region50: #{vit_forward.1} parent=1 // pred_check
      _
    $region51: #{vit_forward.1} parent=1 // pred_check_branch
      %53 = sbr.rel (0) target = $region53
    $region52: #{vit_forward.1} parent=1 // pred_region
      _
    $region53: #{vit_forward.1} parent=1 // pred_fallthru
      _
    // Predicated region
    $region54: #{vit_forward.1} parent=1 // pred_check
      _
    $region55: #{vit_forward.1} parent=1 // pred_check_branch
      %55 = sbr.rel (0) target = $region57
    $region56: #{vit_forward.1} parent=1 // pred_region
      _
    $region57: #{vit_forward.1} parent=1 // pred_fallthru
      _
    // Predicated region
    $region58: #{vit_forward.1} parent=1 // pred_check
      _
    $region59: #{vit_forward.1} parent=1 // pred_check_branch
      %57 = sbr.rel (0) target = $region61
    $region60: #{vit_forward.1} parent=1 // pred_region
      _
    $region61: #{vit_forward.1} parent=1 // pred_fallthru
      _
    // Predicated region
    $region62: #{vit_forward.1} parent=1 // pred_check
      _
    $region63: #{vit_forward.1} parent=1 // pred_check_branch
      %59 = sbr.rel (0) target = $region65
    $region64: #{vit_forward.1} parent=1 // pred_region
      _
    $region65: #{vit_forward.1} parent=1 // pred_fallthru
      _
    // Predicated region
    $region66: #{vit_forward.1} parent=1 // pred_check
      _
    $region67: #{vit_forward.1} parent=1 // pred_check_branch
      %61 = sbr.rel (0) target = $region69
    $region68: #{vit_forward.1} parent=1 // pred_region
      _
    $region69: #{vit_forward.1} parent=1 // pred_fallthru
      _
    // Predicated region
    $region70: #{vit_forward.1} parent=1 // pred_check
      _
    $region71: #{vit_forward.1} parent=1 // pred_check_branch
      %63 = sbr.rel (0) target = $region73
    $region72: #{vit_forward.1} parent=1 // pred_region
      _
    $region73: #{vit_forward.1} parent=1 // pred_fallthru
      _
    // Predicated region
    $region74: #{vit_forward.1} parent=1 // pred_check
      _
    $region75: #{vit_forward.1} parent=1 // pred_check_branch
      %65 = sbr.rel (0) target = $region77
    $region76: #{vit_forward.1} parent=1 // pred_region
      _
    $region77: #{vit_forward.1} parent=1 // pred_fallthru
      _
    // Predicated region
    $region78: #{vit_forward.1} parent=1 // pred_check
      _
    $region79: #{vit_forward.1} parent=1 // pred_check_branch
      %67 = sbr.rel (0) target = $region81
    $region80: #{vit_forward.1} parent=1 // pred_region
      _
    $region81: #{vit_forward.1} parent=1 // pred_fallthru
      _
    // Predicated region
    $region82: #{vit_forward.1} parent=1 // pred_check
      _
    $region83: #{vit_forward.1} parent=1 // pred_check_branch
      %69 = sbr.rel (0) target = $region85
    $region84: #{vit_forward.1} parent=1 // pred_region
      _
    $region85: #{vit_forward.1} parent=1 // pred_fallthru
      _
    // Predicated region
    $region86: #{vit_forward.1} parent=1 // pred_check
      _
    $region87: #{vit_forward.1} parent=1 // pred_check_branch
      %71 = sbr.rel (0) target = $region89
    $region88: #{vit_forward.1} parent=1 // pred_region
      _
    $region89: #{vit_forward.1} parent=1 // pred_fallthru
      _
    %v73 = vld [vmem:[%s0] sm:$0xf]
    %v74 = vld [vmem:[%s0 + $0x4] sm:$0xf]
    %v75 = vld [vmem:[%s0 + $0x8] sm:$0xf]
    %v76 = vld [vmem:[%s0 + $0xc] sm:$0xf]
    %v77 = vunpack.c.l.bf16 %v73
    %v78 = vunpack.c.l.bf16 %v74
    %v79 = vunpack.c.l.bf16 %v75
    %v80 = vunpack.c.l.bf16 %v76
    %v81 = vld [vmem:[%s1] sm:$0x1]
    %v82 = vld [vmem:[%s2] sm:$0x1]
    %vm83 = vcmask 523264
    %v84 = vsel %vm83, %v77, 0.0
    %85 = vadd.xlane.f32.xlu0 %v84
    %v86 = vpop.xlane.xlu0 %85
    %v87 = vsel %vm83, %v78, 0.0
    %88 = vadd.xlane.f32.xlu0 %v87
    %v89 = vpop.xlane.xlu0 %88
    %v90 = vsel %vm83, %v79, 0.0
    %91 = vadd.xlane.f32.xlu0 %v90
    %v92 = vpop.xlane.xlu0 %91
    %v93 = vsel %vm83, %v80, 0.0
    %94 = vadd.xlane.f32.xlu0 %v93
    %v95 = vpop.xlane.xlu0 %94
    %v96 = vrcp.pop 64.0
    %v97 = vmul.f32 64.0, %v96
    %v98 = vsub.f32 1.0, %v97
    %v99 = vmul.f32 %v96, %v98
    %v100 = vadd.f32 %v96, %v99
    %vm101 = vweird.f32 %v96
    %v102 = vsel %vm101, %v96, %v100
    %v103 = vmul.f32 %v86, %v102
    %v104 = vmul.f32 %v89, %v102
    %v105 = vmul.f32 %v92, %v102
    %v106 = vmul.f32 %v95, %v102
    %v107 = vsub.f32 %v77, %v103
    %v108 = vsub.f32 %v78, %v104
    %v109 = vsub.f32 %v79, %v105
    %v110 = vsub.f32 %v80, %v106
    %v111 = vmul.f32 %v107, %v107
    %v112 = vmul.f32 %v108, %v108
    %v113 = vmul.f32 %v109, %v109
    %v114 = vmul.f32 %v110, %v110
    %v115 = vsel %vm83, %v111, 0.0
    %116 = vadd.xlane.f32.xlu0 %v115
    %v117 = vpop.xlane.xlu0 %116
    %v118 = vsel %vm83, %v112, 0.0
    %119 = vadd.xlane.f32.xlu0 %v118
    %v120 = vpop.xlane.xlu0 %119
    %v121 = vsel %vm83, %v113, 0.0
    %122 = vadd.xlane.f32.xlu0 %v121
    %v123 = vpop.xlane.xlu0 %122
    %v124 = vsel %vm83, %v114, 0.0
    %125 = vadd.xlane.f32.xlu0 %v124
    %v126 = vpop.xlane.xlu0 %125
    %v127 = vmul.f32 %v117, %v102
    %v128 = vmul.f32 %v120, %v102
    %v129 = vmul.f32 %v123, %v102
    %v130 = vmul.f32 %v126, %v102
    %v131 = vadd.f32 %v127, 1e-05
    %v132 = vadd.f32 %v128, 1e-05
    %v133 = vadd.f32 %v129, 1e-05
    %v134 = vadd.f32 %v130, 1e-05
    %v135 = vrsqrt.pop %v131
    %v136 = vmul.f32 %v135, %v131
    %v137 = vmul.f32 %v136, %v135
    %v138 = vmul.f32 0.5, %v137
    %v139 = vsub.f32 1.5, %v138
    %v140 = vmul.f32 %v135, %v139
    %vm141 = vweird.f32 %v131
    %vm142 = vweird.f32 %v135
    %vm143 = vmor %vm141, %vm142
    %v144 = vsel %vm143, %v135, %v140
    %v145 = vrsqrt.pop %v132
    %v146 = vmul.f32 %v145, %v132
    %v147 = vmul.f32 %v146, %v145
    %v148 = vmul.f32 0.5, %v147
    %v149 = vsub.f32 1.5, %v148
    %v150 = vmul.f32 %v145, %v149
    %vm151 = vweird.f32 %v132
    %vm152 = vweird.f32 %v145
    %vm153 = vmor %vm151, %vm152
    %v154 = vsel %vm153, %v145, %v150
    %v155 = vrsqrt.pop %v133
    %v156 = vmul.f32 %v155, %v133
    %v157 = vmul.f32 %v156, %v155
    %v158 = vmul.f32 0.5, %v157
    %v159 = vsub.f32 1.5, %v158
    %v160 = vmul.f32 %v155, %v159
    %vm161 = vweird.f32 %v133
    %vm162 = vweird.f32 %v155
    %vm163 = vmor %vm161, %vm162
    %v164 = vsel %vm163, %v155, %v160
    %v165 = vrsqrt.pop %v134
    %v166 = vmul.f32 %v165, %v134
    %v167 = vmul.f32 %v166, %v165
    %v168 = vmul.f32 0.5, %v167
    %v169 = vsub.f32 1.5, %v168
    %v170 = vmul.f32 %v165, %v169
    %vm171 = vweird.f32 %v134
    %vm172 = vweird.f32 %v165
    %vm173 = vmor %vm171, %vm172
    %v174 = vsel %vm173, %v165, %v170
    %v175 = vmul.f32 %v107, %v144
    %v176 = vmul.f32 %v108, %v154
    %v177 = vmul.f32 %v109, %v164
    %v178 = vmul.f32 %v110, %v174
    %v180 = vperm.slane %v81, 0
    %v182 = vmul.f32 %v175, %v180
    %v183 = vmul.f32 %v176, %v180
    %v184 = vmul.f32 %v177, %v180
    %v185 = vmul.f32 %v178, %v180
    %v187 = vperm.slane %v82, 0
    %v189 = vadd.f32 %v182, %v187
    %v190 = vadd.f32 %v183, %v187
    %v191 = vadd.f32 %v184, %v187
    %v192 = vadd.f32 %v185, %v187
    %v193 = vpack.c.bf16 %v190, %v189
    %v194 = vpack.c.bf16 %v192, %v191
    %v195 = vld [vmem:[%s3] sm:$0xf]
    %v196 = vld [vmem:[%s3 + $0x4] sm:$0xf]
    %v197 = vld [vmem:[%s3 + $0x8] sm:$0xf]
    %v198 = vld [vmem:[%s3 + $0xc] sm:$0xf]
    %v199 = vld [vmem:[%s3 + $0x10] sm:$0xf]
    %v200 = vld [vmem:[%s3 + $0x14] sm:$0xf]
    %v201 = vld [vmem:[%s3 + $0x18] sm:$0xf]
    %v202 = vld [vmem:[%s3 + $0x1c] sm:$0xf]
    %v203 = vld [vmem:[%s4] sm:$0x1]
    %v205 = vperm.slane %v203, 0
    %v215 = vunpack.c.l.b16 %v195
    %v216 = vunpack.c.l.b16 %v196
    %v217 = vunpack.c.l.b16 %v197
    %v218 = vunpack.c.l.b16 %v198
    %v219 = vunpack.c.l.b16 %v199
    %v220 = vunpack.c.l.b16 %v200
    %v221 = vunpack.c.l.b16 %v201
    %v222 = vunpack.c.l.b16 %v202
    %v223 = vpack.c.b16 %v216, %v215
    %v224 = vpack.c.b16 %v218, %v217
    %v225 = vpack.c.b16 %v220, %v219
    %v226 = vpack.c.b16 %v222, %v221
    %v232 = vsel %vm83, %v193, 0
    %v235 = vsel %vm83, %v194, 0
    %237 = vmatpush.bf16.msra.mxu0 0
    %238 = vmatpush.bf16.msra.mxu0 0
    %239 = vmatpush.bf16.msra.mxu0 0
    %240 = vmatpush.bf16.msra.mxu0 0
    %241 = vmatpush.bf16.msra.mxu0 %v226
    %242 = vmatpush.bf16.msra.mxu0 %v225
    %243 = vmatpush.bf16.msra.mxu0 %v224
    %244 = vmatpush.bf16.msra.mxu0 %v223
    %245 = vmatmul.bf16.gmra.mxu0 %v232
    %v246 = vpop.f32.mrf.mxu0
    %v247 = vadd.f32 %v205, %v246
    %v248 = vpop.f32.mrf.mxu0
    %v249 = vadd.f32 %v205, %v248
    %250 = vmatmul.bf16.gmra.mxu0 %v235
    %v251 = vpop.f32.mrf.mxu0
    %v252 = vadd.f32 %v205, %v251
    %v253 = vpop.f32.mrf.mxu0
    %v254 = vadd.f32 %v205, %v253
    %255 = vdwg.mxu0
    %v256 = vld [vmem:[%s5] sm:$0x1]
    %v257 = vld [vmem:[%s6] sm:$0x1]
    %vm258 = vcmask 261120
    %v259 = vsel %vm258, %v247, 0.0
    %260 = vadd.xlane.f32.xlu0 %v259
    %v261 = vpop.xlane.xlu0 %260
    %v262 = vsel %vm258, %v249, 0.0
    %263 = vadd.xlane.f32.xlu0 %v262
    %v264 = vpop.xlane.xlu0 %263
    %v265 = vsel %vm258, %v252, 0.0
    %266 = vadd.xlane.f32.xlu0 %v265
    %v267 = vpop.xlane.xlu0 %266
    %v268 = vsel %vm258, %v254, 0.0
    %269 = vadd.xlane.f32.xlu0 %v268
    %v270 = vpop.xlane.xlu0 %269
    %v271 = vrcp.pop 32.0
    %v272 = vmul.f32 32.0, %v271
    %v273 = vsub.f32 1.0, %v272
    %v274 = vmul.f32 %v271, %v273
    %v275 = vadd.f32 %v271, %v274
    %vm276 = vweird.f32 %v271
    %v277 = vsel %vm276, %v271, %v275
    %v278 = vmul.f32 %v261, %v277
    %v279 = vmul.f32 %v264, %v277
    %v280 = vmul.f32 %v267, %v277
    %v281 = vmul.f32 %v270, %v277
    %v282 = vsub.f32 %v247, %v278
    %v283 = vsub.f32 %v249, %v279
    %v284 = vsub.f32 %v252, %v280
    %v285 = vsub.f32 %v254, %v281
    %v286 = vmul.f32 %v282, %v282
    %v287 = vmul.f32 %v283, %v283
    %v288 = vmul.f32 %v284, %v284
    %v289 = vmul.f32 %v285, %v285
    %v290 = vsel %vm258, %v286, 0.0
    %291 = vadd.xlane.f32.xlu0 %v290
    %v292 = vpop.xlane.xlu0 %291
    %v293 = vsel %vm258, %v287, 0.0
    %294 = vadd.xlane.f32.xlu0 %v293
    %v295 = vpop.xlane.xlu0 %294
    %v296 = vsel %vm258, %v288, 0.0
    %297 = vadd.xlane.f32.xlu0 %v296
    %v298 = vpop.xlane.xlu0 %297
    %v299 = vsel %vm258, %v289, 0.0
    %300 = vadd.xlane.f32.xlu0 %v299
    %v301 = vpop.xlane.xlu0 %300
    %v302 = vmul.f32 %v292, %v277
    %v303 = vmul.f32 %v295, %v277
    %v304 = vmul.f32 %v298, %v277
    %v305 = vmul.f32 %v301, %v277
    %v306 = vadd.f32 %v302, 1e-05
    %v307 = vadd.f32 %v303, 1e-05
    %v308 = vadd.f32 %v304, 1e-05
    %v309 = vadd.f32 %v305, 1e-05
    %v310 = vrsqrt.pop %v306
    %v311 = vmul.f32 %v310, %v306
    %v312 = vmul.f32 %v311, %v310
    %v313 = vmul.f32 0.5, %v312
    %v314 = vsub.f32 1.5, %v313
    %v315 = vmul.f32 %v310, %v314
    %vm316 = vweird.f32 %v306
    %vm317 = vweird.f32 %v310
    %vm318 = vmor %vm316, %vm317
    %v319 = vsel %vm318, %v310, %v315
    %v320 = vrsqrt.pop %v307
    %v321 = vmul.f32 %v320, %v307
    %v322 = vmul.f32 %v321, %v320
    %v323 = vmul.f32 0.5, %v322
    %v324 = vsub.f32 1.5, %v323
    %v325 = vmul.f32 %v320, %v324
    %vm326 = vweird.f32 %v307
    %vm327 = vweird.f32 %v320
    %vm328 = vmor %vm326, %vm327
    %v329 = vsel %vm328, %v320, %v325
    %v330 = vrsqrt.pop %v308
    %v331 = vmul.f32 %v330, %v308
    %v332 = vmul.f32 %v331, %v330
    %v333 = vmul.f32 0.5, %v332
    %v334 = vsub.f32 1.5, %v333
    %v335 = vmul.f32 %v330, %v334
    %vm336 = vweird.f32 %v308
    %vm337 = vweird.f32 %v330
    %vm338 = vmor %vm336, %vm337
    %v339 = vsel %vm338, %v330, %v335
    %v340 = vrsqrt.pop %v309
    %v341 = vmul.f32 %v340, %v309
    %v342 = vmul.f32 %v341, %v340
    %v343 = vmul.f32 0.5, %v342
    %v344 = vsub.f32 1.5, %v343
    %v345 = vmul.f32 %v340, %v344
    %vm346 = vweird.f32 %v309
    %vm347 = vweird.f32 %v340
    %vm348 = vmor %vm346, %vm347
    %v349 = vsel %vm348, %v340, %v345
    %v350 = vmul.f32 %v282, %v319
    %v351 = vmul.f32 %v283, %v329
    %v352 = vmul.f32 %v284, %v339
    %v353 = vmul.f32 %v285, %v349
    %v355 = vperm.slane %v256, 0
    %v357 = vmul.f32 %v350, %v355
    %v358 = vmul.f32 %v351, %v355
    %v359 = vmul.f32 %v352, %v355
    %v360 = vmul.f32 %v353, %v355
    %v362 = vperm.slane %v257, 0
    %v364 = vadd.f32 %v357, %v362
    %v365 = vadd.f32 %v358, %v362
    %v366 = vadd.f32 %v359, %v362
    %v367 = vadd.f32 %v360, %v362
    %v368 = vld [vmem:[%s8] sm:$0xff]
    %v369 = vld [vmem:[%s8 + $0x8] sm:$0xff]
    %v370 = vadd.f32 %v364, %v368
    %v371 = vadd.f32 %v365, %v369
    %v372 = vadd.f32 %v366, %v368
    %v373 = vadd.f32 %v367, %v369
    %v374 = vld [vmem:[%s7] sm:$0x1]
    %vm375 = vcmask 1040384
    %v376 = vsel %vm375, %v374, 0.0
    %v377 = vlaneseq
    %v378 = vand.u32 %v377, 127
    %vm379 = vcmp.ge.s32.totalorder %v378, 1
    %vm380 = vcmp.lt.s32.totalorder %v378, 8
    %vm381 = vmand %vm379, %vm380
    %v382 = vld [vmem:[%s9] sm:$0x1]
    %v383 = vld [vmem:[%s10] sm:$0x1]
    %v384 = vsel %vm258, %v376, 0.0
    %385 = vadd.xlane.f32.xlu0 %v384
    %v386 = vpop.xlane.xlu0 %385
    %v387 = vsel %vm258, %v370, 0.0
    %388 = vadd.xlane.f32.xlu0 %v387
    %v389 = vpop.xlane.xlu0 %388
    %v390 = vsel %vm258, %v371, 0.0
    %391 = vadd.xlane.f32.xlu0 %v390
    %v392 = vpop.xlane.xlu0 %391
    %v393 = vsel %vm258, %v372, 0.0
    %394 = vadd.xlane.f32.xlu0 %v393
    %v395 = vpop.xlane.xlu0 %394
    %v396 = vsel %vm258, %v373, 0.0
    %397 = vadd.xlane.f32.xlu0 %v396
    %v398 = vpop.xlane.xlu0 %397
    %v399 = vmul.f32 %v386, %v277
    %v400 = vmul.f32 %v389, %v277
    %v401 = vmul.f32 %v392, %v277
    %v402 = vmul.f32 %v395, %v277
    %v403 = vmul.f32 %v398, %v277
    %v404 = vsub.f32 %v376, %v399
    %v405 = vsub.f32 %v370, %v400
    %v406 = vsub.f32 %v371, %v401
    %v407 = vsub.f32 %v372, %v402
    %v408 = vsub.f32 %v373, %v403
    %v409 = vmul.f32 %v404, %v404
    %v410 = vmul.f32 %v405, %v405
    %v411 = vmul.f32 %v406, %v406
    %v412 = vmul.f32 %v407, %v407
    %v413 = vmul.f32 %v408, %v408
    %v414 = vsel %vm258, %v409, 0.0
    %415 = vadd.xlane.f32.xlu0 %v414
    %v416 = vpop.xlane.xlu0 %415
    %v417 = vsel %vm258, %v410, 0.0
    %418 = vadd.xlane.f32.xlu0 %v417
    %v419 = vpop.xlane.xlu0 %418
    %v420 = vsel %vm258, %v411, 0.0
    %421 = vadd.xlane.f32.xlu0 %v420
    %v422 = vpop.xlane.xlu0 %421
    %v423 = vsel %vm258, %v412, 0.0
    %424 = vadd.xlane.f32.xlu0 %v423
    %v425 = vpop.xlane.xlu0 %424
    %v426 = vsel %vm258, %v413, 0.0
    %427 = vadd.xlane.f32.xlu0 %v426
    %v428 = vpop.xlane.xlu0 %427
    %v429 = vmul.f32 %v416, %v277
    %v430 = vmul.f32 %v419, %v277
    %v431 = vmul.f32 %v422, %v277
    %v432 = vmul.f32 %v425, %v277
    %v433 = vmul.f32 %v428, %v277
    %v434 = vadd.f32 %v429, 1e-05
    %v435 = vadd.f32 %v430, 1e-05
    %v436 = vadd.f32 %v431, 1e-05
    %v437 = vadd.f32 %v432, 1e-05
    %v438 = vadd.f32 %v433, 1e-05
    %v439 = vrsqrt.pop %v434
    %v440 = vmul.f32 %v439, %v434
    %v441 = vmul.f32 %v440, %v439
    %v442 = vmul.f32 0.5, %v441
    %v443 = vsub.f32 1.5, %v442
    %v444 = vmul.f32 %v439, %v443
    %vm445 = vweird.f32 %v434
    %vm446 = vweird.f32 %v439
    %vm447 = vmor %vm445, %vm446
    %v448 = vsel %vm447, %v439, %v444
    %v449 = vrsqrt.pop %v435
    %v450 = vmul.f32 %v449, %v435
    %v451 = vmul.f32 %v450, %v449
    %v452 = vmul.f32 0.5, %v451
    %v453 = vsub.f32 1.5, %v452
    %v454 = vmul.f32 %v449, %v453
    %vm455 = vweird.f32 %v435
    %vm456 = vweird.f32 %v449
    %vm457 = vmor %vm455, %vm456
    %v458 = vsel %vm457, %v449, %v454
    %v459 = vrsqrt.pop %v436
    %v460 = vmul.f32 %v459, %v436
    %v461 = vmul.f32 %v460, %v459
    %v462 = vmul.f32 0.5, %v461
    %v463 = vsub.f32 1.5, %v462
    %v464 = vmul.f32 %v459, %v463
    %vm465 = vweird.f32 %v436
    %vm466 = vweird.f32 %v459
    %vm467 = vmor %vm465, %vm466
    %v468 = vsel %vm467, %v459, %v464
    %v469 = vrsqrt.pop %v437
    %v470 = vmul.f32 %v469, %v437
    %v471 = vmul.f32 %v470, %v469
    %v472 = vmul.f32 0.5, %v471
    %v473 = vsub.f32 1.5, %v472
    %v474 = vmul.f32 %v469, %v473
    %vm475 = vweird.f32 %v437
    %vm476 = vweird.f32 %v469
    %vm477 = vmor %vm475, %vm476
    %v478 = vsel %vm477, %v469, %v474
    %v479 = vrsqrt.pop %v438
    %v480 = vmul.f32 %v479, %v438
    %v481 = vmul.f32 %v480, %v479
    %v482 = vmul.f32 0.5, %v481
    %v483 = vsub.f32 1.5, %v482
    %v484 = vmul.f32 %v479, %v483
    %vm485 = vweird.f32 %v438
    %vm486 = vweird.f32 %v479
    %vm487 = vmor %vm485, %vm486
    %v488 = vsel %vm487, %v479, %v484
    %v489 = vmul.f32 %v404, %v448
    %v490 = vmul.f32 %v405, %v458
    %v491 = vmul.f32 %v406, %v468
    %v492 = vmul.f32 %v407, %v478
    %v493 = vmul.f32 %v408, %v488
    %v495 = vperm.slane %v382, 0
    %v497 = vmul.f32 %v489, %v495
    %v498 = vmul.f32 %v490, %v495
    %v499 = vmul.f32 %v491, %v495
    %v500 = vmul.f32 %v492, %v495
    %v501 = vmul.f32 %v493, %v495
    %v503 = vperm.slane %v383, 0
    %v505 = vadd.f32 %v497, %v503
    %v506 = vadd.f32 %v498, %v503
    %v507 = vadd.f32 %v499, %v503
    %v508 = vadd.f32 %v500, %v503
    %v509 = vadd.f32 %v501, %v503
    %v510 = vpack.c.bf16 %v506, %v505
    %v511 = vpack.c.bf16 %v505, %v507
    %v512 = vpack.c.bf16 %v509, %v508
    %v513 = vld [vmem:[%s11] sm:$0xf]
    %v514 = vld [vmem:[%s11 + $0x4] sm:$0xf]
    %v515 = vld [vmem:[%s11 + $0x8] sm:$0xf]
    %v516 = vld [vmem:[%s11 + $0xc] sm:$0xf]
    %v521 = vunpack.c.l.b16 %v513
    %v522 = vunpack.c.l.b16 %v514
    %v523 = vunpack.c.l.b16 %v515
    %v524 = vunpack.c.l.b16 %v516
    %v525 = vpack.c.b16 %v522, %v521
    %v526 = vpack.c.b16 %v524, %v523
    %v530 = vsel %vm258, %v510, 0
    %v533 = vsel %vm258, %v511, 0
    %v536 = vsel %vm258, %v512, 0
    %538 = vmatpush.bf16.msra.mxu0 0
    %539 = vmatpush.bf16.msra.mxu0 0
    %540 = vmatpush.bf16.msra.mxu0 0
    %541 = vmatpush.bf16.msra.mxu0 0
    %542 = vmatpush.bf16.msra.mxu0 0
    %543 = vmatpush.bf16.msra.mxu0 0
    %544 = vmatpush.bf16.msra.mxu0 %v526
    %545 = vmatpush.bf16.msra.mxu0 %v525
    %546 = vmatmul.bf16.gmra.mxu0 %v530
    %v547 = vpop.f32.mrf.mxu0
    %v548 = vadd.f32 0.0, %v547
    %v549 = vpop.f32.mrf.mxu0
    %v550 = vadd.f32 0.0, %v549
    %551 = vmatmul.bf16.gmra.mxu0 %v533
    %v552 = vpop.f32.mrf.mxu0
    %v553 = vadd.f32 0.0, %v552
    %v554 = vpop.f32.mrf.mxu0
    %v555 = vadd.f32 0.0, %v554
    %556 = vmatmul.bf16.gmra.mxu0 %v536
    %v557 = vpop.f32.mrf.mxu0
    %v558 = vadd.f32 0.0, %v557
    %v559 = vpop.f32.mrf.mxu0
    %v560 = vadd.f32 0.0, %v559
    %561 = vdwg.mxu0
    %v562 = vpack.c.bf16 %v548, %v548
    %v563 = vpack.c.bf16 %v550, %v550
    %v564 = vpack.c.bf16 %v553, %v553
    %v565 = vpack.c.bf16 %v555, %v555
    %v566 = vpack.c.bf16 %v558, %v558
    %v567 = vpack.c.bf16 %v560, %v560
    %574 = vrot.lane.b32.xlu0 %v562, 120
    %v575 = vpop.permute.xlu0 %574
    %576 = vrot.lane.b32.xlu0 %v563, 120
    %v577 = vpop.permute.xlu0 %576
    %578 = vrot.lane.b32.xlu0 %v564, 120
    %v579 = vpop.permute.xlu0 %578
    %580 = vrot.lane.b32.xlu0 %v565, 120
    %v581 = vpop.permute.xlu0 %580
    %582 = vrot.lane.b32.xlu0 %v566, 120
    %v583 = vpop.permute.xlu0 %582
    %584 = vrot.lane.b32.xlu0 %v567, 120
    %v585 = vpop.permute.xlu0 %584
    %586 = vrot.lane.b32.xlu0 %v562, 112
    %v587 = vpop.permute.xlu0 %586
    %588 = vrot.lane.b32.xlu0 %v563, 112
    %v589 = vpop.permute.xlu0 %588
    %590 = vrot.lane.b32.xlu0 %v564, 112
    %v591 = vpop.permute.xlu0 %590
    %592 = vrot.lane.b32.xlu0 %v565, 112
    %v593 = vpop.permute.xlu0 %592
    %594 = vrot.lane.b32.xlu0 %v566, 112
    %v595 = vpop.permute.xlu0 %594
    %596 = vrot.lane.b32.xlu0 %v567, 112
    %v597 = vpop.permute.xlu0 %596
    %598 = vrot.lane.b32.xlu0 %v562, 104
    %v599 = vpop.permute.xlu0 %598
    %600 = vrot.lane.b32.xlu0 %v563, 104
    %v601 = vpop.permute.xlu0 %600
    %602 = vrot.lane.b32.xlu0 %v564, 104
    %v603 = vpop.permute.xlu0 %602
    %604 = vrot.lane.b32.xlu0 %v565, 104
    %v605 = vpop.permute.xlu0 %604
    %606 = vrot.lane.b32.xlu0 %v566, 104
    %v607 = vpop.permute.xlu0 %606
    %608 = vrot.lane.b32.xlu0 %v567, 104
    %v609 = vpop.permute.xlu0 %608
    %v610 = vunpack.c.l.b16 %v562
    %v611 = vunpack.c.l.b16 %v563
    %v612 = vunpack.c.l.b16 %v564
    %v613 = vpack.c.b16 %v611, %v610
    %v614 = vpack.c.b16 %v612, %v612
    %615 = vrot.lane.b32.xlu0 %v613, 96
    %v616 = vpop.permute.xlu0 %615
    %617 = vrot.lane.b32.xlu0 %v614, 96
    %v618 = vpop.permute.xlu0 %617
    %vm619 = vcmask 64512
    %v621 = vsel %vm619, %v613, 0
    %v624 = vsel %vm619, %v614, 0
    %v627 = vsel %vm619, %v616, 0
    %v630 = vsel %vm619, %v618, 0
    %632 = vmatpush.bf16.xpose.msra.mxu0 0
    %633 = vmatpush.bf16.xpose.msra.mxu0 0
    %634 = vmatpush.bf16.xpose.msra.mxu0 0
    %635 = vmatpush.bf16.xpose.msra.mxu0 0
    %636 = vmatpush.bf16.xpose.msra.mxu0 0
    %637 = vmatpush.bf16.xpose.msra.mxu0 0
    %638 = vmatpush.bf16.xpose.msra.mxu0 %v630
    %639 = vmatpush.bf16.xpose.msra.mxu0 %v627
    %640 = vmatmul.bf16.gmra.mxu0 %v621
    %v641 = vpop.f32.mrf.mxu0
    %v642 = vadd.f32 0.0, %v641
    %v643 = vpop.f32.mrf.mxu0
    %v644 = vadd.f32 0.0, %v643
    %645 = vmatmul.bf16.gmra.mxu0 %v624
    %v646 = vpop.f32.mrf.mxu0
    %v647 = vadd.f32 0.0, %v646
    %v648 = vpop.f32.mrf.mxu0
    %649 = vdwg.mxu0
    %v650 = vunpack.c.l.b16 %v565
    %v651 = vunpack.c.l.b16 %v566
    %v652 = vunpack.c.l.b16 %v567
    %v653 = vpack.c.b16 %v651, %v650
    %v654 = vpack.c.b16 %v652, %v652
    %655 = vrot.lane.b32.xlu0 %v653, 96
    %v656 = vpop.permute.xlu0 %655
    %657 = vrot.lane.b32.xlu0 %v654, 96
    %v658 = vpop.permute.xlu0 %657
    %v660 = vsel %vm619, %v653, 0
    %v663 = vsel %vm619, %v654, 0
    %v666 = vsel %vm619, %v656, 0
    %v669 = vsel %vm619, %v658, 0
    %671 = vmatpush.bf16.xpose.msra.mxu0 0
    %672 = vmatpush.bf16.xpose.msra.mxu0 0
    %673 = vmatpush.bf16.xpose.msra.mxu0 0
    %674 = vmatpush.bf16.xpose.msra.mxu0 0
    %675 = vmatpush.bf16.xpose.msra.mxu0 0
    %676 = vmatpush.bf16.xpose.msra.mxu0 0
    %677 = vmatpush.bf16.xpose.msra.mxu0 %v669
    %678 = vmatpush.bf16.xpose.msra.mxu0 %v666
    %679 = vmatmul.bf16.gmra.mxu0 %v660
    %v680 = vpop.f32.mrf.mxu0
    %v681 = vadd.f32 0.0, %v680
    %v682 = vpop.f32.mrf.mxu0
    %v683 = vadd.f32 0.0, %v682
    %684 = vmatmul.bf16.gmra.mxu0 %v663
    %v685 = vpop.f32.mrf.mxu0
    %v686 = vadd.f32 0.0, %v685
    %v687 = vpop.f32.mrf.mxu0
    %688 = vdwg.mxu0
    %v689 = vunpack.c.l.b16 %v575
    %v690 = vunpack.c.l.b16 %v577
    %v691 = vunpack.c.l.b16 %v579
    %v692 = vpack.c.b16 %v690, %v689
    %v693 = vpack.c.b16 %v691, %v691
    %694 = vrot.lane.b32.xlu0 %v692, 96
    %v695 = vpop.permute.xlu0 %694
    %696 = vrot.lane.b32.xlu0 %v693, 96
    %v697 = vpop.permute.xlu0 %696
    %v699 = vsel %vm619, %v692, 0
    %v702 = vsel %vm619, %v693, 0
    %v705 = vsel %vm619, %v695, 0
    %v708 = vsel %vm619, %v697, 0
    %710 = vmatpush.bf16.xpose.msra.mxu0 0
    %711 = vmatpush.bf16.xpose.msra.mxu0 0
    %712 = vmatpush.bf16.xpose.msra.mxu0 0
    %713 = vmatpush.bf16.xpose.msra.mxu0 0
    %714 = vmatpush.bf16.xpose.msra.mxu0 0
    %715 = vmatpush.bf16.xpose.msra.mxu0 0
    %716 = vmatpush.bf16.xpose.msra.mxu0 %v708
    %717 = vmatpush.bf16.xpose.msra.mxu0 %v705
    %718 = vmatmul.bf16.gmra.mxu0 %v699
    %v719 = vpop.f32.mrf.mxu0
    %v720 = vadd.f32 0.0, %v719
    %v721 = vpop.f32.mrf.mxu0
    %v722 = vadd.f32 0.0, %v721
    %723 = vmatmul.bf16.gmra.mxu0 %v702
    %v724 = vpop.f32.mrf.mxu0
    %v725 = vadd.f32 0.0, %v724
    %v726 = vpop.f32.mrf.mxu0
    %727 = vdwg.mxu0
    %v728 = vunpack.c.l.b16 %v581
    %v729 = vunpack.c.l.b16 %v583
    %v730 = vunpack.c.l.b16 %v585
    %v731 = vpack.c.b16 %v729, %v728
    %v732 = vpack.c.b16 %v730, %v730
    %733 = vrot.lane.b32.xlu0 %v731, 96
    %v734 = vpop.permute.xlu0 %733
    %735 = vrot.lane.b32.xlu0 %v732, 96
    %v736 = vpop.permute.xlu0 %735
    %v738 = vsel %vm619, %v731, 0
    %v741 = vsel %vm619, %v732, 0
    %v744 = vsel %vm619, %v734, 0
    %v747 = vsel %vm619, %v736, 0
    %749 = vmatpush.bf16.xpose.msra.mxu0 0
    %750 = vmatpush.bf16.xpose.msra.mxu0 0
    %751 = vmatpush.bf16.xpose.msra.mxu0 0
    %752 = vmatpush.bf16.xpose.msra.mxu0 0
    %753 = vmatpush.bf16.xpose.msra.mxu0 0
    %754 = vmatpush.bf16.xpose.msra.mxu0 0
    %755 = vmatpush.bf16.xpose.msra.mxu0 %v747
    %756 = vmatpush.bf16.xpose.msra.mxu0 %v744
    %757 = vmatmul.bf16.gmra.mxu0 %v738
    %v758 = vpop.f32.mrf.mxu0
    %v759 = vadd.f32 0.0, %v758
    %v760 = vpop.f32.mrf.mxu0
    %v761 = vadd.f32 0.0, %v760
    %762 = vmatmul.bf16.gmra.mxu0 %v741
    %v763 = vpop.f32.mrf.mxu0
    %v764 = vadd.f32 0.0, %v763
    %v765 = vpop.f32.mrf.mxu0
    %766 = vdwg.mxu0
    %v767 = vunpack.c.l.b16 %v587
    %v768 = vunpack.c.l.b16 %v589
    %v769 = vunpack.c.l.b16 %v591
    %v770 = vpack.c.b16 %v768, %v767
    %v771 = vpack.c.b16 %v769, %v769
    %772 = vrot.lane.b32.xlu0 %v770, 96
    %v773 = vpop.permute.xlu0 %772
    %774 = vrot.lane.b32.xlu0 %v771, 96
    %v775 = vpop.permute.xlu0 %774
    %v777 = vsel %vm619, %v770, 0
    %v780 = vsel %vm619, %v771, 0
    %v783 = vsel %vm619, %v773, 0
    %v786 = vsel %vm619, %v775, 0
    %788 = vmatpush.bf16.xpose.msra.mxu0 0
    %789 = vmatpush.bf16.xpose.msra.mxu0 0
    %790 = vmatpush.bf16.xpose.msra.mxu0 0
    %791 = vmatpush.bf16.xpose.msra.mxu0 0
    %792 = vmatpush.bf16.xpose.msra.mxu0 0
    %793 = vmatpush.bf16.xpose.msra.mxu0 0
    %794 = vmatpush.bf16.xpose.msra.mxu0 %v786
    %795 = vmatpush.bf16.xpose.msra.mxu0 %v783
    %796 = vmatmul.bf16.gmra.mxu0 %v777
    %v797 = vpop.f32.mrf.mxu0
    %v798 = vadd.f32 0.0, %v797
    %v799 = vpop.f32.mrf.mxu0
    %v800 = vadd.f32 0.0, %v799
    %801 = vmatmul.bf16.gmra.mxu0 %v780
    %v802 = vpop.f32.mrf.mxu0
    %v803 = vadd.f32 0.0, %v802
    %v804 = vpop.f32.mrf.mxu0
    %805 = vdwg.mxu0
    %v806 = vunpack.c.l.b16 %v593
    %v807 = vunpack.c.l.b16 %v595
    %v808 = vunpack.c.l.b16 %v597
    %v809 = vpack.c.b16 %v807, %v806
    %v810 = vpack.c.b16 %v808, %v808
    %811 = vrot.lane.b32.xlu0 %v809, 96
    %v812 = vpop.permute.xlu0 %811
    %813 = vrot.lane.b32.xlu0 %v810, 96
    %v814 = vpop.permute.xlu0 %813
    %v816 = vsel %vm619, %v809, 0
    %v819 = vsel %vm619, %v810, 0
    %v822 = vsel %vm619, %v812, 0
    %v825 = vsel %vm619, %v814, 0
    %827 = vmatpush.bf16.xpose.msra.mxu0 0
    %828 = vmatpush.bf16.xpose.msra.mxu0 0
    %829 = vmatpush.bf16.xpose.msra.mxu0 0
    %830 = vmatpush.bf16.xpose.msra.mxu0 0
    %831 = vmatpush.bf16.xpose.msra.mxu0 0
    %832 = vmatpush.bf16.xpose.msra.mxu0 0
    %833 = vmatpush.bf16.xpose.msra.mxu0 %v825
    %834 = vmatpush.bf16.xpose.msra.mxu0 %v822
    %835 = vmatmul.bf16.gmra.mxu0 %v816
    %v836 = vpop.f32.mrf.mxu0
    %v837 = vadd.f32 0.0, %v836
    %v838 = vpop.f32.mrf.mxu0
    %v839 = vadd.f32 0.0, %v838
    %840 = vmatmul.bf16.gmra.mxu0 %v819
    %v841 = vpop.f32.mrf.mxu0
    %v842 = vadd.f32 0.0, %v841
    %v843 = vpop.f32.mrf.mxu0
    %844 = vdwg.mxu0
    %v845 = vunpack.c.l.b16 %v599
    %v846 = vunpack.c.l.b16 %v601
    %v847 = vunpack.c.l.b16 %v603
    %v848 = vpack.c.b16 %v846, %v845
    %v849 = vpack.c.b16 %v847, %v847
    %850 = vrot.lane.b32.xlu0 %v848, 96
    %v851 = vpop.permute.xlu0 %850
    %852 = vrot.lane.b32.xlu0 %v849, 96
    %v853 = vpop.permute.xlu0 %852
    %v855 = vsel %vm619, %v848, 0
    %v858 = vsel %vm619, %v849, 0
    %v861 = vsel %vm619, %v851, 0
    %v864 = vsel %vm619, %v853, 0
    %866 = vmatpush.bf16.xpose.msra.mxu0 0
    %867 = vmatpush.bf16.xpose.msra.mxu0 0
    %868 = vmatpush.bf16.xpose.msra.mxu0 0
    %869 = vmatpush.bf16.xpose.msra.mxu0 0
    %870 = vmatpush.bf16.xpose.msra.mxu0 0
    %871 = vmatpush.bf16.xpose.msra.mxu0 0
    %872 = vmatpush.bf16.xpose.msra.mxu0 %v864
    %873 = vmatpush.bf16.xpose.msra.mxu0 %v861
    %874 = vmatmul.bf16.gmra.mxu0 %v855
    %v875 = vpop.f32.mrf.mxu0
    %v876 = vadd.f32 0.0, %v875
    %v877 = vpop.f32.mrf.mxu0
    %v878 = vadd.f32 0.0, %v877
    %879 = vmatmul.bf16.gmra.mxu0 %v858
    %v880 = vpop.f32.mrf.mxu0
    %v881 = vadd.f32 0.0, %v880
    %v882 = vpop.f32.mrf.mxu0
    %883 = vdwg.mxu0
    %v884 = vunpack.c.l.b16 %v605
    %v885 = vunpack.c.l.b16 %v607
    %v886 = vunpack.c.l.b16 %v609
    %v887 = vpack.c.b16 %v885, %v884
    %v888 = vpack.c.b16 %v886, %v886
    %889 = vrot.lane.b32.xlu0 %v887, 96
    %v890 = vpop.permute.xlu0 %889
    %891 = vrot.lane.b32.xlu0 %v888, 96
    %v892 = vpop.permute.xlu0 %891
    %v894 = vsel %vm619, %v887, 0
    %v897 = vsel %vm619, %v888, 0
    %v900 = vsel %vm619, %v890, 0
    %v903 = vsel %vm619, %v892, 0
    %905 = vmatpush.bf16.xpose.msra.mxu0 0
    %906 = vmatpush.bf16.xpose.msra.mxu0 0
    %907 = vmatpush.bf16.xpose.msra.mxu0 0
    %908 = vmatpush.bf16.xpose.msra.mxu0 0
    %909 = vmatpush.bf16.xpose.msra.mxu0 0
    %910 = vmatpush.bf16.xpose.msra.mxu0 0
    %911 = vmatpush.bf16.xpose.msra.mxu0 %v903
    %912 = vmatpush.bf16.xpose.msra.mxu0 %v900
    %913 = vmatmul.bf16.gmra.mxu0 %v894
    %v914 = vpop.f32.mrf.mxu0
    %v915 = vadd.f32 0.0, %v914
    %v916 = vpop.f32.mrf.mxu0
    %v917 = vadd.f32 0.0, %v916
    %918 = vmatmul.bf16.gmra.mxu0 %v897
    %v919 = vpop.f32.mrf.mxu0
    %v920 = vadd.f32 0.0, %v919
    %v921 = vpop.f32.mrf.mxu0
    %922 = vdwg.mxu0
    %vm923 = vcmask 195584
    %v924 = vsel %vm923, %v642, -inf
    %925 = vmax.xlane.f32.xlu0 %v924
    %v926 = vpop.xlane.xlu0 %925
    %v927 = vsel %vm923, %v644, -inf
    %928 = vmax.xlane.f32.xlu0 %v927
    %v929 = vpop.xlane.xlu0 %928
    %v930 = vsel %vm923, %v647, -inf
    %931 = vmax.xlane.f32.xlu0 %v930
    %v932 = vpop.xlane.xlu0 %931
    %v933 = vsel %vm923, %v681, -inf
    %934 = vmax.xlane.f32.xlu0 %v933
    %v935 = vpop.xlane.xlu0 %934
    %v936 = vsel %vm923, %v683, -inf
    %937 = vmax.xlane.f32.xlu0 %v936
    %v938 = vpop.xlane.xlu0 %937
    %v939 = vsel %vm923, %v686, -inf
    %940 = vmax.xlane.f32.xlu0 %v939
    %v941 = vpop.xlane.xlu0 %940
    %v942 = vsel %vm923, %v720, -inf
    %943 = vmax.xlane.f32.xlu0 %v942
    %v944 = vpop.xlane.xlu0 %943
    %v945 = vsel %vm923, %v722, -inf
    %946 = vmax.xlane.f32.xlu0 %v945
    %v947 = vpop.xlane.xlu0 %946
    %v948 = vsel %vm923, %v725, -inf
    %949 = vmax.xlane.f32.xlu0 %v948
    %v950 = vpop.xlane.xlu0 %949
    %v951 = vsel %vm923, %v759, -inf
    %952 = vmax.xlane.f32.xlu0 %v951
    %v953 = vpop.xlane.xlu0 %952
    %v954 = vsel %vm923, %v761, -inf
    %955 = vmax.xlane.f32.xlu0 %v954
    %v956 = vpop.xlane.xlu0 %955
    %v957 = vsel %vm923, %v764, -inf
    %958 = vmax.xlane.f32.xlu0 %v957
    %v959 = vpop.xlane.xlu0 %958
    %v960 = vsel %vm923, %v798, -inf
    %961 = vmax.xlane.f32.xlu0 %v960
    %v962 = vpop.xlane.xlu0 %961
    %v963 = vsel %vm923, %v800, -inf
    %964 = vmax.xlane.f32.xlu0 %v963
    %v965 = vpop.xlane.xlu0 %964
    %v966 = vsel %vm923, %v803, -inf
    %967 = vmax.xlane.f32.xlu0 %v966
    %v968 = vpop.xlane.xlu0 %967
    %v969 = vsel %vm923, %v837, -inf
    %970 = vmax.xlane.f32.xlu0 %v969
    %v971 = vpop.xlane.xlu0 %970
    %v972 = vsel %vm923, %v839, -inf
    %973 = vmax.xlane.f32.xlu0 %v972
    %v974 = vpop.xlane.xlu0 %973
    %v975 = vsel %vm923, %v842, -inf
    %976 = vmax.xlane.f32.xlu0 %v975
    %v977 = vpop.xlane.xlu0 %976
    %v978 = vsel %vm923, %v876, -inf
    %979 = vmax.xlane.f32.xlu0 %v978
    %v980 = vpop.xlane.xlu0 %979
    %v981 = vsel %vm923, %v878, -inf
    %982 = vmax.xlane.f32.xlu0 %v981
    %v983 = vpop.xlane.xlu0 %982
    %v984 = vsel %vm923, %v881, -inf
    %985 = vmax.xlane.f32.xlu0 %v984
    %v986 = vpop.xlane.xlu0 %985
    %v987 = vsel %vm923, %v915, -inf
    %988 = vmax.xlane.f32.xlu0 %v987
    %v989 = vpop.xlane.xlu0 %988
    %v990 = vsel %vm923, %v917, -inf
    %991 = vmax.xlane.f32.xlu0 %v990
    %v992 = vpop.xlane.xlu0 %991
    %v993 = vsel %vm923, %v920, -inf
    %994 = vmax.xlane.f32.xlu0 %v993
    %v995 = vpop.xlane.xlu0 %994
    %v996 = vsub.f32 %v642, %v926
    %v997 = vsub.f32 %v644, %v929
    %v998 = vsub.f32 %v647, %v932
    %v999 = vsub.f32 %v681, %v935
    %v1000 = vsub.f32 %v683, %v938
    %v1001 = vsub.f32 %v686, %v941
    %v1002 = vsub.f32 %v720, %v944
    %v1003 = vsub.f32 %v722, %v947
    %v1004 = vsub.f32 %v725, %v950
    %v1005 = vsub.f32 %v759, %v953
    %v1006 = vsub.f32 %v761, %v956
    %v1007 = vsub.f32 %v764, %v959
    %v1008 = vsub.f32 %v798, %v962
    %v1009 = vsub.f32 %v800, %v965
    %v1010 = vsub.f32 %v803, %v968
    %v1011 = vsub.f32 %v837, %v971
    %v1012 = vsub.f32 %v839, %v974
    %v1013 = vsub.f32 %v842, %v977
    %v1014 = vsub.f32 %v876, %v980
    %v1015 = vsub.f32 %v878, %v983
    %v1016 = vsub.f32 %v881, %v986
    %v1017 = vsub.f32 %v915, %v989
    %v1018 = vsub.f32 %v917, %v992
    %v1019 = vsub.f32 %v920, %v995
    %v1020 = vmul.f32 %v996, 1.442695
    %v1021 = vpow.pop %v1020
    %v1022 = vmul.f32 %v997, 1.442695
    %v1023 = vpow.pop %v1022
    %v1024 = vmul.f32 %v998, 1.442695
    %v1025 = vpow.pop %v1024
    %v1026 = vmul.f32 %v999, 1.442695
    %v1027 = vpow.pop %v1026
    %v1028 = vmul.f32 %v1000, 1.442695
    %v1029 = vpow.pop %v1028
    %v1030 = vmul.f32 %v1001, 1.442695
    %v1031 = vpow.pop %v1030
    %v1032 = vmul.f32 %v1002, 1.442695
    %v1033 = vpow.pop %v1032
    %v1034 = vmul.f32 %v1003, 1.442695
    %v1035 = vpow.pop %v1034
    %v1036 = vmul.f32 %v1004, 1.442695
    %v1037 = vpow.pop %v1036
    %v1038 = vmul.f32 %v1005, 1.442695
    %v1039 = vpow.pop %v1038
    %v1040 = vmul.f32 %v1006, 1.442695
    %v1041 = vpow.pop %v1040
    %v1042 = vmul.f32 %v1007, 1.442695
    %v1043 = vpow.pop %v1042
    %v1044 = vmul.f32 %v1008, 1.442695
    %v1045 = vpow.pop %v1044
    %v1046 = vmul.f32 %v1009, 1.442695
    %v1047 = vpow.pop %v1046
    %v1048 = vmul.f32 %v1010, 1.442695
    %v1049 = vpow.pop %v1048
    %v1050 = vmul.f32 %v1011, 1.442695
    %v1051 = vpow.pop %v1050
    %v1052 = vmul.f32 %v1012, 1.442695
    %v1053 = vpow.pop %v1052
    %v1054 = vmul.f32 %v1013, 1.442695
    %v1055 = vpow.pop %v1054
    %v1056 = vmul.f32 %v1014, 1.442695
    %v1057 = vpow.pop %v1056
    %v1058 = vmul.f32 %v1015, 1.442695
    %v1059 = vpow.pop %v1058
    %v1060 = vmul.f32 %v1016, 1.442695
    %v1061 = vpow.pop %v1060
    %v1062 = vmul.f32 %v1017, 1.442695
    %v1063 = vpow.pop %v1062
    %v1064 = vmul.f32 %v1018, 1.442695
    %v1065 = vpow.pop %v1064
    %v1066 = vmul.f32 %v1019, 1.442695
    %v1067 = vpow.pop %v1066
    %v1068 = vsel %vm381, 1, 0
    %vm1069 = vcmp.eq.s32.totalorder %v1068, 1
    %v1070 = vsel %vm1069, 0.0, %v1021
    %v1071 = vsel %vm1069, 0.0, %v1023
    %v1072 = vsel %vm1069, 0.0, %v1025
    %v1073 = vsel %vm1069, 0.0, %v1027
    %v1074 = vsel %vm1069, 0.0, %v1029
    %v1075 = vsel %vm1069, 0.0, %v1031
    %v1076 = vsel %vm1069, 0.0, %v1033
    %v1077 = vsel %vm1069, 0.0, %v1035
    %v1078 = vsel %vm1069, 0.0, %v1037
    %v1079 = vsel %vm1069, 0.0, %v1039
    %v1080 = vsel %vm1069, 0.0, %v1041
    %v1081 = vsel %vm1069, 0.0, %v1043
    %v1082 = vsel %vm1069, 0.0, %v1045
    %v1083 = vsel %vm1069, 0.0, %v1047
    %v1084 = vsel %vm1069, 0.0, %v1049
    %v1085 = vsel %vm1069, 0.0, %v1051
    %v1086 = vsel %vm1069, 0.0, %v1053
    %v1087 = vsel %vm1069, 0.0, %v1055
    %v1088 = vsel %vm1069, 0.0, %v1057
    %v1089 = vsel %vm1069, 0.0, %v1059
    %v1090 = vsel %vm1069, 0.0, %v1061
    %v1091 = vsel %vm1069, 0.0, %v1063
    %v1092 = vsel %vm1069, 0.0, %v1065
    %v1093 = vsel %vm1069, 0.0, %v1067
    %v1094 = vsel %vm923, %v1070, 0.0
    %1095 = vadd.xlane.f32.xlu0 %v1094
    %v1096 = vpop.xlane.xlu0 %1095
    %v1097 = vsel %vm923, %v1071, 0.0
    %1098 = vadd.xlane.f32.xlu0 %v1097
    %v1099 = vpop.xlane.xlu0 %1098
    %v1100 = vsel %vm923, %v1072, 0.0
    %1101 = vadd.xlane.f32.xlu0 %v1100
    %v1102 = vpop.xlane.xlu0 %1101
    %v1103 = vsel %vm923, %v1073, 0.0
    %1104 = vadd.xlane.f32.xlu0 %v1103
    %v1105 = vpop.xlane.xlu0 %1104
    %v1106 = vsel %vm923, %v1074, 0.0
    %1107 = vadd.xlane.f32.xlu0 %v1106
    %v1108 = vpop.xlane.xlu0 %1107
    %v1109 = vsel %vm923, %v1075, 0.0
    %1110 = vadd.xlane.f32.xlu0 %v1109
    %v1111 = vpop.xlane.xlu0 %1110
    %v1112 = vsel %vm923, %v1076, 0.0
    %1113 = vadd.xlane.f32.xlu0 %v1112
    %v1114 = vpop.xlane.xlu0 %1113
    %v1115 = vsel %vm923, %v1077, 0.0
    %1116 = vadd.xlane.f32.xlu0 %v1115
    %v1117 = vpop.xlane.xlu0 %1116
    %v1118 = vsel %vm923, %v1078, 0.0
    %1119 = vadd.xlane.f32.xlu0 %v1118
    %v1120 = vpop.xlane.xlu0 %1119
    %v1121 = vsel %vm923, %v1079, 0.0
    %1122 = vadd.xlane.f32.xlu0 %v1121
    %v1123 = vpop.xlane.xlu0 %1122
    %v1124 = vsel %vm923, %v1080, 0.0
    %1125 = vadd.xlane.f32.xlu0 %v1124
    %v1126 = vpop.xlane.xlu0 %1125
    %v1127 = vsel %vm923, %v1081, 0.0
    %1128 = vadd.xlane.f32.xlu0 %v1127
    %v1129 = vpop.xlane.xlu0 %1128
    %v1130 = vsel %vm923, %v1082, 0.0
    %1131 = vadd.xlane.f32.xlu0 %v1130
    %v1132 = vpop.xlane.xlu0 %1131
    %v1133 = vsel %vm923, %v1083, 0.0
    %1134 = vadd.xlane.f32.xlu0 %v1133
    %v1135 = vpop.xlane.xlu0 %1134
    %v1136 = vsel %vm923, %v1084, 0.0
    %1137 = vadd.xlane.f32.xlu0 %v1136
    %v1138 = vpop.xlane.xlu0 %1137
    %v1139 = vsel %vm923, %v1085, 0.0
    %1140 = vadd.xlane.f32.xlu0 %v1139
    %v1141 = vpop.xlane.xlu0 %1140
    %v1142 = vsel %vm923, %v1086, 0.0
    %1143 = vadd.xlane.f32.xlu0 %v1142
    %v1144 = vpop.xlane.xlu0 %1143
    %v1145 = vsel %vm923, %v1087, 0.0
    %1146 = vadd.xlane.f32.xlu0 %v1145
    %v1147 = vpop.xlane.xlu0 %1146
    %v1148 = vsel %vm923, %v1088, 0.0
    %1149 = vadd.xlane.f32.xlu0 %v1148
    %v1150 = vpop.xlane.xlu0 %1149
    %v1151 = vsel %vm923, %v1089, 0.0
    %1152 = vadd.xlane.f32.xlu0 %v1151
    %v1153 = vpop.xlane.xlu0 %1152
    %v1154 = vsel %vm923, %v1090, 0.0
    %1155 = vadd.xlane.f32.xlu0 %v1154
    %v1156 = vpop.xlane.xlu0 %1155
    %v1157 = vsel %vm923, %v1091, 0.0
    %1158 = vadd.xlane.f32.xlu0 %v1157
    %v1159 = vpop.xlane.xlu0 %1158
    %v1160 = vsel %vm923, %v1092, 0.0
    %1161 = vadd.xlane.f32.xlu0 %v1160
    %v1162 = vpop.xlane.xlu0 %1161
    %v1163 = vsel %vm923, %v1093, 0.0
    %1164 = vadd.xlane.f32.xlu0 %v1163
    %v1165 = vpop.xlane.xlu0 %1164
    %v1166 = vrcp.pop %v1096
    %v1167 = vrcp.pop %v1099
    %v1168 = vrcp.pop %v1102
    %v1169 = vrcp.pop %v1105
    %v1170 = vrcp.pop %v1108
    %v1171 = vrcp.pop %v1111
    %v1172 = vrcp.pop %v1114
    %v1173 = vrcp.pop %v1117
    %v1174 = vrcp.pop %v1120
    %v1175 = vrcp.pop %v1123
    %v1176 = vrcp.pop %v1126
    %v1177 = vrcp.pop %v1129
    %v1178 = vrcp.pop %v1132
    %v1179 = vrcp.pop %v1135
    %v1180 = vrcp.pop %v1138
    %v1181 = vrcp.pop %v1141
    %v1182 = vrcp.pop %v1144
    %v1183 = vrcp.pop %v1147
    %v1184 = vrcp.pop %v1150
    %v1185 = vrcp.pop %v1153
    %v1186 = vrcp.pop %v1156
    %v1187 = vrcp.pop %v1159
    %v1188 = vrcp.pop %v1162
    %v1189 = vrcp.pop %v1165
    %v1190 = vmul.f32 %v1070, %v1166
    %v1191 = vmul.f32 %v1071, %v1167
    %v1192 = vmul.f32 %v1072, %v1168
    %v1193 = vmul.f32 %v1073, %v1169
    %v1194 = vmul.f32 %v1074, %v1170
    %v1195 = vmul.f32 %v1075, %v1171
    %v1196 = vmul.f32 %v1076, %v1172
    %v1197 = vmul.f32 %v1077, %v1173
    %v1198 = vmul.f32 %v1078, %v1174
    %v1199 = vmul.f32 %v1079, %v1175
    %v1200 = vmul.f32 %v1080, %v1176
    %v1201 = vmul.f32 %v1081, %v1177
    %v1202 = vmul.f32 %v1082, %v1178
    %v1203 = vmul.f32 %v1083, %v1179
    %v1204 = vmul.f32 %v1084, %v1180
    %v1205 = vmul.f32 %v1085, %v1181
    %v1206 = vmul.f32 %v1086, %v1182
    %v1207 = vmul.f32 %v1087, %v1183
    %v1208 = vmul.f32 %v1088, %v1184
    %v1209 = vmul.f32 %v1089, %v1185
    %v1210 = vmul.f32 %v1090, %v1186
    %v1211 = vmul.f32 %v1091, %v1187
    %v1212 = vmul.f32 %v1092, %v1188
    %v1213 = vmul.f32 %v1093, %v1189
    %v1214 = vpack.c.bf16 %v1190, %v1190
    %v1215 = vpack.c.bf16 %v1191, %v1191
    %v1216 = vpack.c.bf16 %v1192, %v1192
    %v1217 = vpack.c.bf16 %v1193, %v1193
    %v1218 = vpack.c.bf16 %v1194, %v1194
    %v1219 = vpack.c.bf16 %v1195, %v1195
    %v1220 = vpack.c.bf16 %v1196, %v1196
    %v1221 = vpack.c.bf16 %v1197, %v1197
    %v1222 = vpack.c.bf16 %v1198, %v1198
    %v1223 = vpack.c.bf16 %v1199, %v1199
    %v1224 = vpack.c.bf16 %v1200, %v1200
    %v1225 = vpack.c.bf16 %v1201, %v1201
    %v1226 = vpack.c.bf16 %v1202, %v1202
    %v1227 = vpack.c.bf16 %v1203, %v1203
    %v1228 = vpack.c.bf16 %v1204, %v1204
    %v1229 = vpack.c.bf16 %v1205, %v1205
    %v1230 = vpack.c.bf16 %v1206, %v1206
    %v1231 = vpack.c.bf16 %v1207, %v1207
    %v1232 = vpack.c.bf16 %v1208, %v1208
    %v1233 = vpack.c.bf16 %v1209, %v1209
    %v1234 = vpack.c.bf16 %v1210, %v1210
    %v1235 = vpack.c.bf16 %v1211, %v1211
    %v1236 = vpack.c.bf16 %v1212, %v1212
    %v1237 = vpack.c.bf16 %v1213, %v1213
    %v1241 = vunpack.c.l.b16 %v1214
    %v1242 = vunpack.c.l.b16 %v1215
    %v1243 = vunpack.c.l.b16 %v1216
    %v1244 = vpack.c.b16 %v1242, %v1241
    %v1245 = vpack.c.b16 %v1243, %v1243
    %1246 = vrot.lane.b32.xlu0 %v613, 64
    %v1247 = vpop.permute.xlu0 %1246
    %1248 = vrot.lane.b32.xlu0 %v614, 64
    %v1249 = vpop.permute.xlu0 %1248
    %v1252 = vsel %vm923, %v1244, 0
    %v1255 = vsel %vm923, %v1245, 0
    %vm1257 = vcmask 1043456
    %v1259 = vsel %vm1257, %v1249, 0
    %1261 = vmatpush.bf16.msra.mxu0 0
    %1262 = vmatpush.bf16.msra.mxu0 0
    %1263 = vmatpush.bf16.msra.mxu0 0
    %1264 = vmatpush.bf16.msra.mxu0 0
    %1265 = vmatpush.bf16.msra.mxu0 0
    %1266 = vmatpush.bf16.msra.mxu0 0
    %1267 = vmatpush.bf16.msra.mxu0 %v1259
    %1268 = vmatpush.bf16.msra.mxu0 %v1247
    %1269 = vmatmul.bf16.gmra.mxu0 %v1252
    %v1270 = vpop.f32.mrf.mxu0
    %v1271 = vadd.f32 0.0, %v1270
    %v1272 = vpop.f32.mrf.mxu0
    %v1273 = vadd.f32 0.0, %v1272
    %1274 = vmatmul.bf16.gmra.mxu0 %v1255
    %v1275 = vpop.f32.mrf.mxu0
    %v1276 = vadd.f32 0.0, %v1275
    %v1277 = vpop.f32.mrf.mxu0
    %1278 = vdwg.mxu0
    %v1282 = vunpack.c.l.b16 %v1217
    %v1283 = vunpack.c.l.b16 %v1218
    %v1284 = vunpack.c.l.b16 %v1219
    %v1285 = vpack.c.b16 %v1283, %v1282
    %v1286 = vpack.c.b16 %v1284, %v1284
    %1287 = vrot.lane.b32.xlu0 %v653, 64
    %v1288 = vpop.permute.xlu0 %1287
    %1289 = vrot.lane.b32.xlu0 %v654, 64
    %v1290 = vpop.permute.xlu0 %1289
    %v1293 = vsel %vm923, %v1285, 0
    %v1296 = vsel %vm923, %v1286, 0
    %v1299 = vsel %vm1257, %v1290, 0
    %1301 = vmatpush.bf16.msra.mxu0 0
    %1302 = vmatpush.bf16.msra.mxu0 0
    %1303 = vmatpush.bf16.msra.mxu0 0
    %1304 = vmatpush.bf16.msra.mxu0 0
    %1305 = vmatpush.bf16.msra.mxu0 0
    %1306 = vmatpush.bf16.msra.mxu0 0
    %1307 = vmatpush.bf16.msra.mxu0 %v1299
    %1308 = vmatpush.bf16.msra.mxu0 %v1288
    %1309 = vmatmul.bf16.gmra.mxu0 %v1293
    %v1310 = vpop.f32.mrf.mxu0
    %v1311 = vadd.f32 0.0, %v1310
    %v1312 = vpop.f32.mrf.mxu0
    %v1313 = vadd.f32 0.0, %v1312
    %1314 = vmatmul.bf16.gmra.mxu0 %v1296
    %v1315 = vpop.f32.mrf.mxu0
    %v1316 = vadd.f32 0.0, %v1315
    %v1317 = vpop.f32.mrf.mxu0
    %1318 = vdwg.mxu0
    %v1322 = vunpack.c.l.b16 %v1220
    %v1323 = vunpack.c.l.b16 %v1221
    %v1324 = vunpack.c.l.b16 %v1222
    %v1325 = vpack.c.b16 %v1323, %v1322
    %v1326 = vpack.c.b16 %v1324, %v1324
    %1327 = vrot.lane.b32.xlu0 %v692, 64
    %v1328 = vpop.permute.xlu0 %1327
    %1329 = vrot.lane.b32.xlu0 %v693, 64
    %v1330 = vpop.permute.xlu0 %1329
    %v1333 = vsel %vm923, %v1325, 0
    %v1336 = vsel %vm923, %v1326, 0
    %v1339 = vsel %vm1257, %v1330, 0
    %1341 = vmatpush.bf16.msra.mxu0 0
    %1342 = vmatpush.bf16.msra.mxu0 0
    %1343 = vmatpush.bf16.msra.mxu0 0
    %1344 = vmatpush.bf16.msra.mxu0 0
    %1345 = vmatpush.bf16.msra.mxu0 0
    %1346 = vmatpush.bf16.msra.mxu0 0
    %1347 = vmatpush.bf16.msra.mxu0 %v1339
    %1348 = vmatpush.bf16.msra.mxu0 %v1328
    %1349 = vmatmul.bf16.gmra.mxu0 %v1333
    %v1350 = vpop.f32.mrf.mxu0
    %v1351 = vadd.f32 0.0, %v1350
    %v1352 = vpop.f32.mrf.mxu0
    %v1353 = vadd.f32 0.0, %v1352
    %1354 = vmatmul.bf16.gmra.mxu0 %v1336
    %v1355 = vpop.f32.mrf.mxu0
    %v1356 = vadd.f32 0.0, %v1355
    %v1357 = vpop.f32.mrf.mxu0
    %1358 = vdwg.mxu0
    %v1362 = vunpack.c.l.b16 %v1223
    %v1363 = vunpack.c.l.b16 %v1224
    %v1364 = vunpack.c.l.b16 %v1225
    %v1365 = vpack.c.b16 %v1363, %v1362
    %v1366 = vpack.c.b16 %v1364, %v1364
    %1367 = vrot.lane.b32.xlu0 %v731, 64
    %v1368 = vpop.permute.xlu0 %1367
    %1369 = vrot.lane.b32.xlu0 %v732, 64
    %v1370 = vpop.permute.xlu0 %1369
    %v1373 = vsel %vm923, %v1365, 0
    %v1376 = vsel %vm923, %v1366, 0
    %v1379 = vsel %vm1257, %v1370, 0
    %1381 = vmatpush.bf16.msra.mxu0 0
    %1382 = vmatpush.bf16.msra.mxu0 0
    %1383 = vmatpush.bf16.msra.mxu0 0
    %1384 = vmatpush.bf16.msra.mxu0 0
    %1385 = vmatpush.bf16.msra.mxu0 0
    %1386 = vmatpush.bf16.msra.mxu0 0
    %1387 = vmatpush.bf16.msra.mxu0 %v1379
    %1388 = vmatpush.bf16.msra.mxu0 %v1368
    %1389 = vmatmul.bf16.gmra.mxu0 %v1373
    %v1390 = vpop.f32.mrf.mxu0
    %v1391 = vadd.f32 0.0, %v1390
    %v1392 = vpop.f32.mrf.mxu0
    %v1393 = vadd.f32 0.0, %v1392
    %1394 = vmatmul.bf16.gmra.mxu0 %v1376
    %v1395 = vpop.f32.mrf.mxu0
    %v1396 = vadd.f32 0.0, %v1395
    %v1397 = vpop.f32.mrf.mxu0
    %1398 = vdwg.mxu0
    %v1402 = vunpack.c.l.b16 %v1226
    %v1403 = vunpack.c.l.b16 %v1227
    %v1404 = vunpack.c.l.b16 %v1228
    %v1405 = vpack.c.b16 %v1403, %v1402
    %v1406 = vpack.c.b16 %v1404, %v1404
    %1407 = vrot.lane.b32.xlu0 %v770, 64
    %v1408 = vpop.permute.xlu0 %1407
    %1409 = vrot.lane.b32.xlu0 %v771, 64
    %v1410 = vpop.permute.xlu0 %1409
    %v1413 = vsel %vm923, %v1405, 0
    %v1416 = vsel %vm923, %v1406, 0
    %v1419 = vsel %vm1257, %v1410, 0
    %1421 = vmatpush.bf16.msra.mxu0 0
    %1422 = vmatpush.bf16.msra.mxu0 0
    %1423 = vmatpush.bf16.msra.mxu0 0
    %1424 = vmatpush.bf16.msra.mxu0 0
    %1425 = vmatpush.bf16.msra.mxu0 0
    %1426 = vmatpush.bf16.msra.mxu0 0
    %1427 = vmatpush.bf16.msra.mxu0 %v1419
    %1428 = vmatpush.bf16.msra.mxu0 %v1408
    %1429 = vmatmul.bf16.gmra.mxu0 %v1413
    %v1430 = vpop.f32.mrf.mxu0
    %v1431 = vadd.f32 0.0, %v1430
    %v1432 = vpop.f32.mrf.mxu0
    %v1433 = vadd.f32 0.0, %v1432
    %1434 = vmatmul.bf16.gmra.mxu0 %v1416
    %v1435 = vpop.f32.mrf.mxu0
    %v1436 = vadd.f32 0.0, %v1435
    %v1437 = vpop.f32.mrf.mxu0
    %1438 = vdwg.mxu0
    %v1442 = vunpack.c.l.b16 %v1229
    %v1443 = vunpack.c.l.b16 %v1230
    %v1444 = vunpack.c.l.b16 %v1231
    %v1445 = vpack.c.b16 %v1443, %v1442
    %v1446 = vpack.c.b16 %v1444, %v1444
    %1447 = vrot.lane.b32.xlu0 %v809, 64
    %v1448 = vpop.permute.xlu0 %1447
    %1449 = vrot.lane.b32.xlu0 %v810, 64
    %v1450 = vpop.permute.xlu0 %1449
    %v1453 = vsel %vm923, %v1445, 0
    %v1456 = vsel %vm923, %v1446, 0
    %v1459 = vsel %vm1257, %v1450, 0
    %1461 = vmatpush.bf16.msra.mxu0 0
    %1462 = vmatpush.bf16.msra.mxu0 0
    %1463 = vmatpush.bf16.msra.mxu0 0
    %1464 = vmatpush.bf16.msra.mxu0 0
    %1465 = vmatpush.bf16.msra.mxu0 0
    %1466 = vmatpush.bf16.msra.mxu0 0
    %1467 = vmatpush.bf16.msra.mxu0 %v1459
    %1468 = vmatpush.bf16.msra.mxu0 %v1448
    %1469 = vmatmul.bf16.gmra.mxu0 %v1453
    %v1470 = vpop.f32.mrf.mxu0
    %v1471 = vadd.f32 0.0, %v1470
    %v1472 = vpop.f32.mrf.mxu0
    %v1473 = vadd.f32 0.0, %v1472
    %1474 = vmatmul.bf16.gmra.mxu0 %v1456
    %v1475 = vpop.f32.mrf.mxu0
    %v1476 = vadd.f32 0.0, %v1475
    %v1477 = vpop.f32.mrf.mxu0
    %1478 = vdwg.mxu0
    %v1482 = vunpack.c.l.b16 %v1232
    %v1483 = vunpack.c.l.b16 %v1233
    %v1484 = vunpack.c.l.b16 %v1234
    %v1485 = vpack.c.b16 %v1483, %v1482
    %v1486 = vpack.c.b16 %v1484, %v1484
    %1487 = vrot.lane.b32.xlu0 %v848, 64
    %v1488 = vpop.permute.xlu0 %1487
    %1489 = vrot.lane.b32.xlu0 %v849, 64
    %v1490 = vpop.permute.xlu0 %1489
    %v1493 = vsel %vm923, %v1485, 0
    %v1496 = vsel %vm923, %v1486, 0
    %v1499 = vsel %vm1257, %v1490, 0
    %1501 = vmatpush.bf16.msra.mxu0 0
    %1502 = vmatpush.bf16.msra.mxu0 0
    %1503 = vmatpush.bf16.msra.mxu0 0
    %1504 = vmatpush.bf16.msra.mxu0 0
    %1505 = vmatpush.bf16.msra.mxu0 0
    %1506 = vmatpush.bf16.msra.mxu0 0
    %1507 = vmatpush.bf16.msra.mxu0 %v1499
    %1508 = vmatpush.bf16.msra.mxu0 %v1488
    %1509 = vmatmul.bf16.gmra.mxu0 %v1493
    %v1510 = vpop.f32.mrf.mxu0
    %v1511 = vadd.f32 0.0, %v1510
    %v1512 = vpop.f32.mrf.mxu0
    %v1513 = vadd.f32 0.0, %v1512
    %1514 = vmatmul.bf16.gmra.mxu0 %v1496
    %v1515 = vpop.f32.mrf.mxu0
    %v1516 = vadd.f32 0.0, %v1515
    %v1517 = vpop.f32.mrf.mxu0
    %1518 = vdwg.mxu0
    %v1522 = vunpack.c.l.b16 %v1235
    %v1523 = vunpack.c.l.b16 %v1236
    %v1524 = vunpack.c.l.b16 %v1237
    %v1525 = vpack.c.b16 %v1523, %v1522
    %v1526 = vpack.c.b16 %v1524, %v1524
    %1527 = vrot.lane.b32.xlu0 %v887, 64
    %v1528 = vpop.permute.xlu0 %1527
    %1529 = vrot.lane.b32.xlu0 %v888, 64
    %v1530 = vpop.permute.xlu0 %1529
    %v1533 = vsel %vm923, %v1525, 0
    %v1536 = vsel %vm923, %v1526, 0
    %v1539 = vsel %vm1257, %v1530, 0
    %1541 = vmatpush.bf16.msra.mxu0 0
    %1542 = vmatpush.bf16.msra.mxu0 0
    %1543 = vmatpush.bf16.msra.mxu0 0
    %1544 = vmatpush.bf16.msra.mxu0 0
    %1545 = vmatpush.bf16.msra.mxu0 0
    %1546 = vmatpush.bf16.msra.mxu0 0
    %1547 = vmatpush.bf16.msra.mxu0 %v1539
    %1548 = vmatpush.bf16.msra.mxu0 %v1528
    %1549 = vmatmul.bf16.gmra.mxu0 %v1533
    %v1550 = vpop.f32.mrf.mxu0
    %v1551 = vadd.f32 0.0, %v1550
    %v1552 = vpop.f32.mrf.mxu0
    %v1553 = vadd.f32 0.0, %v1552
    %1554 = vmatmul.bf16.gmra.mxu0 %v1536
    %v1555 = vpop.f32.mrf.mxu0
    %v1556 = vadd.f32 0.0, %v1555
    %v1557 = vpop.f32.mrf.mxu0
    %1558 = vdwg.mxu0
    %1565 = vrot.lane.b32.xlu0 %v1351, 8
    %v1566 = vpop.permute.xlu0 %1565
    %1567 = vrot.lane.b32.xlu0 %v1353, 8
    %v1568 = vpop.permute.xlu0 %1567
    %1569 = vrot.lane.b32.xlu0 %v1356, 8
    %v1570 = vpop.permute.xlu0 %1569
    %1571 = vrot.lane.b32.xlu0 %v1391, 8
    %v1572 = vpop.permute.xlu0 %1571
    %1573 = vrot.lane.b32.xlu0 %v1393, 8
    %v1574 = vpop.permute.xlu0 %1573
    %1575 = vrot.lane.b32.xlu0 %v1396, 8
    %v1576 = vpop.permute.xlu0 %1575
    %1589 = vrot.lane.b32.xlu0 %v1431, 16
    %v1590 = vpop.permute.xlu0 %1589
    %1591 = vrot.lane.b32.xlu0 %v1433, 16
    %v1592 = vpop.permute.xlu0 %1591
    %1593 = vrot.lane.b32.xlu0 %v1436, 16
    %v1594 = vpop.permute.xlu0 %1593
    %1595 = vrot.lane.b32.xlu0 %v1471, 16
    %v1596 = vpop.permute.xlu0 %1595
    %1597 = vrot.lane.b32.xlu0 %v1473, 16
    %v1598 = vpop.permute.xlu0 %1597
    %1599 = vrot.lane.b32.xlu0 %v1476, 16
    %v1600 = vpop.permute.xlu0 %1599
    %1613 = vrot.lane.b32.xlu0 %v1511, 24
    %v1614 = vpop.permute.xlu0 %1613
    %1615 = vrot.lane.b32.xlu0 %v1513, 24
    %v1616 = vpop.permute.xlu0 %1615
    %1617 = vrot.lane.b32.xlu0 %v1516, 24
    %v1618 = vpop.permute.xlu0 %1617
    %1619 = vrot.lane.b32.xlu0 %v1551, 24
    %v1620 = vpop.permute.xlu0 %1619
    %1621 = vrot.lane.b32.xlu0 %v1553, 24
    %v1622 = vpop.permute.xlu0 %1621
    %1623 = vrot.lane.b32.xlu0 %v1556, 24
    %v1624 = vpop.permute.xlu0 %1623
    %v1631 = vsel %vm619, %v1271, %v1566
    %v1632 = vsel %vm619, %v1273, %v1568
    %v1633 = vsel %vm619, %v1276, %v1570
    %v1634 = vsel %vm619, %v1311, %v1572
    %v1635 = vsel %vm619, %v1313, %v1574
    %v1636 = vsel %vm619, %v1316, %v1576
    %vm1637 = vcmask 130048
    %v1638 = vsel %vm1637, %v1631, %v1590
    %v1639 = vsel %vm1637, %v1632, %v1592
    %v1640 = vsel %vm1637, %v1633, %v1594
    %v1641 = vsel %vm1637, %v1634, %v1596
    %v1642 = vsel %vm1637, %v1635, %v1598
    %v1643 = vsel %vm1637, %v1636, %v1600
    %v1644 = vsel %vm923, %v1638, %v1614
    %v1645 = vsel %vm923, %v1639, %v1616
    %v1646 = vsel %vm923, %v1640, %v1618
    %v1647 = vsel %vm923, %v1641, %v1620
    %v1648 = vsel %vm923, %v1642, %v1622
    %v1649 = vsel %vm923, %v1643, %v1624
    %v1650 = vpack.c.bf16 %v1645, %v1644
    %v1651 = vpack.c.bf16 %v1647, %v1646
    %v1652 = vpack.c.bf16 %v1649, %v1648
    %v1653 = vld [vmem:[%s12] sm:$0xf]
    %v1654 = vld [vmem:[%s12 + $0x4] sm:$0xf]
    %v1655 = vld [vmem:[%s12 + $0x8] sm:$0xf]
    %v1656 = vld [vmem:[%s12 + $0xc] sm:$0xf]
    %v1657 = vld [vmem:[%s13] sm:$0x1]
    %v1659 = vperm.slane %v1657, 0
    %v1665 = vunpack.c.l.b16 %v1653
    %v1666 = vunpack.c.l.b16 %v1654
    %v1667 = vunpack.c.l.b16 %v1655
    %v1668 = vunpack.c.l.b16 %v1656
    %v1669 = vpack.c.b16 %v1666, %v1665
    %v1670 = vpack.c.b16 %v1668, %v1667
    %v1674 = vsel %vm258, %v1650, 0
    %v1677 = vsel %vm258, %v1651, 0
    %v1680 = vsel %vm258, %v1652, 0
    %1682 = vmatpush.bf16.msra.mxu0 0
    %1683 = vmatpush.bf16.msra.mxu0 0
    %1684 = vmatpush.bf16.msra.mxu0 0
    %1685 = vmatpush.bf16.msra.mxu0 0
    %1686 = vmatpush.bf16.msra.mxu0 0
    %1687 = vmatpush.bf16.msra.mxu0 0
    %1688 = vmatpush.bf16.msra.mxu0 %v1670
    %1689 = vmatpush.bf16.msra.mxu0 %v1669
    %1690 = vmatmul.bf16.gmra.mxu0 %v1674
    %v1691 = vpop.f32.mrf.mxu0
    %v1692 = vadd.f32 %v1659, %v1691
    %v1693 = vpop.f32.mrf.mxu0
    %v1694 = vadd.f32 %v1659, %v1693
    %1695 = vmatmul.bf16.gmra.mxu0 %v1677
    %v1696 = vpop.f32.mrf.mxu0
    %v1697 = vadd.f32 %v1659, %v1696
    %v1698 = vpop.f32.mrf.mxu0
    %v1699 = vadd.f32 %v1659, %v1698
    %1700 = vmatmul.bf16.gmra.mxu0 %v1680
    %v1701 = vpop.f32.mrf.mxu0
    %v1702 = vadd.f32 %v1659, %v1701
    %v1703 = vpop.f32.mrf.mxu0
    %v1704 = vadd.f32 %v1659, %v1703
    %1705 = vdwg.mxu0
    %v1706 = vadd.f32 %v1692, %v376
    %v1707 = vadd.f32 %v1694, %v370
    %v1708 = vadd.f32 %v1697, %v371
    %v1709 = vadd.f32 %v1699, %v376
    %v1710 = vadd.f32 %v1702, %v372
    %v1711 = vadd.f32 %v1704, %v373
    %v1712 = vld [vmem:[%s14] sm:$0x1]
    %v1713 = vld [vmem:[%s15] sm:$0x1]
    %v1714 = vsel %vm258, %v1706, 0.0
    %1715 = vadd.xlane.f32.xlu0 %v1714
    %v1716 = vpop.xlane.xlu0 %1715
    %v1717 = vsel %vm258, %v1707, 0.0
    %1718 = vadd.xlane.f32.xlu0 %v1717
    %v1719 = vpop.xlane.xlu0 %1718
    %v1720 = vsel %vm258, %v1708, 0.0
    %1721 = vadd.xlane.f32.xlu0 %v1720
    %v1722 = vpop.xlane.xlu0 %1721
    %v1723 = vsel %vm258, %v1709, 0.0
    %1724 = vadd.xlane.f32.xlu0 %v1723
    %v1725 = vpop.xlane.xlu0 %1724
    %v1726 = vsel %vm258, %v1710, 0.0
    %1727 = vadd.xlane.f32.xlu0 %v1726
    %v1728 = vpop.xlane.xlu0 %1727
    %v1729 = vsel %vm258, %v1711, 0.0
    %1730 = vadd.xlane.f32.xlu0 %v1729
    %v1731 = vpop.xlane.xlu0 %1730
    %v1732 = vmul.f32 %v1716, %v277
    %v1733 = vmul.f32 %v1719, %v277
    %v1734 = vmul.f32 %v1722, %v277
    %v1735 = vmul.f32 %v1725, %v277
    %v1736 = vmul.f32 %v1728, %v277
    %v1737 = vmul.f32 %v1731, %v277
    %v1738 = vsub.f32 %v1706, %v1732
    %v1739 = vsub.f32 %v1707, %v1733
    %v1740 = vsub.f32 %v1708, %v1734
    %v1741 = vsub.f32 %v1709, %v1735
    %v1742 = vsub.f32 %v1710, %v1736
    %v1743 = vsub.f32 %v1711, %v1737
    %v1744 = vmul.f32 %v1738, %v1738
    %v1745 = vmul.f32 %v1739, %v1739
    %v1746 = vmul.f32 %v1740, %v1740
    %v1747 = vmul.f32 %v1741, %v1741
    %v1748 = vmul.f32 %v1742, %v1742
    %v1749 = vmul.f32 %v1743, %v1743
    %v1750 = vsel %vm258, %v1744, 0.0
    %1751 = vadd.xlane.f32.xlu0 %v1750
    %v1752 = vpop.xlane.xlu0 %1751
    %v1753 = vsel %vm258, %v1745, 0.0
    %1754 = vadd.xlane.f32.xlu0 %v1753
    %v1755 = vpop.xlane.xlu0 %1754
    %v1756 = vsel %vm258, %v1746, 0.0
    %1757 = vadd.xlane.f32.xlu0 %v1756
    %v1758 = vpop.xlane.xlu0 %1757
    %v1759 = vsel %vm258, %v1747, 0.0
    %1760 = vadd.xlane.f32.xlu0 %v1759
    %v1761 = vpop.xlane.xlu0 %1760
    %v1762 = vsel %vm258, %v1748, 0.0
    %1763 = vadd.xlane.f32.xlu0 %v1762
    %v1764 = vpop.xlane.xlu0 %1763
    %v1765 = vsel %vm258, %v1749, 0.0
    %1766 = vadd.xlane.f32.xlu0 %v1765
    %v1767 = vpop.xlane.xlu0 %1766
    %v1768 = vmul.f32 %v1752, %v277
    %v1769 = vmul.f32 %v1755, %v277
    %v1770 = vmul.f32 %v1758, %v277
    %v1771 = vmul.f32 %v1761, %v277
    %v1772 = vmul.f32 %v1764, %v277
    %v1773 = vmul.f32 %v1767, %v277
    %v1774 = vadd.f32 %v1768, 1e-05
    %v1775 = vadd.f32 %v1769, 1e-05
    %v1776 = vadd.f32 %v1770, 1e-05
    %v1777 = vadd.f32 %v1771, 1e-05
    %v1778 = vadd.f32 %v1772, 1e-05
    %v1779 = vadd.f32 %v1773, 1e-05
    %v1780 = vrsqrt.pop %v1774
    %v1781 = vmul.f32 %v1780, %v1774
    %v1782 = vmul.f32 %v1781, %v1780
    %v1783 = vmul.f32 0.5, %v1782
    %v1784 = vsub.f32 1.5, %v1783
    %v1785 = vmul.f32 %v1780, %v1784
    %vm1786 = vweird.f32 %v1774
    %vm1787 = vweird.f32 %v1780
    %vm1788 = vmor %vm1786, %vm1787
    %v1789 = vsel %vm1788, %v1780, %v1785
    %v1790 = vrsqrt.pop %v1775
    %v1791 = vmul.f32 %v1790, %v1775
    %v1792 = vmul.f32 %v1791, %v1790
    %v1793 = vmul.f32 0.5, %v1792
    %v1794 = vsub.f32 1.5, %v1793
    %v1795 = vmul.f32 %v1790, %v1794
    %vm1796 = vweird.f32 %v1775
    %vm1797 = vweird.f32 %v1790
    %vm1798 = vmor %vm1796, %vm1797
    %v1799 = vsel %vm1798, %v1790, %v1795
    %v1800 = vrsqrt.pop %v1776
    %v1801 = vmul.f32 %v1800, %v1776
    %v1802 = vmul.f32 %v1801, %v1800
    %v1803 = vmul.f32 0.5, %v1802
    %v1804 = vsub.f32 1.5, %v1803
    %v1805 = vmul.f32 %v1800, %v1804
    %vm1806 = vweird.f32 %v1776
    %vm1807 = vweird.f32 %v1800
    %vm1808 = vmor %vm1806, %vm1807
    %v1809 = vsel %vm1808, %v1800, %v1805
    %v1810 = vrsqrt.pop %v1777
    %v1811 = vmul.f32 %v1810, %v1777
    %v1812 = vmul.f32 %v1811, %v1810
    %v1813 = vmul.f32 0.5, %v1812
    %v1814 = vsub.f32 1.5, %v1813
    %v1815 = vmul.f32 %v1810, %v1814
    %vm1816 = vweird.f32 %v1777
    %vm1817 = vweird.f32 %v1810
    %vm1818 = vmor %vm1816, %vm1817
    %v1819 = vsel %vm1818, %v1810, %v1815
    %v1820 = vrsqrt.pop %v1778
    %v1821 = vmul.f32 %v1820, %v1778
    %v1822 = vmul.f32 %v1821, %v1820
    %v1823 = vmul.f32 0.5, %v1822
    %v1824 = vsub.f32 1.5, %v1823
    %v1825 = vmul.f32 %v1820, %v1824
    %vm1826 = vweird.f32 %v1778
    %vm1827 = vweird.f32 %v1820
    %vm1828 = vmor %vm1826, %vm1827
    %v1829 = vsel %vm1828, %v1820, %v1825
    %v1830 = vrsqrt.pop %v1779
    %v1831 = vmul.f32 %v1830, %v1779
    %v1832 = vmul.f32 %v1831, %v1830
    %v1833 = vmul.f32 0.5, %v1832
    %v1834 = vsub.f32 1.5, %v1833
    %v1835 = vmul.f32 %v1830, %v1834
    %vm1836 = vweird.f32 %v1779
    %vm1837 = vweird.f32 %v1830
    %vm1838 = vmor %vm1836, %vm1837
    %v1839 = vsel %vm1838, %v1830, %v1835
    %v1840 = vmul.f32 %v1738, %v1789
    %v1841 = vmul.f32 %v1739, %v1799
    %v1842 = vmul.f32 %v1740, %v1809
    %v1843 = vmul.f32 %v1741, %v1819
    %v1844 = vmul.f32 %v1742, %v1829
    %v1845 = vmul.f32 %v1743, %v1839
    %v1847 = vperm.slane %v1712, 0
    %v1849 = vmul.f32 %v1840, %v1847
    %v1850 = vmul.f32 %v1841, %v1847
    %v1851 = vmul.f32 %v1842, %v1847
    %v1852 = vmul.f32 %v1843, %v1847
    %v1853 = vmul.f32 %v1844, %v1847
    %v1854 = vmul.f32 %v1845, %v1847
    %v1856 = vperm.slane %v1713, 0
    %v1858 = vadd.f32 %v1849, %v1856
    %v1859 = vadd.f32 %v1850, %v1856
    %v1860 = vadd.f32 %v1851, %v1856
    %v1861 = vadd.f32 %v1852, %v1856
    %v1862 = vadd.f32 %v1853, %v1856
    %v1863 = vadd.f32 %v1854, %v1856
    %v1864 = vpack.c.bf16 %v1859, %v1858
    %v1865 = vpack.c.bf16 %v1861, %v1860
    %v1866 = vpack.c.bf16 %v1863, %v1862
    %v1867 = vld [vmem:[%s16] sm:$0xf]
    %v1868 = vld [vmem:[%s16 + $0x4] sm:$0xf]
    %v1869 = vld [vmem:[%s16 + $0x8] sm:$0xf]
    %v1870 = vld [vmem:[%s16 + $0xc] sm:$0xf]
    %v1871 = vld [vmem:[%s17] sm:$0x1]
    %v1873 = vperm.slane %v1871, 0
    %v1879 = vunpack.c.l.b16 %v1867
    %v1880 = vunpack.c.l.b16 %v1868
    %v1881 = vunpack.c.l.b16 %v1869
    %v1882 = vunpack.c.l.b16 %v1870
    %v1883 = vpack.c.b16 %v1880, %v1879
    %v1884 = vpack.c.b16 %v1882, %v1881
    %v1888 = vsel %vm258, %v1864, 0
    %v1891 = vsel %vm258, %v1865, 0
    %v1894 = vsel %vm258, %v1866, 0
    %1896 = vmatpush.bf16.msra.mxu0 0
    %1897 = vmatpush.bf16.msra.mxu0 0
    %1898 = vmatpush.bf16.msra.mxu0 0
    %1899 = vmatpush.bf16.msra.mxu0 0
    %1900 = vmatpush.bf16.msra.mxu0 0
    %1901 = vmatpush.bf16.msra.mxu0 0
    %1902 = vmatpush.bf16.msra.mxu0 %v1884
    %1903 = vmatpush.bf16.msra.mxu0 %v1883
    %1904 = vmatmul.bf16.gmra.mxu0 %v1888
    %v1905 = vpop.f32.mrf.mxu0
    %v1906 = vadd.f32 %v1873, %v1905
    %v1907 = vpop.f32.mrf.mxu0
    %v1908 = vadd.f32 %v1873, %v1907
    %1909 = vmatmul.bf16.gmra.mxu0 %v1891
    %v1910 = vpop.f32.mrf.mxu0
    %v1911 = vadd.f32 %v1873, %v1910
    %v1912 = vpop.f32.mrf.mxu0
    %v1913 = vadd.f32 %v1873, %v1912
    %1914 = vmatmul.bf16.gmra.mxu0 %v1894
    %v1915 = vpop.f32.mrf.mxu0
    %v1916 = vadd.f32 %v1873, %v1915
    %v1917 = vpop.f32.mrf.mxu0
    %v1918 = vadd.f32 %v1873, %v1917
    %1919 = vdwg.mxu0
    %v1920 = vmul.f32 %v1906, 0.5
    %v1921 = vmul.f32 %v1908, 0.5
    %v1922 = vmul.f32 %v1911, 0.5
    %v1923 = vmul.f32 %v1913, 0.5
    %v1924 = vmul.f32 %v1916, 0.5
    %v1925 = vmul.f32 %v1918, 0.5
    %v1926 = vmul.f32 %v1906, 0.70710677
    %v1927 = vmul.f32 %v1908, 0.70710677
    %v1928 = vmul.f32 %v1911, 0.70710677
    %v1929 = vmul.f32 %v1913, 0.70710677
    %v1930 = vmul.f32 %v1916, 0.70710677
    %v1931 = vmul.f32 %v1918, 0.70710677
    %v1932 = vmul.f32 %v1926, %v1926
    %v1933 = vmin.f32 16.0, %v1932
    %v1934 = vmul.f32 %v1933, 2.1237322e-06
    %v1935 = vadd.f32 %v1934, 0.00028619796
    %v1936 = vmul.f32 %v1933, %v1935
    %v1937 = vadd.f32 %v1936, 0.0036580483
    %v1938 = vmul.f32 %v1933, %v1937
    %v1939 = vadd.f32 %v1938, 0.05243302
    %v1940 = vmul.f32 %v1933, %v1939
    %v1941 = vadd.f32 %v1940, 0.18741608
    %v1942 = vmul.f32 %v1933, %v1941
    %v1943 = vadd.f32 %v1942, 1.1283791
    %v1944 = vmul.f32 %v1926, %v1943
    %v1945 = vmul.f32 %v1933, 3.8918573e-05
    %v1946 = vadd.f32 %v1945, 0.001143296
    %v1947 = vmul.f32 %v1933, %v1946
    %v1948 = vadd.f32 %v1947, 0.014752088
    %v1949 = vmul.f32 %v1933, %v1948
    %v1950 = vadd.f32 %v1949, 0.112945676
    %v1951 = vmul.f32 %v1933, %v1950
    %v1952 = vadd.f32 %v1951, 0.4994258
    %v1953 = vmul.f32 %v1933, %v1952
    %v1954 = vadd.f32 %v1953, 1.0
    %v1955 = vrcp.pop %v1954
    %v1956 = vmul.f32 %v1954, %v1955
    %v1957 = vsub.f32 1.0, %v1956
    %v1958 = vmul.f32 %v1955, %v1957
    %v1959 = vadd.f32 %v1955, %v1958
    %vm1960 = vweird.f32 %v1954
    %vm1961 = vweird.f32 %v1955
    %vm1962 = vmor %vm1960, %vm1961
    %v1963 = vsel %vm1962, %v1955, %v1959
    %v1964 = vand.u32 2147483647, %v1954
    %vm1965 = vcmp.eq.f32.partialorder %v1964, 8.507059e+37
    %v1966 = vand.u32 %v1954, 2147483648
    %v1967 = vor.u32 1.1754944e-38, %v1966
    %v1968 = vsel %vm1965, %v1967, %v1963
    %v1969 = vmul.f32 %v1944, %v1968
    %v1970 = vmin.f32 %v1969, 1.0
    %v1971 = vmax.f32 %v1970, -1.0
    %v1972 = vmul.f32 %v1927, %v1927
    %v1973 = vmin.f32 16.0, %v1972
    %v1974 = vmul.f32 %v1973, 2.1237322e-06
    %v1975 = vadd.f32 %v1974, 0.00028619796
    %v1976 = vmul.f32 %v1973, %v1975
    %v1977 = vadd.f32 %v1976, 0.0036580483
    %v1978 = vmul.f32 %v1973, %v1977
    %v1979 = vadd.f32 %v1978, 0.05243302
    %v1980 = vmul.f32 %v1973, %v1979
    %v1981 = vadd.f32 %v1980, 0.18741608
    %v1982 = vmul.f32 %v1973, %v1981
    %v1983 = vadd.f32 %v1982, 1.1283791
    %v1984 = vmul.f32 %v1927, %v1983
    %v1985 = vmul.f32 %v1973, 3.8918573e-05
    %v1986 = vadd.f32 %v1985, 0.001143296
    %v1987 = vmul.f32 %v1973, %v1986
    %v1988 = vadd.f32 %v1987, 0.014752088
    %v1989 = vmul.f32 %v1973, %v1988
    %v1990 = vadd.f32 %v1989, 0.112945676
    %v1991 = vmul.f32 %v1973, %v1990
    %v1992 = vadd.f32 %v1991, 0.4994258
    %v1993 = vmul.f32 %v1973, %v1992
    %v1994 = vadd.f32 %v1993, 1.0
    %v1995 = vrcp.pop %v1994
    %v1996 = vmul.f32 %v1994, %v1995
    %v1997 = vsub.f32 1.0, %v1996
    %v1998 = vmul.f32 %v1995, %v1997
    %v1999 = vadd.f32 %v1995, %v1998
    %vm2000 = vweird.f32 %v1994
    %vm2001 = vweird.f32 %v1995
    %vm2002 = vmor %vm2000, %vm2001
    %v2003 = vsel %vm2002, %v1995, %v1999
    %v2004 = vand.u32 2147483647, %v1994
    %vm2005 = vcmp.eq.f32.partialorder %v2004, 8.507059e+37
    %v2006 = vand.u32 %v1994, 2147483648
    %v2007 = vor.u32 1.1754944e-38, %v2006
    %v2008 = vsel %vm2005, %v2007, %v2003
    %v2009 = vmul.f32 %v1984, %v2008
    %v2010 = vmin.f32 %v2009, 1.0
    %v2011 = vmax.f32 %v2010, -1.0
    %v2012 = vmul.f32 %v1928, %v1928
    %v2013 = vmin.f32 16.0, %v2012
    %v2014 = vmul.f32 %v2013, 2.1237322e-06
    %v2015 = vadd.f32 %v2014, 0.00028619796
    %v2016 = vmul.f32 %v2013, %v2015
    %v2017 = vadd.f32 %v2016, 0.0036580483
    %v2018 = vmul.f32 %v2013, %v2017
    %v2019 = vadd.f32 %v2018, 0.05243302
    %v2020 = vmul.f32 %v2013, %v2019
    %v2021 = vadd.f32 %v2020, 0.18741608
    %v2022 = vmul.f32 %v2013, %v2021
    %v2023 = vadd.f32 %v2022, 1.1283791
    %v2024 = vmul.f32 %v1928, %v2023
    %v2025 = vmul.f32 %v2013, 3.8918573e-05
    %v2026 = vadd.f32 %v2025, 0.001143296
    %v2027 = vmul.f32 %v2013, %v2026
    %v2028 = vadd.f32 %v2027, 0.014752088
    %v2029 = vmul.f32 %v2013, %v2028
    %v2030 = vadd.f32 %v2029, 0.112945676
    %v2031 = vmul.f32 %v2013, %v2030
    %v2032 = vadd.f32 %v2031, 0.4994258
    %v2033 = vmul.f32 %v2013, %v2032
    %v2034 = vadd.f32 %v2033, 1.0
    %v2035 = vrcp.pop %v2034
    %v2036 = vmul.f32 %v2034, %v2035
    %v2037 = vsub.f32 1.0, %v2036
    %v2038 = vmul.f32 %v2035, %v2037
    %v2039 = vadd.f32 %v2035, %v2038
    %vm2040 = vweird.f32 %v2034
    %vm2041 = vweird.f32 %v2035
    %vm2042 = vmor %vm2040, %vm2041
    %v2043 = vsel %vm2042, %v2035, %v2039
    %v2044 = vand.u32 2147483647, %v2034
    %vm2045 = vcmp.eq.f32.partialorder %v2044, 8.507059e+37
    %v2046 = vand.u32 %v2034, 2147483648
    %v2047 = vor.u32 1.1754944e-38, %v2046
    %v2048 = vsel %vm2045, %v2047, %v2043
    %v2049 = vmul.f32 %v2024, %v2048
    %v2050 = vmin.f32 %v2049, 1.0
    %v2051 = vmax.f32 %v2050, -1.0
    %v2052 = vmul.f32 %v1929, %v1929
    %v2053 = vmin.f32 16.0, %v2052
    %v2054 = vmul.f32 %v2053, 2.1237322e-06
    %v2055 = vadd.f32 %v2054, 0.00028619796
    %v2056 = vmul.f32 %v2053, %v2055
    %v2057 = vadd.f32 %v2056, 0.0036580483
    %v2058 = vmul.f32 %v2053, %v2057
    %v2059 = vadd.f32 %v2058, 0.05243302
    %v2060 = vmul.f32 %v2053, %v2059
    %v2061 = vadd.f32 %v2060, 0.18741608
    %v2062 = vmul.f32 %v2053, %v2061
    %v2063 = vadd.f32 %v2062, 1.1283791
    %v2064 = vmul.f32 %v1929, %v2063
    %v2065 = vmul.f32 %v2053, 3.8918573e-05
    %v2066 = vadd.f32 %v2065, 0.001143296
    %v2067 = vmul.f32 %v2053, %v2066
    %v2068 = vadd.f32 %v2067, 0.014752088
    %v2069 = vmul.f32 %v2053, %v2068
    %v2070 = vadd.f32 %v2069, 0.112945676
    %v2071 = vmul.f32 %v2053, %v2070
    %v2072 = vadd.f32 %v2071, 0.4994258
    %v2073 = vmul.f32 %v2053, %v2072
    %v2074 = vadd.f32 %v2073, 1.0
    %v2075 = vrcp.pop %v2074
    %v2076 = vmul.f32 %v2074, %v2075
    %v2077 = vsub.f32 1.0, %v2076
    %v2078 = vmul.f32 %v2075, %v2077
    %v2079 = vadd.f32 %v2075, %v2078
    %vm2080 = vweird.f32 %v2074
    %vm2081 = vweird.f32 %v2075
    %vm2082 = vmor %vm2080, %vm2081
    %v2083 = vsel %vm2082, %v2075, %v2079
    %v2084 = vand.u32 2147483647, %v2074
    %vm2085 = vcmp.eq.f32.partialorder %v2084, 8.507059e+37
    %v2086 = vand.u32 %v2074, 2147483648
    %v2087 = vor.u32 1.1754944e-38, %v2086
    %v2088 = vsel %vm2085, %v2087, %v2083
    %v2089 = vmul.f32 %v2064, %v2088
    %v2090 = vmin.f32 %v2089, 1.0
    %v2091 = vmax.f32 %v2090, -1.0
    %v2092 = vmul.f32 %v1930, %v1930
    %v2093 = vmin.f32 16.0, %v2092
    %v2094 = vmul.f32 %v2093, 2.1237322e-06
    %v2095 = vadd.f32 %v2094, 0.00028619796
    %v2096 = vmul.f32 %v2093, %v2095
    %v2097 = vadd.f32 %v2096, 0.0036580483
    %v2098 = vmul.f32 %v2093, %v2097
    %v2099 = vadd.f32 %v2098, 0.05243302
    %v2100 = vmul.f32 %v2093, %v2099
    %v2101 = vadd.f32 %v2100, 0.18741608
    %v2102 = vmul.f32 %v2093, %v2101
    %v2103 = vadd.f32 %v2102, 1.1283791
    %v2104 = vmul.f32 %v1930, %v2103
    %v2105 = vmul.f32 %v2093, 3.8918573e-05
    %v2106 = vadd.f32 %v2105, 0.001143296
    %v2107 = vmul.f32 %v2093, %v2106
    %v2108 = vadd.f32 %v2107, 0.014752088
    %v2109 = vmul.f32 %v2093, %v2108
    %v2110 = vadd.f32 %v2109, 0.112945676
    %v2111 = vmul.f32 %v2093, %v2110
    %v2112 = vadd.f32 %v2111, 0.4994258
    %v2113 = vmul.f32 %v2093, %v2112
    %v2114 = vadd.f32 %v2113, 1.0
    %v2115 = vrcp.pop %v2114
    %v2116 = vmul.f32 %v2114, %v2115
    %v2117 = vsub.f32 1.0, %v2116
    %v2118 = vmul.f32 %v2115, %v2117
    %v2119 = vadd.f32 %v2115, %v2118
    %vm2120 = vweird.f32 %v2114
    %vm2121 = vweird.f32 %v2115
    %vm2122 = vmor %vm2120, %vm2121
    %v2123 = vsel %vm2122, %v2115, %v2119
    %v2124 = vand.u32 2147483647, %v2114
    %vm2125 = vcmp.eq.f32.partialorder %v2124, 8.507059e+37
    %v2126 = vand.u32 %v2114, 2147483648
    %v2127 = vor.u32 1.1754944e-38, %v2126
    %v2128 = vsel %vm2125, %v2127, %v2123
    %v2129 = vmul.f32 %v2104, %v2128
    %v2130 = vmin.f32 %v2129, 1.0
    %v2131 = vmax.f32 %v2130, -1.0
    %v2132 = vmul.f32 %v1931, %v1931
    %v2133 = vmin.f32 16.0, %v2132
    %v2134 = vmul.f32 %v2133, 2.1237322e-06
    %v2135 = vadd.f32 %v2134, 0.00028619796
    %v2136 = vmul.f32 %v2133, %v2135
    %v2137 = vadd.f32 %v2136, 0.0036580483
    %v2138 = vmul.f32 %v2133, %v2137
    %v2139 = vadd.f32 %v2138, 0.05243302
    %v2140 = vmul.f32 %v2133, %v2139
    %v2141 = vadd.f32 %v2140, 0.18741608
    %v2142 = vmul.f32 %v2133, %v2141
    %v2143 = vadd.f32 %v2142, 1.1283791
    %v2144 = vmul.f32 %v1931, %v2143
    %v2145 = vmul.f32 %v2133, 3.8918573e-05
    %v2146 = vadd.f32 %v2145, 0.001143296
    %v2147 = vmul.f32 %v2133, %v2146
    %v2148 = vadd.f32 %v2147, 0.014752088
    %v2149 = vmul.f32 %v2133, %v2148
    %v2150 = vadd.f32 %v2149, 0.112945676
    %v2151 = vmul.f32 %v2133, %v2150
    %v2152 = vadd.f32 %v2151, 0.4994258
    %v2153 = vmul.f32 %v2133, %v2152
    %v2154 = vadd.f32 %v2153, 1.0
    %v2155 = vrcp.pop %v2154
    %v2156 = vmul.f32 %v2154, %v2155
    %v2157 = vsub.f32 1.0, %v2156
    %v2158 = vmul.f32 %v2155, %v2157
    %v2159 = vadd.f32 %v2155, %v2158
    %vm2160 = vweird.f32 %v2154
    %vm2161 = vweird.f32 %v2155
    %vm2162 = vmor %vm2160, %vm2161
    %v2163 = vsel %vm2162, %v2155, %v2159
    %v2164 = vand.u32 2147483647, %v2154
    %vm2165 = vcmp.eq.f32.partialorder %v2164, 8.507059e+37
    %v2166 = vand.u32 %v2154, 2147483648
    %v2167 = vor.u32 1.1754944e-38, %v2166
    %v2168 = vsel %vm2165, %v2167, %v2163
    %v2169 = vmul.f32 %v2144, %v2168
    %v2170 = vmin.f32 %v2169, 1.0
    %v2171 = vmax.f32 %v2170, -1.0
    %v2172 = vadd.f32 %v1971, 1.0
    %v2173 = vadd.f32 %v2011, 1.0
    %v2174 = vadd.f32 %v2051, 1.0
    %v2175 = vadd.f32 %v2091, 1.0
    %v2176 = vadd.f32 %v2131, 1.0
    %v2177 = vadd.f32 %v2171, 1.0
    %v2178 = vmul.f32 %v1920, %v2172
    %v2179 = vmul.f32 %v1921, %v2173
    %v2180 = vmul.f32 %v1922, %v2174
    %v2181 = vmul.f32 %v1923, %v2175
    %v2182 = vmul.f32 %v1924, %v2176
    %v2183 = vmul.f32 %v1925, %v2177
    %v2184 = vpack.c.bf16 %v2179, %v2178
    %v2185 = vpack.c.bf16 %v2181, %v2180
    %v2186 = vpack.c.bf16 %v2183, %v2182
    %v2187 = vld [vmem:[%s18] sm:$0xf]
    %v2188 = vld [vmem:[%s18 + $0x4] sm:$0xf]
    %v2189 = vld [vmem:[%s18 + $0x8] sm:$0xf]
    %v2190 = vld [vmem:[%s18 + $0xc] sm:$0xf]
    %v2191 = vld [vmem:[%s18 + $0x10] sm:$0xf]
    %v2192 = vld [vmem:[%s18 + $0x14] sm:$0xf]
    %v2193 = vld [vmem:[%s18 + $0x18] sm:$0xf]
    %v2194 = vld [vmem:[%s18 + $0x1c] sm:$0xf]
    %v2195 = vld [vmem:[%s19] sm:$0x1]
    %v2197 = vperm.slane %v2195, 0
    %v2207 = vunpack.c.l.b16 %v2187
    %v2208 = vunpack.c.l.b16 %v2188
    %v2209 = vunpack.c.l.b16 %v2189
    %v2210 = vunpack.c.l.b16 %v2190
    %v2211 = vunpack.c.l.b16 %v2191
    %v2212 = vunpack.c.l.b16 %v2192
    %v2213 = vunpack.c.l.b16 %v2193
    %v2214 = vunpack.c.l.b16 %v2194
    %v2215 = vpack.c.b16 %v2208, %v2207
    %v2216 = vpack.c.b16 %v2210, %v2209
    %v2217 = vpack.c.b16 %v2212, %v2211
    %v2218 = vpack.c.b16 %v2214, %v2213
    %v2224 = vsel %vm83, %v2184, 0
    %v2227 = vsel %vm83, %v2185, 0
    %v2230 = vsel %vm83, %v2186, 0
    %2232 = vmatpush.bf16.msra.mxu0 0
    %2233 = vmatpush.bf16.msra.mxu0 0
    %2234 = vmatpush.bf16.msra.mxu0 0
    %2235 = vmatpush.bf16.msra.mxu0 0
    %2236 = vmatpush.bf16.msra.mxu0 %v2218
    %2237 = vmatpush.bf16.msra.mxu0 %v2217
    %2238 = vmatpush.bf16.msra.mxu0 %v2216
    %2239 = vmatpush.bf16.msra.mxu0 %v2215
    %2240 = vmatmul.bf16.gmra.mxu0 %v2224
    %v2241 = vpop.f32.mrf.mxu0
    %v2242 = vadd.f32 %v2197, %v2241
    %v2243 = vpop.f32.mrf.mxu0
    %v2244 = vadd.f32 %v2197, %v2243
    %2245 = vmatmul.bf16.gmra.mxu0 %v2227
    %v2246 = vpop.f32.mrf.mxu0
    %v2247 = vadd.f32 %v2197, %v2246
    %v2248 = vpop.f32.mrf.mxu0
    %v2249 = vadd.f32 %v2197, %v2248
    %2250 = vmatmul.bf16.gmra.mxu0 %v2230
    %v2251 = vpop.f32.mrf.mxu0
    %v2252 = vadd.f32 %v2197, %v2251
    %v2253 = vpop.f32.mrf.mxu0
    %v2254 = vadd.f32 %v2197, %v2253
    %2255 = vdwg.mxu0
    %v2256 = vadd.f32 %v2242, %v1706
    %v2257 = vadd.f32 %v2244, %v1707
    %v2258 = vadd.f32 %v2247, %v1708
    %v2259 = vadd.f32 %v2249, %v1709
    %v2260 = vadd.f32 %v2252, %v1710
    %v2261 = vadd.f32 %v2254, %v1711
    %s2262 = scalar_lea.vmem %s9, 1
    %v2263 = vld [vmem:[%s2262] sm:$0x1]
    %s2264 = scalar_lea.vmem %s10, 1
    %v2265 = vld [vmem:[%s2264] sm:$0x1]
    %v2266 = vsel %vm258, %v2256, 0.0
    %2267 = vadd.xlane.f32.xlu0 %v2266
    %v2268 = vpop.xlane.xlu0 %2267
    %v2269 = vsel %vm258, %v2257, 0.0
    %2270 = vadd.xlane.f32.xlu0 %v2269
    %v2271 = vpop.xlane.xlu0 %2270
    %v2272 = vsel %vm258, %v2258, 0.0
    %2273 = vadd.xlane.f32.xlu0 %v2272
    %v2274 = vpop.xlane.xlu0 %2273
    %v2275 = vsel %vm258, %v2259, 0.0
    %2276 = vadd.xlane.f32.xlu0 %v2275
    %v2277 = vpop.xlane.xlu0 %2276
    %v2278 = vsel %vm258, %v2260, 0.0
    %2279 = vadd.xlane.f32.xlu0 %v2278
    %v2280 = vpop.xlane.xlu0 %2279
    %v2281 = vsel %vm258, %v2261, 0.0
    %2282 = vadd.xlane.f32.xlu0 %v2281
    %v2283 = vpop.xlane.xlu0 %2282
    %v2284 = vmul.f32 %v2268, %v277
    %v2285 = vmul.f32 %v2271, %v277
    %v2286 = vmul.f32 %v2274, %v277
    %v2287 = vmul.f32 %v2277, %v277
    %v2288 = vmul.f32 %v2280, %v277
    %v2289 = vmul.f32 %v2283, %v277
    %v2290 = vsub.f32 %v2256, %v2284
    %v2291 = vsub.f32 %v2257, %v2285
    %v2292 = vsub.f32 %v2258, %v2286
    %v2293 = vsub.f32 %v2259, %v2287
    %v2294 = vsub.f32 %v2260, %v2288
    %v2295 = vsub.f32 %v2261, %v2289
    %v2296 = vmul.f32 %v2290, %v2290
    %v2297 = vmul.f32 %v2291, %v2291
    %v2298 = vmul.f32 %v2292, %v2292
    %v2299 = vmul.f32 %v2293, %v2293
    %v2300 = vmul.f32 %v2294, %v2294
    %v2301 = vmul.f32 %v2295, %v2295
    %v2302 = vsel %vm258, %v2296, 0.0
    %2303 = vadd.xlane.f32.xlu0 %v2302
    %v2304 = vpop.xlane.xlu0 %2303
    %v2305 = vsel %vm258, %v2297, 0.0
    %2306 = vadd.xlane.f32.xlu0 %v2305
    %v2307 = vpop.xlane.xlu0 %2306
    %v2308 = vsel %vm258, %v2298, 0.0
    %2309 = vadd.xlane.f32.xlu0 %v2308
    %v2310 = vpop.xlane.xlu0 %2309
    %v2311 = vsel %vm258, %v2299, 0.0
    %2312 = vadd.xlane.f32.xlu0 %v2311
    %v2313 = vpop.xlane.xlu0 %2312
    %v2314 = vsel %vm258, %v2300, 0.0
    %2315 = vadd.xlane.f32.xlu0 %v2314
    %v2316 = vpop.xlane.xlu0 %2315
    %v2317 = vsel %vm258, %v2301, 0.0
    %2318 = vadd.xlane.f32.xlu0 %v2317
    %v2319 = vpop.xlane.xlu0 %2318
    %v2320 = vmul.f32 %v2304, %v277
    %v2321 = vmul.f32 %v2307, %v277
    %v2322 = vmul.f32 %v2310, %v277
    %v2323 = vmul.f32 %v2313, %v277
    %v2324 = vmul.f32 %v2316, %v277
    %v2325 = vmul.f32 %v2319, %v277
    %v2326 = vadd.f32 %v2320, 1e-05
    %v2327 = vadd.f32 %v2321, 1e-05
    %v2328 = vadd.f32 %v2322, 1e-05
    %v2329 = vadd.f32 %v2323, 1e-05
    %v2330 = vadd.f32 %v2324, 1e-05
    %v2331 = vadd.f32 %v2325, 1e-05
    %v2332 = vrsqrt.pop %v2326
    %v2333 = vmul.f32 %v2332, %v2326
    %v2334 = vmul.f32 %v2333, %v2332
    %v2335 = vmul.f32 0.5, %v2334
    %v2336 = vsub.f32 1.5, %v2335
    %v2337 = vmul.f32 %v2332, %v2336
    %vm2338 = vweird.f32 %v2326
    %vm2339 = vweird.f32 %v2332
    %vm2340 = vmor %vm2338, %vm2339
    %v2341 = vsel %vm2340, %v2332, %v2337
    %v2342 = vrsqrt.pop %v2327
    %v2343 = vmul.f32 %v2342, %v2327
    %v2344 = vmul.f32 %v2343, %v2342
    %v2345 = vmul.f32 0.5, %v2344
    %v2346 = vsub.f32 1.5, %v2345
    %v2347 = vmul.f32 %v2342, %v2346
    %vm2348 = vweird.f32 %v2327
    %vm2349 = vweird.f32 %v2342
    %vm2350 = vmor %vm2348, %vm2349
    %v2351 = vsel %vm2350, %v2342, %v2347
    %v2352 = vrsqrt.pop %v2328
    %v2353 = vmul.f32 %v2352, %v2328
    %v2354 = vmul.f32 %v2353, %v2352
    %v2355 = vmul.f32 0.5, %v2354
    %v2356 = vsub.f32 1.5, %v2355
    %v2357 = vmul.f32 %v2352, %v2356
    %vm2358 = vweird.f32 %v2328
    %vm2359 = vweird.f32 %v2352
    %vm2360 = vmor %vm2358, %vm2359
    %v2361 = vsel %vm2360, %v2352, %v2357
    %v2362 = vrsqrt.pop %v2329
    %v2363 = vmul.f32 %v2362, %v2329
    %v2364 = vmul.f32 %v2363, %v2362
    %v2365 = vmul.f32 0.5, %v2364
    %v2366 = vsub.f32 1.5, %v2365
    %v2367 = vmul.f32 %v2362, %v2366
    %vm2368 = vweird.f32 %v2329
    %vm2369 = vweird.f32 %v2362
    %vm2370 = vmor %vm2368, %vm2369
    %v2371 = vsel %vm2370, %v2362, %v2367
    %v2372 = vrsqrt.pop %v2330
    %v2373 = vmul.f32 %v2372, %v2330
    %v2374 = vmul.f32 %v2373, %v2372
    %v2375 = vmul.f32 0.5, %v2374
    %v2376 = vsub.f32 1.5, %v2375
    %v2377 = vmul.f32 %v2372, %v2376
    %vm2378 = vweird.f32 %v2330
    %vm2379 = vweird.f32 %v2372
    %vm2380 = vmor %vm2378, %vm2379
    %v2381 = vsel %vm2380, %v2372, %v2377
    %v2382 = vrsqrt.pop %v2331
    %v2383 = vmul.f32 %v2382, %v2331
    %v2384 = vmul.f32 %v2383, %v2382
    %v2385 = vmul.f32 0.5, %v2384
    %v2386 = vsub.f32 1.5, %v2385
    %v2387 = vmul.f32 %v2382, %v2386
    %vm2388 = vweird.f32 %v2331
    %vm2389 = vweird.f32 %v2382
    %vm2390 = vmor %vm2388, %vm2389
    %v2391 = vsel %vm2390, %v2382, %v2387
    %v2392 = vmul.f32 %v2290, %v2341
    %v2393 = vmul.f32 %v2291, %v2351
    %v2394 = vmul.f32 %v2292, %v2361
    %v2395 = vmul.f32 %v2293, %v2371
    %v2396 = vmul.f32 %v2294, %v2381
    %v2397 = vmul.f32 %v2295, %v2391
    %v2399 = vperm.slane %v2263, 0
    %v2401 = vmul.f32 %v2392, %v2399
    %v2402 = vmul.f32 %v2393, %v2399
    %v2403 = vmul.f32 %v2394, %v2399
    %v2404 = vmul.f32 %v2395, %v2399
    %v2405 = vmul.f32 %v2396, %v2399
    %v2406 = vmul.f32 %v2397, %v2399
    %v2408 = vperm.slane %v2265, 0
    %v2410 = vadd.f32 %v2401, %v2408
    %v2411 = vadd.f32 %v2402, %v2408
    %v2412 = vadd.f32 %v2403, %v2408
    %v2413 = vadd.f32 %v2404, %v2408
    %v2414 = vadd.f32 %v2405, %v2408
    %v2415 = vadd.f32 %v2406, %v2408
    %v2416 = vpack.c.bf16 %v2411, %v2410
    %v2417 = vpack.c.bf16 %v2413, %v2412
    %v2418 = vpack.c.bf16 %v2415, %v2414
    %s2419 = scalar_lea.vmem %s11, 16
    %v2420 = vld [vmem:[%s2419] sm:$0xf]
    %v2421 = vld [vmem:[%s2419 + $0x4] sm:$0xf]
    %v2422 = vld [vmem:[%s2419 + $0x8] sm:$0xf]
    %v2423 = vld [vmem:[%s2419 + $0xc] sm:$0xf]
    %v2428 = vunpack.c.l.b16 %v2420
    %v2429 = vunpack.c.l.b16 %v2421
    %v2430 = vunpack.c.l.b16 %v2422
    %v2431 = vunpack.c.l.b16 %v2423
    %v2432 = vpack.c.b16 %v2429, %v2428
    %v2433 = vpack.c.b16 %v2431, %v2430
    %v2437 = vsel %vm258, %v2416, 0
    %v2440 = vsel %vm258, %v2417, 0
    %v2443 = vsel %vm258, %v2418, 0
    %2445 = vmatpush.bf16.msra.mxu0 0
    %2446 = vmatpush.bf16.msra.mxu0 0
    %2447 = vmatpush.bf16.msra.mxu0 0
    %2448 = vmatpush.bf16.msra.mxu0 0
    %2449 = vmatpush.bf16.msra.mxu0 0
    %2450 = vmatpush.bf16.msra.mxu0 0
    %2451 = vmatpush.bf16.msra.mxu0 %v2433
    %2452 = vmatpush.bf16.msra.mxu0 %v2432
    %2453 = vmatmul.bf16.gmra.mxu0 %v2437
    %v2454 = vpop.f32.mrf.mxu0
    %v2455 = vadd.f32 0.0, %v2454
    %v2456 = vpop.f32.mrf.mxu0
    %v2457 = vadd.f32 0.0, %v2456
    %2458 = vmatmul.bf16.gmra.mxu0 %v2440
    %v2459 = vpop.f32.mrf.mxu0
    %v2460 = vadd.f32 0.0, %v2459
    %v2461 = vpop.f32.mrf.mxu0
    %v2462 = vadd.f32 0.0, %v2461
    %2463 = vmatmul.bf16.gmra.mxu0 %v2443
    %v2464 = vpop.f32.mrf.mxu0
    %v2465 = vadd.f32 0.0, %v2464
    %v2466 = vpop.f32.mrf.mxu0
    %v2467 = vadd.f32 0.0, %v2466
    %2468 = vdwg.mxu0
    %v2469 = vpack.c.bf16 %v2455, %v2455
    %v2470 = vpack.c.bf16 %v2457, %v2457
    %v2471 = vpack.c.bf16 %v2460, %v2460
    %v2472 = vpack.c.bf16 %v2462, %v2462
    %v2473 = vpack.c.bf16 %v2465, %v2465
    %v2474 = vpack.c.bf16 %v2467, %v2467
    %2481 = vrot.lane.b32.xlu0 %v2469, 120
    %v2482 = vpop.permute.xlu0 %2481
    %2483 = vrot.lane.b32.xlu0 %v2470, 120
    %v2484 = vpop.permute.xlu0 %2483
    %2485 = vrot.lane.b32.xlu0 %v2471, 120
    %v2486 = vpop.permute.xlu0 %2485
    %2487 = vrot.lane.b32.xlu0 %v2472, 120
    %v2488 = vpop.permute.xlu0 %2487
    %2489 = vrot.lane.b32.xlu0 %v2473, 120
    %v2490 = vpop.permute.xlu0 %2489
    %2491 = vrot.lane.b32.xlu0 %v2474, 120
    %v2492 = vpop.permute.xlu0 %2491
    %2493 = vrot.lane.b32.xlu0 %v2469, 112
    %v2494 = vpop.permute.xlu0 %2493
    %2495 = vrot.lane.b32.xlu0 %v2470, 112
    %v2496 = vpop.permute.xlu0 %2495
    %2497 = vrot.lane.b32.xlu0 %v2471, 112
    %v2498 = vpop.permute.xlu0 %2497
    %2499 = vrot.lane.b32.xlu0 %v2472, 112
    %v2500 = vpop.permute.xlu0 %2499
    %2501 = vrot.lane.b32.xlu0 %v2473, 112
    %v2502 = vpop.permute.xlu0 %2501
    %2503 = vrot.lane.b32.xlu0 %v2474, 112
    %v2504 = vpop.permute.xlu0 %2503
    %2505 = vrot.lane.b32.xlu0 %v2469, 104
    %v2506 = vpop.permute.xlu0 %2505
    %2507 = vrot.lane.b32.xlu0 %v2470, 104
    %v2508 = vpop.permute.xlu0 %2507
    %2509 = vrot.lane.b32.xlu0 %v2471, 104
    %v2510 = vpop.permute.xlu0 %2509
    %2511 = vrot.lane.b32.xlu0 %v2472, 104
    %v2512 = vpop.permute.xlu0 %2511
    %2513 = vrot.lane.b32.xlu0 %v2473, 104
    %v2514 = vpop.permute.xlu0 %2513
    %2515 = vrot.lane.b32.xlu0 %v2474, 104
    %v2516 = vpop.permute.xlu0 %2515
    %v2517 = vunpack.c.l.b16 %v2469
    %v2518 = vunpack.c.l.b16 %v2470
    %v2519 = vunpack.c.l.b16 %v2471
    %v2520 = vpack.c.b16 %v2518, %v2517
    %v2521 = vpack.c.b16 %v2519, %v2519
    %2522 = vrot.lane.b32.xlu0 %v2520, 96
    %v2523 = vpop.permute.xlu0 %2522
    %2524 = vrot.lane.b32.xlu0 %v2521, 96
    %v2525 = vpop.permute.xlu0 %2524
    %v2527 = vsel %vm619, %v2520, 0
    %v2530 = vsel %vm619, %v2521, 0
    %v2533 = vsel %vm619, %v2523, 0
    %v2536 = vsel %vm619, %v2525, 0
    %2538 = vmatpush.bf16.xpose.msra.mxu0 0
    %2539 = vmatpush.bf16.xpose.msra.mxu0 0
    %2540 = vmatpush.bf16.xpose.msra.mxu0 0
    %2541 = vmatpush.bf16.xpose.msra.mxu0 0
    %2542 = vmatpush.bf16.xpose.msra.mxu0 0
    %2543 = vmatpush.bf16.xpose.msra.mxu0 0
    %2544 = vmatpush.bf16.xpose.msra.mxu0 %v2536
    %2545 = vmatpush.bf16.xpose.msra.mxu0 %v2533
    %2546 = vmatmul.bf16.gmra.mxu0 %v2527
    %v2547 = vpop.f32.mrf.mxu0
    %v2548 = vadd.f32 0.0, %v2547
    %v2549 = vpop.f32.mrf.mxu0
    %v2550 = vadd.f32 0.0, %v2549
    %2551 = vmatmul.bf16.gmra.mxu0 %v2530
    %v2552 = vpop.f32.mrf.mxu0
    %v2553 = vadd.f32 0.0, %v2552
    %v2554 = vpop.f32.mrf.mxu0
    %2555 = vdwg.mxu0
    %v2556 = vunpack.c.l.b16 %v2472
    %v2557 = vunpack.c.l.b16 %v2473
    %v2558 = vunpack.c.l.b16 %v2474
    %v2559 = vpack.c.b16 %v2557, %v2556
    %v2560 = vpack.c.b16 %v2558, %v2558
    %2561 = vrot.lane.b32.xlu0 %v2559, 96
    %v2562 = vpop.permute.xlu0 %2561
    %2563 = vrot.lane.b32.xlu0 %v2560, 96
    %v2564 = vpop.permute.xlu0 %2563
    %v2566 = vsel %vm619, %v2559, 0
    %v2569 = vsel %vm619, %v2560, 0
    %v2572 = vsel %vm619, %v2562, 0
    %v2575 = vsel %vm619, %v2564, 0
    %2577 = vmatpush.bf16.xpose.msra.mxu0 0
    %2578 = vmatpush.bf16.xpose.msra.mxu0 0
    %2579 = vmatpush.bf16.xpose.msra.mxu0 0
    %2580 = vmatpush.bf16.xpose.msra.mxu0 0
    %2581 = vmatpush.bf16.xpose.msra.mxu0 0
    %2582 = vmatpush.bf16.xpose.msra.mxu0 0
    %2583 = vmatpush.bf16.xpose.msra.mxu0 %v2575
    %2584 = vmatpush.bf16.xpose.msra.mxu0 %v2572
    %2585 = vmatmul.bf16.gmra.mxu0 %v2566
    %v2586 = vpop.f32.mrf.mxu0
    %v2587 = vadd.f32 0.0, %v2586
    %v2588 = vpop.f32.mrf.mxu0
    %v2589 = vadd.f32 0.0, %v2588
    %2590 = vmatmul.bf16.gmra.mxu0 %v2569
    %v2591 = vpop.f32.mrf.mxu0
    %v2592 = vadd.f32 0.0, %v2591
    %v2593 = vpop.f32.mrf.mxu0
    %2594 = vdwg.mxu0
    %v2595 = vunpack.c.l.b16 %v2482
    %v2596 = vunpack.c.l.b16 %v2484
    %v2597 = vunpack.c.l.b16 %v2486
    %v2598 = vpack.c.b16 %v2596, %v2595
    %v2599 = vpack.c.b16 %v2597, %v2597
    %2600 = vrot.lane.b32.xlu0 %v2598, 96
    %v2601 = vpop.permute.xlu0 %2600
    %2602 = vrot.lane.b32.xlu0 %v2599, 96
    %v2603 = vpop.permute.xlu0 %2602
    %v2605 = vsel %vm619, %v2598, 0
    %v2608 = vsel %vm619, %v2599, 0
    %v2611 = vsel %vm619, %v2601, 0
    %v2614 = vsel %vm619, %v2603, 0
    %2616 = vmatpush.bf16.xpose.msra.mxu0 0
    %2617 = vmatpush.bf16.xpose.msra.mxu0 0
    %2618 = vmatpush.bf16.xpose.msra.mxu0 0
    %2619 = vmatpush.bf16.xpose.msra.mxu0 0
    %2620 = vmatpush.bf16.xpose.msra.mxu0 0
    %2621 = vmatpush.bf16.xpose.msra.mxu0 0
    %2622 = vmatpush.bf16.xpose.msra.mxu0 %v2614
    %2623 = vmatpush.bf16.xpose.msra.mxu0 %v2611
    %2624 = vmatmul.bf16.gmra.mxu0 %v2605
    %v2625 = vpop.f32.mrf.mxu0
    %v2626 = vadd.f32 0.0, %v2625
    %v2627 = vpop.f32.mrf.mxu0
    %v2628 = vadd.f32 0.0, %v2627
    %2629 = vmatmul.bf16.gmra.mxu0 %v2608
    %v2630 = vpop.f32.mrf.mxu0
    %v2631 = vadd.f32 0.0, %v2630
    %v2632 = vpop.f32.mrf.mxu0
    %2633 = vdwg.mxu0
    %v2634 = vunpack.c.l.b16 %v2488
    %v2635 = vunpack.c.l.b16 %v2490
    %v2636 = vunpack.c.l.b16 %v2492
    %v2637 = vpack.c.b16 %v2635, %v2634
    %v2638 = vpack.c.b16 %v2636, %v2636
    %2639 = vrot.lane.b32.xlu0 %v2637, 96
    %v2640 = vpop.permute.xlu0 %2639
    %2641 = vrot.lane.b32.xlu0 %v2638, 96
    %v2642 = vpop.permute.xlu0 %2641
    %v2644 = vsel %vm619, %v2637, 0
    %v2647 = vsel %vm619, %v2638, 0
    %v2650 = vsel %vm619, %v2640, 0
    %v2653 = vsel %vm619, %v2642, 0
    %2655 = vmatpush.bf16.xpose.msra.mxu0 0
    %2656 = vmatpush.bf16.xpose.msra.mxu0 0
    %2657 = vmatpush.bf16.xpose.msra.mxu0 0
    %2658 = vmatpush.bf16.xpose.msra.mxu0 0
    %2659 = vmatpush.bf16.xpose.msra.mxu0 0
    %2660 = vmatpush.bf16.xpose.msra.mxu0 0
    %2661 = vmatpush.bf16.xpose.msra.mxu0 %v2653
    %2662 = vmatpush.bf16.xpose.msra.mxu0 %v2650
    %2663 = vmatmul.bf16.gmra.mxu0 %v2644
    %v2664 = vpop.f32.mrf.mxu0
    %v2665 = vadd.f32 0.0, %v2664
    %v2666 = vpop.f32.mrf.mxu0
    %v2667 = vadd.f32 0.0, %v2666
    %2668 = vmatmul.bf16.gmra.mxu0 %v2647
    %v2669 = vpop.f32.mrf.mxu0
    %v2670 = vadd.f32 0.0, %v2669
    %v2671 = vpop.f32.mrf.mxu0
    %2672 = vdwg.mxu0
    %v2673 = vunpack.c.l.b16 %v2494
    %v2674 = vunpack.c.l.b16 %v2496
    %v2675 = vunpack.c.l.b16 %v2498
    %v2676 = vpack.c.b16 %v2674, %v2673
    %v2677 = vpack.c.b16 %v2675, %v2675
    %2678 = vrot.lane.b32.xlu0 %v2676, 96
    %v2679 = vpop.permute.xlu0 %2678
    %2680 = vrot.lane.b32.xlu0 %v2677, 96
    %v2681 = vpop.permute.xlu0 %2680
    %v2683 = vsel %vm619, %v2676, 0
    %v2686 = vsel %vm619, %v2677, 0
    %v2689 = vsel %vm619, %v2679, 0
    %v2692 = vsel %vm619, %v2681, 0
    %2694 = vmatpush.bf16.xpose.msra.mxu0 0
    %2695 = vmatpush.bf16.xpose.msra.mxu0 0
    %2696 = vmatpush.bf16.xpose.msra.mxu0 0
    %2697 = vmatpush.bf16.xpose.msra.mxu0 0
    %2698 = vmatpush.bf16.xpose.msra.mxu0 0
    %2699 = vmatpush.bf16.xpose.msra.mxu0 0
    %2700 = vmatpush.bf16.xpose.msra.mxu0 %v2692
    %2701 = vmatpush.bf16.xpose.msra.mxu0 %v2689
    %2702 = vmatmul.bf16.gmra.mxu0 %v2683
    %v2703 = vpop.f32.mrf.mxu0
    %v2704 = vadd.f32 0.0, %v2703
    %v2705 = vpop.f32.mrf.mxu0
    %v2706 = vadd.f32 0.0, %v2705
    %2707 = vmatmul.bf16.gmra.mxu0 %v2686
    %v2708 = vpop.f32.mrf.mxu0
    %v2709 = vadd.f32 0.0, %v2708
    %v2710 = vpop.f32.mrf.mxu0
    %2711 = vdwg.mxu0
    %v2712 = vunpack.c.l.b16 %v2500
    %v2713 = vunpack.c.l.b16 %v2502
    %v2714 = vunpack.c.l.b16 %v2504
    %v2715 = vpack.c.b16 %v2713, %v2712
    %v2716 = vpack.c.b16 %v2714, %v2714
    %2717 = vrot.lane.b32.xlu0 %v2715, 96
    %v2718 = vpop.permute.xlu0 %2717
    %2719 = vrot.lane.b32.xlu0 %v2716, 96
    %v2720 = vpop.permute.xlu0 %2719
    %v2722 = vsel %vm619, %v2715, 0
    %v2725 = vsel %vm619, %v2716, 0
    %v2728 = vsel %vm619, %v2718, 0
    %v2731 = vsel %vm619, %v2720, 0
    %2733 = vmatpush.bf16.xpose.msra.mxu0 0
    %2734 = vmatpush.bf16.xpose.msra.mxu0 0
    %2735 = vmatpush.bf16.xpose.msra.mxu0 0
    %2736 = vmatpush.bf16.xpose.msra.mxu0 0
    %2737 = vmatpush.bf16.xpose.msra.mxu0 0
    %2738 = vmatpush.bf16.xpose.msra.mxu0 0
    %2739 = vmatpush.bf16.xpose.msra.mxu0 %v2731
    %2740 = vmatpush.bf16.xpose.msra.mxu0 %v2728
    %2741 = vmatmul.bf16.gmra.mxu0 %v2722
    %v2742 = vpop.f32.mrf.mxu0
    %v2743 = vadd.f32 0.0, %v2742
    %v2744 = vpop.f32.mrf.mxu0
    %v2745 = vadd.f32 0.0, %v2744
    %2746 = vmatmul.bf16.gmra.mxu0 %v2725
    %v2747 = vpop.f32.mrf.mxu0
    %v2748 = vadd.f32 0.0, %v2747
    %v2749 = vpop.f32.mrf.mxu0
    %2750 = vdwg.mxu0
    %v2751 = vunpack.c.l.b16 %v2506
    %v2752 = vunpack.c.l.b16 %v2508
    %v2753 = vunpack.c.l.b16 %v2510
    %v2754 = vpack.c.b16 %v2752, %v2751
    %v2755 = vpack.c.b16 %v2753, %v2753
    %2756 = vrot.lane.b32.xlu0 %v2754, 96
    %v2757 = vpop.permute.xlu0 %2756
    %2758 = vrot.lane.b32.xlu0 %v2755, 96
    %v2759 = vpop.permute.xlu0 %2758
    %v2761 = vsel %vm619, %v2754, 0
    %v2764 = vsel %vm619, %v2755, 0
    %v2767 = vsel %vm619, %v2757, 0
    %v2770 = vsel %vm619, %v2759, 0
    %2772 = vmatpush.bf16.xpose.msra.mxu0 0
    %2773 = vmatpush.bf16.xpose.msra.mxu0 0
    %2774 = vmatpush.bf16.xpose.msra.mxu0 0
    %2775 = vmatpush.bf16.xpose.msra.mxu0 0
    %2776 = vmatpush.bf16.xpose.msra.mxu0 0
    %2777 = vmatpush.bf16.xpose.msra.mxu0 0
    %2778 = vmatpush.bf16.xpose.msra.mxu0 %v2770
    %2779 = vmatpush.bf16.xpose.msra.mxu0 %v2767
    %2780 = vmatmul.bf16.gmra.mxu0 %v2761
    %v2781 = vpop.f32.mrf.mxu0
    %v2782 = vadd.f32 0.0, %v2781
    %v2783 = vpop.f32.mrf.mxu0
    %v2784 = vadd.f32 0.0, %v2783
    %2785 = vmatmul.bf16.gmra.mxu0 %v2764
    %v2786 = vpop.f32.mrf.mxu0
    %v2787 = vadd.f32 0.0, %v2786
    %v2788 = vpop.f32.mrf.mxu0
    %2789 = vdwg.mxu0
    %v2790 = vunpack.c.l.b16 %v2512
    %v2791 = vunpack.c.l.b16 %v2514
    %v2792 = vunpack.c.l.b16 %v2516
    %v2793 = vpack.c.b16 %v2791, %v2790
    %v2794 = vpack.c.b16 %v2792, %v2792
    %2795 = vrot.lane.b32.xlu0 %v2793, 96
    %v2796 = vpop.permute.xlu0 %2795
    %2797 = vrot.lane.b32.xlu0 %v2794, 96
    %v2798 = vpop.permute.xlu0 %2797
    %v2800 = vsel %vm619, %v2793, 0
    %v2803 = vsel %vm619, %v2794, 0
    %v2806 = vsel %vm619, %v2796, 0
    %v2809 = vsel %vm619, %v2798, 0
    %2811 = vmatpush.bf16.xpose.msra.mxu0 0
    %2812 = vmatpush.bf16.xpose.msra.mxu0 0
    %2813 = vmatpush.bf16.xpose.msra.mxu0 0
    %2814 = vmatpush.bf16.xpose.msra.mxu0 0
    %2815 = vmatpush.bf16.xpose.msra.mxu0 0
    %2816 = vmatpush.bf16.xpose.msra.mxu0 0
    %2817 = vmatpush.bf16.xpose.msra.mxu0 %v2809
    %2818 = vmatpush.bf16.xpose.msra.mxu0 %v2806
    %2819 = vmatmul.bf16.gmra.mxu0 %v2800
    %v2820 = vpop.f32.mrf.mxu0
    %v2821 = vadd.f32 0.0, %v2820
    %v2822 = vpop.f32.mrf.mxu0
    %v2823 = vadd.f32 0.0, %v2822
    %2824 = vmatmul.bf16.gmra.mxu0 %v2803
    %v2825 = vpop.f32.mrf.mxu0
    %v2826 = vadd.f32 0.0, %v2825
    %v2827 = vpop.f32.mrf.mxu0
    %2828 = vdwg.mxu0
    %v2829 = vsel %vm923, %v2548, -inf
    %2830 = vmax.xlane.f32.xlu0 %v2829
    %v2831 = vpop.xlane.xlu0 %2830
    %v2832 = vsel %vm923, %v2550, -inf
    %2833 = vmax.xlane.f32.xlu0 %v2832
    %v2834 = vpop.xlane.xlu0 %2833
    %v2835 = vsel %vm923, %v2553, -inf
    %2836 = vmax.xlane.f32.xlu0 %v2835
    %v2837 = vpop.xlane.xlu0 %2836
    %v2838 = vsel %vm923, %v2587, -inf
    %2839 = vmax.xlane.f32.xlu0 %v2838
    %v2840 = vpop.xlane.xlu0 %2839
    %v2841 = vsel %vm923, %v2589, -inf
    %2842 = vmax.xlane.f32.xlu0 %v2841
    %v2843 = vpop.xlane.xlu0 %2842
    %v2844 = vsel %vm923, %v2592, -inf
    %2845 = vmax.xlane.f32.xlu0 %v2844
    %v2846 = vpop.xlane.xlu0 %2845
    %v2847 = vsel %vm923, %v2626, -inf
    %2848 = vmax.xlane.f32.xlu0 %v2847
    %v2849 = vpop.xlane.xlu0 %2848
    %v2850 = vsel %vm923, %v2628, -inf
    %2851 = vmax.xlane.f32.xlu0 %v2850
    %v2852 = vpop.xlane.xlu0 %2851
    %v2853 = vsel %vm923, %v2631, -inf
    %2854 = vmax.xlane.f32.xlu0 %v2853
    %v2855 = vpop.xlane.xlu0 %2854
    %v2856 = vsel %vm923, %v2665, -inf
    %2857 = vmax.xlane.f32.xlu0 %v2856
    %v2858 = vpop.xlane.xlu0 %2857
    %v2859 = vsel %vm923, %v2667, -inf
    %2860 = vmax.xlane.f32.xlu0 %v2859
    %v2861 = vpop.xlane.xlu0 %2860
    %v2862 = vsel %vm923, %v2670, -inf
    %2863 = vmax.xlane.f32.xlu0 %v2862
    %v2864 = vpop.xlane.xlu0 %2863
    %v2865 = vsel %vm923, %v2704, -inf
    %2866 = vmax.xlane.f32.xlu0 %v2865
    %v2867 = vpop.xlane.xlu0 %2866
    %v2868 = vsel %vm923, %v2706, -inf
    %2869 = vmax.xlane.f32.xlu0 %v2868
    %v2870 = vpop.xlane.xlu0 %2869
    %v2871 = vsel %vm923, %v2709, -inf
    %2872 = vmax.xlane.f32.xlu0 %v2871
    %v2873 = vpop.xlane.xlu0 %2872
    %v2874 = vsel %vm923, %v2743, -inf
    %2875 = vmax.xlane.f32.xlu0 %v2874
    %v2876 = vpop.xlane.xlu0 %2875
    %v2877 = vsel %vm923, %v2745, -inf
    %2878 = vmax.xlane.f32.xlu0 %v2877
    %v2879 = vpop.xlane.xlu0 %2878
    %v2880 = vsel %vm923, %v2748, -inf
    %2881 = vmax.xlane.f32.xlu0 %v2880
    %v2882 = vpop.xlane.xlu0 %2881
    %v2883 = vsel %vm923, %v2782, -inf
    %2884 = vmax.xlane.f32.xlu0 %v2883
    %v2885 = vpop.xlane.xlu0 %2884
    %v2886 = vsel %vm923, %v2784, -inf
    %2887 = vmax.xlane.f32.xlu0 %v2886
    %v2888 = vpop.xlane.xlu0 %2887
    %v2889 = vsel %vm923, %v2787, -inf
    %2890 = vmax.xlane.f32.xlu0 %v2889
    %v2891 = vpop.xlane.xlu0 %2890
    %v2892 = vsel %vm923, %v2821, -inf
    %2893 = vmax.xlane.f32.xlu0 %v2892
    %v2894 = vpop.xlane.xlu0 %2893
    %v2895 = vsel %vm923, %v2823, -inf
    %2896 = vmax.xlane.f32.xlu0 %v2895
    %v2897 = vpop.xlane.xlu0 %2896
    %v2898 = vsel %vm923, %v2826, -inf
    %2899 = vmax.xlane.f32.xlu0 %v2898
    %v2900 = vpop.xlane.xlu0 %2899
    %v2901 = vsub.f32 %v2548, %v2831
    %v2902 = vsub.f32 %v2550, %v2834
    %v2903 = vsub.f32 %v2553, %v2837
    %v2904 = vsub.f32 %v2587, %v2840
    %v2905 = vsub.f32 %v2589, %v2843
    %v2906 = vsub.f32 %v2592, %v2846
    %v2907 = vsub.f32 %v2626, %v2849
    %v2908 = vsub.f32 %v2628, %v2852
    %v2909 = vsub.f32 %v2631, %v2855
    %v2910 = vsub.f32 %v2665, %v2858
    %v2911 = vsub.f32 %v2667, %v2861
    %v2912 = vsub.f32 %v2670, %v2864
    %v2913 = vsub.f32 %v2704, %v2867
    %v2914 = vsub.f32 %v2706, %v2870
    %v2915 = vsub.f32 %v2709, %v2873
    %v2916 = vsub.f32 %v2743, %v2876
    %v2917 = vsub.f32 %v2745, %v2879
    %v2918 = vsub.f32 %v2748, %v2882
    %v2919 = vsub.f32 %v2782, %v2885
    %v2920 = vsub.f32 %v2784, %v2888
    %v2921 = vsub.f32 %v2787, %v2891
    %v2922 = vsub.f32 %v2821, %v2894
    %v2923 = vsub.f32 %v2823, %v2897
    %v2924 = vsub.f32 %v2826, %v2900
    %v2925 = vmul.f32 %v2901, 1.442695
    %v2926 = vpow.pop %v2925
    %v2927 = vmul.f32 %v2902, 1.442695
    %v2928 = vpow.pop %v2927
    %v2929 = vmul.f32 %v2903, 1.442695
    %v2930 = vpow.pop %v2929
    %v2931 = vmul.f32 %v2904, 1.442695
    %v2932 = vpow.pop %v2931
    %v2933 = vmul.f32 %v2905, 1.442695
    %v2934 = vpow.pop %v2933
    %v2935 = vmul.f32 %v2906, 1.442695
    %v2936 = vpow.pop %v2935
    %v2937 = vmul.f32 %v2907, 1.442695
    %v2938 = vpow.pop %v2937
    %v2939 = vmul.f32 %v2908, 1.442695
    %v2940 = vpow.pop %v2939
    %v2941 = vmul.f32 %v2909, 1.442695
    %v2942 = vpow.pop %v2941
    %v2943 = vmul.f32 %v2910, 1.442695
    %v2944 = vpow.pop %v2943
    %v2945 = vmul.f32 %v2911, 1.442695
    %v2946 = vpow.pop %v2945
    %v2947 = vmul.f32 %v2912, 1.442695
    %v2948 = vpow.pop %v2947
    %v2949 = vmul.f32 %v2913, 1.442695
    %v2950 = vpow.pop %v2949
    %v2951 = vmul.f32 %v2914, 1.442695
    %v2952 = vpow.pop %v2951
    %v2953 = vmul.f32 %v2915, 1.442695
    %v2954 = vpow.pop %v2953
    %v2955 = vmul.f32 %v2916, 1.442695
    %v2956 = vpow.pop %v2955
    %v2957 = vmul.f32 %v2917, 1.442695
    %v2958 = vpow.pop %v2957
    %v2959 = vmul.f32 %v2918, 1.442695
    %v2960 = vpow.pop %v2959
    %v2961 = vmul.f32 %v2919, 1.442695
    %v2962 = vpow.pop %v2961
    %v2963 = vmul.f32 %v2920, 1.442695
    %v2964 = vpow.pop %v2963
    %v2965 = vmul.f32 %v2921, 1.442695
    %v2966 = vpow.pop %v2965
    %v2967 = vmul.f32 %v2922, 1.442695
    %v2968 = vpow.pop %v2967
    %v2969 = vmul.f32 %v2923, 1.442695
    %v2970 = vpow.pop %v2969
    %v2971 = vmul.f32 %v2924, 1.442695
    %v2972 = vpow.pop %v2971
    %v2973 = vsel %vm1069, 0.0, %v2926
    %v2974 = vsel %vm1069, 0.0, %v2928
    %v2975 = vsel %vm1069, 0.0, %v2930
    %v2976 = vsel %vm1069, 0.0, %v2932
    %v2977 = vsel %vm1069, 0.0, %v2934
    %v2978 = vsel %vm1069, 0.0, %v2936
    %v2979 = vsel %vm1069, 0.0, %v2938
    %v2980 = vsel %vm1069, 0.0, %v2940
    %v2981 = vsel %vm1069, 0.0, %v2942
    %v2982 = vsel %vm1069, 0.0, %v2944
    %v2983 = vsel %vm1069, 0.0, %v2946
    %v2984 = vsel %vm1069, 0.0, %v2948
    %v2985 = vsel %vm1069, 0.0, %v2950
    %v2986 = vsel %vm1069, 0.0, %v2952
    %v2987 = vsel %vm1069, 0.0, %v2954
    %v2988 = vsel %vm1069, 0.0, %v2956
    %v2989 = vsel %vm1069, 0.0, %v2958
    %v2990 = vsel %vm1069, 0.0, %v2960
    %v2991 = vsel %vm1069, 0.0, %v2962
    %v2992 = vsel %vm1069, 0.0, %v2964
    %v2993 = vsel %vm1069, 0.0, %v2966
    %v2994 = vsel %vm1069, 0.0, %v2968
    %v2995 = vsel %vm1069, 0.0, %v2970
    %v2996 = vsel %vm1069, 0.0, %v2972
    %v2997 = vsel %vm923, %v2973, 0.0
    %2998 = vadd.xlane.f32.xlu0 %v2997
    %v2999 = vpop.xlane.xlu0 %2998
    %v3000 = vsel %vm923, %v2974, 0.0
    %3001 = vadd.xlane.f32.xlu0 %v3000
    %v3002 = vpop.xlane.xlu0 %3001
    %v3003 = vsel %vm923, %v2975, 0.0
    %3004 = vadd.xlane.f32.xlu0 %v3003
    %v3005 = vpop.xlane.xlu0 %3004
    %v3006 = vsel %vm923, %v2976, 0.0
    %3007 = vadd.xlane.f32.xlu0 %v3006
    %v3008 = vpop.xlane.xlu0 %3007
    %v3009 = vsel %vm923, %v2977, 0.0
    %3010 = vadd.xlane.f32.xlu0 %v3009
    %v3011 = vpop.xlane.xlu0 %3010
    %v3012 = vsel %vm923, %v2978, 0.0
    %3013 = vadd.xlane.f32.xlu0 %v3012
    %v3014 = vpop.xlane.xlu0 %3013
    %v3015 = vsel %vm923, %v2979, 0.0
    %3016 = vadd.xlane.f32.xlu0 %v3015
    %v3017 = vpop.xlane.xlu0 %3016
    %v3018 = vsel %vm923, %v2980, 0.0
    %3019 = vadd.xlane.f32.xlu0 %v3018
    %v3020 = vpop.xlane.xlu0 %3019
    %v3021 = vsel %vm923, %v2981, 0.0
    %3022 = vadd.xlane.f32.xlu0 %v3021
    %v3023 = vpop.xlane.xlu0 %3022
    %v3024 = vsel %vm923, %v2982, 0.0
    %3025 = vadd.xlane.f32.xlu0 %v3024
    %v3026 = vpop.xlane.xlu0 %3025
    %v3027 = vsel %vm923, %v2983, 0.0
    %3028 = vadd.xlane.f32.xlu0 %v3027
    %v3029 = vpop.xlane.xlu0 %3028
    %v3030 = vsel %vm923, %v2984, 0.0
    %3031 = vadd.xlane.f32.xlu0 %v3030
    %v3032 = vpop.xlane.xlu0 %3031
    %v3033 = vsel %vm923, %v2985, 0.0
    %3034 = vadd.xlane.f32.xlu0 %v3033
    %v3035 = vpop.xlane.xlu0 %3034
    %v3036 = vsel %vm923, %v2986, 0.0
    %3037 = vadd.xlane.f32.xlu0 %v3036
    %v3038 = vpop.xlane.xlu0 %3037
    %v3039 = vsel %vm923, %v2987, 0.0
    %3040 = vadd.xlane.f32.xlu0 %v3039
    %v3041 = vpop.xlane.xlu0 %3040
    %v3042 = vsel %vm923, %v2988, 0.0
    %3043 = vadd.xlane.f32.xlu0 %v3042
    %v3044 = vpop.xlane.xlu0 %3043
    %v3045 = vsel %vm923, %v2989, 0.0
    %3046 = vadd.xlane.f32.xlu0 %v3045
    %v3047 = vpop.xlane.xlu0 %3046
    %v3048 = vsel %vm923, %v2990, 0.0
    %3049 = vadd.xlane.f32.xlu0 %v3048
    %v3050 = vpop.xlane.xlu0 %3049
    %v3051 = vsel %vm923, %v2991, 0.0
    %3052 = vadd.xlane.f32.xlu0 %v3051
    %v3053 = vpop.xlane.xlu0 %3052
    %v3054 = vsel %vm923, %v2992, 0.0
    %3055 = vadd.xlane.f32.xlu0 %v3054
    %v3056 = vpop.xlane.xlu0 %3055
    %v3057 = vsel %vm923, %v2993, 0.0
    %3058 = vadd.xlane.f32.xlu0 %v3057
    %v3059 = vpop.xlane.xlu0 %3058
    %v3060 = vsel %vm923, %v2994, 0.0
    %3061 = vadd.xlane.f32.xlu0 %v3060
    %v3062 = vpop.xlane.xlu0 %3061
    %v3063 = vsel %vm923, %v2995, 0.0
    %3064 = vadd.xlane.f32.xlu0 %v3063
    %v3065 = vpop.xlane.xlu0 %3064
    %v3066 = vsel %vm923, %v2996, 0.0
    %3067 = vadd.xlane.f32.xlu0 %v3066
    %v3068 = vpop.xlane.xlu0 %3067
    %v3069 = vrcp.pop %v2999
    %v3070 = vrcp.pop %v3002
    %v3071 = vrcp.pop %v3005
    %v3072 = vrcp.pop %v3008
    %v3073 = vrcp.pop %v3011
    %v3074 = vrcp.pop %v3014
    %v3075 = vrcp.pop %v3017
    %v3076 = vrcp.pop %v3020
    %v3077 = vrcp.pop %v3023
    %v3078 = vrcp.pop %v3026
    %v3079 = vrcp.pop %v3029
    %v3080 = vrcp.pop %v3032
    %v3081 = vrcp.pop %v3035
    %v3082 = vrcp.pop %v3038
    %v3083 = vrcp.pop %v3041
    %v3084 = vrcp.pop %v3044
    %v3085 = vrcp.pop %v3047
    %v3086 = vrcp.pop %v3050
    %v3087 = vrcp.pop %v3053
    %v3088 = vrcp.pop %v3056
    %v3089 = vrcp.pop %v3059
    %v3090 = vrcp.pop %v3062
    %v3091 = vrcp.pop %v3065
    %v3092 = vrcp.pop %v3068
    %v3093 = vmul.f32 %v2973, %v3069
    %v3094 = vmul.f32 %v2974, %v3070
    %v3095 = vmul.f32 %v2975, %v3071
    %v3096 = vmul.f32 %v2976, %v3072
    %v3097 = vmul.f32 %v2977, %v3073
    %v3098 = vmul.f32 %v2978, %v3074
    %v3099 = vmul.f32 %v2979, %v3075
    %v3100 = vmul.f32 %v2980, %v3076
    %v3101 = vmul.f32 %v2981, %v3077
    %v3102 = vmul.f32 %v2982, %v3078
    %v3103 = vmul.f32 %v2983, %v3079
    %v3104 = vmul.f32 %v2984, %v3080
    %v3105 = vmul.f32 %v2985, %v3081
    %v3106 = vmul.f32 %v2986, %v3082
    %v3107 = vmul.f32 %v2987, %v3083
    %v3108 = vmul.f32 %v2988, %v3084
    %v3109 = vmul.f32 %v2989, %v3085
    %v3110 = vmul.f32 %v2990, %v3086
    %v3111 = vmul.f32 %v2991, %v3087
    %v3112 = vmul.f32 %v2992, %v3088
    %v3113 = vmul.f32 %v2993, %v3089
    %v3114 = vmul.f32 %v2994, %v3090
    %v3115 = vmul.f32 %v2995, %v3091
    %v3116 = vmul.f32 %v2996, %v3092
    %v3117 = vpack.c.bf16 %v3093, %v3093
    %v3118 = vpack.c.bf16 %v3094, %v3094
    %v3119 = vpack.c.bf16 %v3095, %v3095
    %v3120 = vpack.c.bf16 %v3096, %v3096
    %v3121 = vpack.c.bf16 %v3097, %v3097
    %v3122 = vpack.c.bf16 %v3098, %v3098
    %v3123 = vpack.c.bf16 %v3099, %v3099
    %v3124 = vpack.c.bf16 %v3100, %v3100
    %v3125 = vpack.c.bf16 %v3101, %v3101
    %v3126 = vpack.c.bf16 %v3102, %v3102
    %v3127 = vpack.c.bf16 %v3103, %v3103
    %v3128 = vpack.c.bf16 %v3104, %v3104
    %v3129 = vpack.c.bf16 %v3105, %v3105
    %v3130 = vpack.c.bf16 %v3106, %v3106
    %v3131 = vpack.c.bf16 %v3107, %v3107
    %v3132 = vpack.c.bf16 %v3108, %v3108
    %v3133 = vpack.c.bf16 %v3109, %v3109
    %v3134 = vpack.c.bf16 %v3110, %v3110
    %v3135 = vpack.c.bf16 %v3111, %v3111
    %v3136 = vpack.c.bf16 %v3112, %v3112
    %v3137 = vpack.c.bf16 %v3113, %v3113
    %v3138 = vpack.c.bf16 %v3114, %v3114
    %v3139 = vpack.c.bf16 %v3115, %v3115
    %v3140 = vpack.c.bf16 %v3116, %v3116
    %v3144 = vunpack.c.l.b16 %v3117
    %v3145 = vunpack.c.l.b16 %v3118
    %v3146 = vunpack.c.l.b16 %v3119
    %v3147 = vpack.c.b16 %v3145, %v3144
    %v3148 = vpack.c.b16 %v3146, %v3146
    %3149 = vrot.lane.b32.xlu0 %v2520, 64
    %v3150 = vpop.permute.xlu0 %3149
    %3151 = vrot.lane.b32.xlu0 %v2521, 64
    %v3152 = vpop.permute.xlu0 %3151
    %v3155 = vsel %vm923, %v3147, 0
    %v3158 = vsel %vm923, %v3148, 0
    %v3161 = vsel %vm1257, %v3152, 0
    %3163 = vmatpush.bf16.msra.mxu0 0
    %3164 = vmatpush.bf16.msra.mxu0 0
    %3165 = vmatpush.bf16.msra.mxu0 0
    %3166 = vmatpush.bf16.msra.mxu0 0
    %3167 = vmatpush.bf16.msra.mxu0 0
    %3168 = vmatpush.bf16.msra.mxu0 0
    %3169 = vmatpush.bf16.msra.mxu0 %v3161
    %3170 = vmatpush.bf16.msra.mxu0 %v3150
    %3171 = vmatmul.bf16.gmra.mxu0 %v3155
    %v3172 = vpop.f32.mrf.mxu0
    %v3173 = vadd.f32 0.0, %v3172
    %v3174 = vpop.f32.mrf.mxu0
    %v3175 = vadd.f32 0.0, %v3174
    %3176 = vmatmul.bf16.gmra.mxu0 %v3158
    %v3177 = vpop.f32.mrf.mxu0
    %v3178 = vadd.f32 0.0, %v3177
    %v3179 = vpop.f32.mrf.mxu0
    %3180 = vdwg.mxu0
    %v3184 = vunpack.c.l.b16 %v3120
    %v3185 = vunpack.c.l.b16 %v3121
    %v3186 = vunpack.c.l.b16 %v3122
    %v3187 = vpack.c.b16 %v3185, %v3184
    %v3188 = vpack.c.b16 %v3186, %v3186
    %3189 = vrot.lane.b32.xlu0 %v2559, 64
    %v3190 = vpop.permute.xlu0 %3189
    %3191 = vrot.lane.b32.xlu0 %v2560, 64
    %v3192 = vpop.permute.xlu0 %3191
    %v3195 = vsel %vm923, %v3187, 0
    %v3198 = vsel %vm923, %v3188, 0
    %v3201 = vsel %vm1257, %v3192, 0
    %3203 = vmatpush.bf16.msra.mxu0 0
    %3204 = vmatpush.bf16.msra.mxu0 0
    %3205 = vmatpush.bf16.msra.mxu0 0
    %3206 = vmatpush.bf16.msra.mxu0 0
    %3207 = vmatpush.bf16.msra.mxu0 0
    %3208 = vmatpush.bf16.msra.mxu0 0
    %3209 = vmatpush.bf16.msra.mxu0 %v3201
    %3210 = vmatpush.bf16.msra.mxu0 %v3190
    %3211 = vmatmul.bf16.gmra.mxu0 %v3195
    %v3212 = vpop.f32.mrf.mxu0
    %v3213 = vadd.f32 0.0, %v3212
    %v3214 = vpop.f32.mrf.mxu0
    %v3215 = vadd.f32 0.0, %v3214
    %3216 = vmatmul.bf16.gmra.mxu0 %v3198
    %v3217 = vpop.f32.mrf.mxu0
    %v3218 = vadd.f32 0.0, %v3217
    %v3219 = vpop.f32.mrf.mxu0
    %3220 = vdwg.mxu0
    %v3224 = vunpack.c.l.b16 %v3123
    %v3225 = vunpack.c.l.b16 %v3124
    %v3226 = vunpack.c.l.b16 %v3125
    %v3227 = vpack.c.b16 %v3225, %v3224
    %v3228 = vpack.c.b16 %v3226, %v3226
    %3229 = vrot.lane.b32.xlu0 %v2598, 64
    %v3230 = vpop.permute.xlu0 %3229
    %3231 = vrot.lane.b32.xlu0 %v2599, 64
    %v3232 = vpop.permute.xlu0 %3231
    %v3235 = vsel %vm923, %v3227, 0
    %v3238 = vsel %vm923, %v3228, 0
    %v3241 = vsel %vm1257, %v3232, 0
    %3243 = vmatpush.bf16.msra.mxu0 0
    %3244 = vmatpush.bf16.msra.mxu0 0
    %3245 = vmatpush.bf16.msra.mxu0 0
    %3246 = vmatpush.bf16.msra.mxu0 0
    %3247 = vmatpush.bf16.msra.mxu0 0
    %3248 = vmatpush.bf16.msra.mxu0 0
    %3249 = vmatpush.bf16.msra.mxu0 %v3241
    %3250 = vmatpush.bf16.msra.mxu0 %v3230
    %3251 = vmatmul.bf16.gmra.mxu0 %v3235
    %v3252 = vpop.f32.mrf.mxu0
    %v3253 = vadd.f32 0.0, %v3252
    %v3254 = vpop.f32.mrf.mxu0
    %v3255 = vadd.f32 0.0, %v3254
    %3256 = vmatmul.bf16.gmra.mxu0 %v3238
    %v3257 = vpop.f32.mrf.mxu0
    %v3258 = vadd.f32 0.0, %v3257
    %v3259 = vpop.f32.mrf.mxu0
    %3260 = vdwg.mxu0
    %v3264 = vunpack.c.l.b16 %v3126
    %v3265 = vunpack.c.l.b16 %v3127
    %v3266 = vunpack.c.l.b16 %v3128
    %v3267 = vpack.c.b16 %v3265, %v3264
    %v3268 = vpack.c.b16 %v3266, %v3266
    %3269 = vrot.lane.b32.xlu0 %v2637, 64
    %v3270 = vpop.permute.xlu0 %3269
    %3271 = vrot.lane.b32.xlu0 %v2638, 64
    %v3272 = vpop.permute.xlu0 %3271
    %v3275 = vsel %vm923, %v3267, 0
    %v3278 = vsel %vm923, %v3268, 0
    %v3281 = vsel %vm1257, %v3272, 0
    %3283 = vmatpush.bf16.msra.mxu0 0
    %3284 = vmatpush.bf16.msra.mxu0 0
    %3285 = vmatpush.bf16.msra.mxu0 0
    %3286 = vmatpush.bf16.msra.mxu0 0
    %3287 = vmatpush.bf16.msra.mxu0 0
    %3288 = vmatpush.bf16.msra.mxu0 0
    %3289 = vmatpush.bf16.msra.mxu0 %v3281
    %3290 = vmatpush.bf16.msra.mxu0 %v3270
    %3291 = vmatmul.bf16.gmra.mxu0 %v3275
    %v3292 = vpop.f32.mrf.mxu0
    %v3293 = vadd.f32 0.0, %v3292
    %v3294 = vpop.f32.mrf.mxu0
    %v3295 = vadd.f32 0.0, %v3294
    %3296 = vmatmul.bf16.gmra.mxu0 %v3278
    %v3297 = vpop.f32.mrf.mxu0
    %v3298 = vadd.f32 0.0, %v3297
    %v3299 = vpop.f32.mrf.mxu0
    %3300 = vdwg.mxu0
    %v3304 = vunpack.c.l.b16 %v3129
    %v3305 = vunpack.c.l.b16 %v3130
    %v3306 = vunpack.c.l.b16 %v3131
    %v3307 = vpack.c.b16 %v3305, %v3304
    %v3308 = vpack.c.b16 %v3306, %v3306
    %3309 = vrot.lane.b32.xlu0 %v2676, 64
    %v3310 = vpop.permute.xlu0 %3309
    %3311 = vrot.lane.b32.xlu0 %v2677, 64
    %v3312 = vpop.permute.xlu0 %3311
    %v3315 = vsel %vm923, %v3307, 0
    %v3318 = vsel %vm923, %v3308, 0
    %v3321 = vsel %vm1257, %v3312, 0
    %3323 = vmatpush.bf16.msra.mxu0 0
    %3324 = vmatpush.bf16.msra.mxu0 0
    %3325 = vmatpush.bf16.msra.mxu0 0
    %3326 = vmatpush.bf16.msra.mxu0 0
    %3327 = vmatpush.bf16.msra.mxu0 0
    %3328 = vmatpush.bf16.msra.mxu0 0
    %3329 = vmatpush.bf16.msra.mxu0 %v3321
    %3330 = vmatpush.bf16.msra.mxu0 %v3310
    %3331 = vmatmul.bf16.gmra.mxu0 %v3315
    %v3332 = vpop.f32.mrf.mxu0
    %v3333 = vadd.f32 0.0, %v3332
    %v3334 = vpop.f32.mrf.mxu0
    %v3335 = vadd.f32 0.0, %v3334
    %3336 = vmatmul.bf16.gmra.mxu0 %v3318
    %v3337 = vpop.f32.mrf.mxu0
    %v3338 = vadd.f32 0.0, %v3337
    %v3339 = vpop.f32.mrf.mxu0
    %3340 = vdwg.mxu0
    %v3344 = vunpack.c.l.b16 %v3132
    %v3345 = vunpack.c.l.b16 %v3133
    %v3346 = vunpack.c.l.b16 %v3134
    %v3347 = vpack.c.b16 %v3345, %v3344
    %v3348 = vpack.c.b16 %v3346, %v3346
    %3349 = vrot.lane.b32.xlu0 %v2715, 64
    %v3350 = vpop.permute.xlu0 %3349
    %3351 = vrot.lane.b32.xlu0 %v2716, 64
    %v3352 = vpop.permute.xlu0 %3351
    %v3355 = vsel %vm923, %v3347, 0
    %v3358 = vsel %vm923, %v3348, 0
    %v3361 = vsel %vm1257, %v3352, 0
    %3363 = vmatpush.bf16.msra.mxu0 0
    %3364 = vmatpush.bf16.msra.mxu0 0
    %3365 = vmatpush.bf16.msra.mxu0 0
    %3366 = vmatpush.bf16.msra.mxu0 0
    %3367 = vmatpush.bf16.msra.mxu0 0
    %3368 = vmatpush.bf16.msra.mxu0 0
    %3369 = vmatpush.bf16.msra.mxu0 %v3361
    %3370 = vmatpush.bf16.msra.mxu0 %v3350
    %3371 = vmatmul.bf16.gmra.mxu0 %v3355
    %v3372 = vpop.f32.mrf.mxu0
    %v3373 = vadd.f32 0.0, %v3372
    %v3374 = vpop.f32.mrf.mxu0
    %v3375 = vadd.f32 0.0, %v3374
    %3376 = vmatmul.bf16.gmra.mxu0 %v3358
    %v3377 = vpop.f32.mrf.mxu0
    %v3378 = vadd.f32 0.0, %v3377
    %v3379 = vpop.f32.mrf.mxu0
    %3380 = vdwg.mxu0
    %v3384 = vunpack.c.l.b16 %v3135
    %v3385 = vunpack.c.l.b16 %v3136
    %v3386 = vunpack.c.l.b16 %v3137
    %v3387 = vpack.c.b16 %v3385, %v3384
    %v3388 = vpack.c.b16 %v3386, %v3386
    %3389 = vrot.lane.b32.xlu0 %v2754, 64
    %v3390 = vpop.permute.xlu0 %3389
    %3391 = vrot.lane.b32.xlu0 %v2755, 64
    %v3392 = vpop.permute.xlu0 %3391
    %v3395 = vsel %vm923, %v3387, 0
    %v3398 = vsel %vm923, %v3388, 0
    %v3401 = vsel %vm1257, %v3392, 0
    %3403 = vmatpush.bf16.msra.mxu0 0
    %3404 = vmatpush.bf16.msra.mxu0 0
    %3405 = vmatpush.bf16.msra.mxu0 0
    %3406 = vmatpush.bf16.msra.mxu0 0
    %3407 = vmatpush.bf16.msra.mxu0 0
    %3408 = vmatpush.bf16.msra.mxu0 0
    %3409 = vmatpush.bf16.msra.mxu0 %v3401
    %3410 = vmatpush.bf16.msra.mxu0 %v3390
    %3411 = vmatmul.bf16.gmra.mxu0 %v3395
    %v3412 = vpop.f32.mrf.mxu0
    %v3413 = vadd.f32 0.0, %v3412
    %v3414 = vpop.f32.mrf.mxu0
    %v3415 = vadd.f32 0.0, %v3414
    %3416 = vmatmul.bf16.gmra.mxu0 %v3398
    %v3417 = vpop.f32.mrf.mxu0
    %v3418 = vadd.f32 0.0, %v3417
    %v3419 = vpop.f32.mrf.mxu0
    %3420 = vdwg.mxu0
    %v3424 = vunpack.c.l.b16 %v3138
    %v3425 = vunpack.c.l.b16 %v3139
    %v3426 = vunpack.c.l.b16 %v3140
    %v3427 = vpack.c.b16 %v3425, %v3424
    %v3428 = vpack.c.b16 %v3426, %v3426
    %3429 = vrot.lane.b32.xlu0 %v2793, 64
    %v3430 = vpop.permute.xlu0 %3429
    %3431 = vrot.lane.b32.xlu0 %v2794, 64
    %v3432 = vpop.permute.xlu0 %3431
    %v3435 = vsel %vm923, %v3427, 0
    %v3438 = vsel %vm923, %v3428, 0
    %v3441 = vsel %vm1257, %v3432, 0
    %3443 = vmatpush.bf16.msra.mxu0 0
    %3444 = vmatpush.bf16.msra.mxu0 0
    %3445 = vmatpush.bf16.msra.mxu0 0
    %3446 = vmatpush.bf16.msra.mxu0 0
    %3447 = vmatpush.bf16.msra.mxu0 0
    %3448 = vmatpush.bf16.msra.mxu0 0
    %3449 = vmatpush.bf16.msra.mxu0 %v3441
    %3450 = vmatpush.bf16.msra.mxu0 %v3430
    %3451 = vmatmul.bf16.gmra.mxu0 %v3435
    %v3452 = vpop.f32.mrf.mxu0
    %v3453 = vadd.f32 0.0, %v3452
    %v3454 = vpop.f32.mrf.mxu0
    %v3455 = vadd.f32 0.0, %v3454
    %3456 = vmatmul.bf16.gmra.mxu0 %v3438
    %v3457 = vpop.f32.mrf.mxu0
    %v3458 = vadd.f32 0.0, %v3457
    %v3459 = vpop.f32.mrf.mxu0
    %3460 = vdwg.mxu0
    %3467 = vrot.lane.b32.xlu0 %v3253, 8
    %v3468 = vpop.permute.xlu0 %3467
    %3469 = vrot.lane.b32.xlu0 %v3255, 8
    %v3470 = vpop.permute.xlu0 %3469
    %3471 = vrot.lane.b32.xlu0 %v3258, 8
    %v3472 = vpop.permute.xlu0 %3471
    %3473 = vrot.lane.b32.xlu0 %v3293, 8
    %v3474 = vpop.permute.xlu0 %3473
    %3475 = vrot.lane.b32.xlu0 %v3295, 8
    %v3476 = vpop.permute.xlu0 %3475
    %3477 = vrot.lane.b32.xlu0 %v3298, 8
    %v3478 = vpop.permute.xlu0 %3477
    %3491 = vrot.lane.b32.xlu0 %v3333, 16
    %v3492 = vpop.permute.xlu0 %3491
    %3493 = vrot.lane.b32.xlu0 %v3335, 16
    %v3494 = vpop.permute.xlu0 %3493
    %3495 = vrot.lane.b32.xlu0 %v3338, 16
    %v3496 = vpop.permute.xlu0 %3495
    %3497 = vrot.lane.b32.xlu0 %v3373, 16
    %v3498 = vpop.permute.xlu0 %3497
    %3499 = vrot.lane.b32.xlu0 %v3375, 16
    %v3500 = vpop.permute.xlu0 %3499
    %3501 = vrot.lane.b32.xlu0 %v3378, 16
    %v3502 = vpop.permute.xlu0 %3501
    %3515 = vrot.lane.b32.xlu0 %v3413, 24
    %v3516 = vpop.permute.xlu0 %3515
    %3517 = vrot.lane.b32.xlu0 %v3415, 24
    %v3518 = vpop.permute.xlu0 %3517
    %3519 = vrot.lane.b32.xlu0 %v3418, 24
    %v3520 = vpop.permute.xlu0 %3519
    %3521 = vrot.lane.b32.xlu0 %v3453, 24
    %v3522 = vpop.permute.xlu0 %3521
    %3523 = vrot.lane.b32.xlu0 %v3455, 24
    %v3524 = vpop.permute.xlu0 %3523
    %3525 = vrot.lane.b32.xlu0 %v3458, 24
    %v3526 = vpop.permute.xlu0 %3525
    %v3533 = vsel %vm619, %v3173, %v3468
    %v3534 = vsel %vm619, %v3175, %v3470
    %v3535 = vsel %vm619, %v3178, %v3472
    %v3536 = vsel %vm619, %v3213, %v3474
    %v3537 = vsel %vm619, %v3215, %v3476
    %v3538 = vsel %vm619, %v3218, %v3478
    %v3539 = vsel %vm1637, %v3533, %v3492
    %v3540 = vsel %vm1637, %v3534, %v3494
    %v3541 = vsel %vm1637, %v3535, %v3496
    %v3542 = vsel %vm1637, %v3536, %v3498
    %v3543 = vsel %vm1637, %v3537, %v3500
    %v3544 = vsel %vm1637, %v3538, %v3502
    %v3545 = vsel %vm923, %v3539, %v3516
    %v3546 = vsel %vm923, %v3540, %v3518
    %v3547 = vsel %vm923, %v3541, %v3520
    %v3548 = vsel %vm923, %v3542, %v3522
    %v3549 = vsel %vm923, %v3543, %v3524
    %v3550 = vsel %vm923, %v3544, %v3526
    %v3551 = vpack.c.bf16 %v3546, %v3545
    %v3552 = vpack.c.bf16 %v3548, %v3547
    %v3553 = vpack.c.bf16 %v3550, %v3549
    %s3554 = scalar_lea.vmem %s12, 16
    %v3555 = vld [vmem:[%s3554] sm:$0xf]
    %v3556 = vld [vmem:[%s3554 + $0x4] sm:$0xf]
    %v3557 = vld [vmem:[%s3554 + $0x8] sm:$0xf]
    %v3558 = vld [vmem:[%s3554 + $0xc] sm:$0xf]
    %s3559 = scalar_lea.vmem %s13, 1
    %v3560 = vld [vmem:[%s3559] sm:$0x1]
    %v3562 = vperm.slane %v3560, 0
    %v3568 = vunpack.c.l.b16 %v3555
    %v3569 = vunpack.c.l.b16 %v3556
    %v3570 = vunpack.c.l.b16 %v3557
    %v3571 = vunpack.c.l.b16 %v3558
    %v3572 = vpack.c.b16 %v3569, %v3568
    %v3573 = vpack.c.b16 %v3571, %v3570
    %v3577 = vsel %vm258, %v3551, 0
    %v3580 = vsel %vm258, %v3552, 0
    %v3583 = vsel %vm258, %v3553, 0
    %3585 = vmatpush.bf16.msra.mxu0 0
    %3586 = vmatpush.bf16.msra.mxu0 0
    %3587 = vmatpush.bf16.msra.mxu0 0
    %3588 = vmatpush.bf16.msra.mxu0 0
    %3589 = vmatpush.bf16.msra.mxu0 0
    %3590 = vmatpush.bf16.msra.mxu0 0
    %3591 = vmatpush.bf16.msra.mxu0 %v3573
    %3592 = vmatpush.bf16.msra.mxu0 %v3572
    %3593 = vmatmul.bf16.gmra.mxu0 %v3577
    %v3594 = vpop.f32.mrf.mxu0
    %v3595 = vadd.f32 %v3562, %v3594
    %v3596 = vpop.f32.mrf.mxu0
    %v3597 = vadd.f32 %v3562, %v3596
    %3598 = vmatmul.bf16.gmra.mxu0 %v3580
    %v3599 = vpop.f32.mrf.mxu0
    %v3600 = vadd.f32 %v3562, %v3599
    %v3601 = vpop.f32.mrf.mxu0
    %v3602 = vadd.f32 %v3562, %v3601
    %3603 = vmatmul.bf16.gmra.mxu0 %v3583
    %v3604 = vpop.f32.mrf.mxu0
    %v3605 = vadd.f32 %v3562, %v3604
    %v3606 = vpop.f32.mrf.mxu0
    %v3607 = vadd.f32 %v3562, %v3606
    %3608 = vdwg.mxu0
    %v3609 = vadd.f32 %v3595, %v2256
    %v3610 = vadd.f32 %v3597, %v2257
    %v3611 = vadd.f32 %v3600, %v2258
    %v3612 = vadd.f32 %v3602, %v2259
    %v3613 = vadd.f32 %v3605, %v2260
    %v3614 = vadd.f32 %v3607, %v2261
    %s3615 = scalar_lea.vmem %s14, 1
    %v3616 = vld [vmem:[%s3615] sm:$0x1]
    %s3617 = scalar_lea.vmem %s15, 1
    %v3618 = vld [vmem:[%s3617] sm:$0x1]
    %v3619 = vsel %vm258, %v3609, 0.0
    %3620 = vadd.xlane.f32.xlu0 %v3619
    %v3621 = vpop.xlane.xlu0 %3620
    %v3622 = vsel %vm258, %v3610, 0.0
    %3623 = vadd.xlane.f32.xlu0 %v3622
    %v3624 = vpop.xlane.xlu0 %3623
    %v3625 = vsel %vm258, %v3611, 0.0
    %3626 = vadd.xlane.f32.xlu0 %v3625
    %v3627 = vpop.xlane.xlu0 %3626
    %v3628 = vsel %vm258, %v3612, 0.0
    %3629 = vadd.xlane.f32.xlu0 %v3628
    %v3630 = vpop.xlane.xlu0 %3629
    %v3631 = vsel %vm258, %v3613, 0.0
    %3632 = vadd.xlane.f32.xlu0 %v3631
    %v3633 = vpop.xlane.xlu0 %3632
    %v3634 = vsel %vm258, %v3614, 0.0
    %3635 = vadd.xlane.f32.xlu0 %v3634
    %v3636 = vpop.xlane.xlu0 %3635
    %v3637 = vmul.f32 %v3621, %v277
    %v3638 = vmul.f32 %v3624, %v277
    %v3639 = vmul.f32 %v3627, %v277
    %v3640 = vmul.f32 %v3630, %v277
    %v3641 = vmul.f32 %v3633, %v277
    %v3642 = vmul.f32 %v3636, %v277
    %v3643 = vsub.f32 %v3609, %v3637
    %v3644 = vsub.f32 %v3610, %v3638
    %v3645 = vsub.f32 %v3611, %v3639
    %v3646 = vsub.f32 %v3612, %v3640
    %v3647 = vsub.f32 %v3613, %v3641
    %v3648 = vsub.f32 %v3614, %v3642
    %v3649 = vmul.f32 %v3643, %v3643
    %v3650 = vmul.f32 %v3644, %v3644
    %v3651 = vmul.f32 %v3645, %v3645
    %v3652 = vmul.f32 %v3646, %v3646
    %v3653 = vmul.f32 %v3647, %v3647
    %v3654 = vmul.f32 %v3648, %v3648
    %v3655 = vsel %vm258, %v3649, 0.0
    %3656 = vadd.xlane.f32.xlu0 %v3655
    %v3657 = vpop.xlane.xlu0 %3656
    %v3658 = vsel %vm258, %v3650, 0.0
    %3659 = vadd.xlane.f32.xlu0 %v3658
    %v3660 = vpop.xlane.xlu0 %3659
    %v3661 = vsel %vm258, %v3651, 0.0
    %3662 = vadd.xlane.f32.xlu0 %v3661
    %v3663 = vpop.xlane.xlu0 %3662
    %v3664 = vsel %vm258, %v3652, 0.0
    %3665 = vadd.xlane.f32.xlu0 %v3664
    %v3666 = vpop.xlane.xlu0 %3665
    %v3667 = vsel %vm258, %v3653, 0.0
    %3668 = vadd.xlane.f32.xlu0 %v3667
    %v3669 = vpop.xlane.xlu0 %3668
    %v3670 = vsel %vm258, %v3654, 0.0
    %3671 = vadd.xlane.f32.xlu0 %v3670
    %v3672 = vpop.xlane.xlu0 %3671
    %v3673 = vmul.f32 %v3657, %v277
    %v3674 = vmul.f32 %v3660, %v277
    %v3675 = vmul.f32 %v3663, %v277
    %v3676 = vmul.f32 %v3666, %v277
    %v3677 = vmul.f32 %v3669, %v277
    %v3678 = vmul.f32 %v3672, %v277
    %v3679 = vadd.f32 %v3673, 1e-05
    %v3680 = vadd.f32 %v3674, 1e-05
    %v3681 = vadd.f32 %v3675, 1e-05
    %v3682 = vadd.f32 %v3676, 1e-05
    %v3683 = vadd.f32 %v3677, 1e-05
    %v3684 = vadd.f32 %v3678, 1e-05
    %v3685 = vrsqrt.pop %v3679
    %v3686 = vmul.f32 %v3685, %v3679
    %v3687 = vmul.f32 %v3686, %v3685
    %v3688 = vmul.f32 0.5, %v3687
    %v3689 = vsub.f32 1.5, %v3688
    %v3690 = vmul.f32 %v3685, %v3689
    %vm3691 = vweird.f32 %v3679
    %vm3692 = vweird.f32 %v3685
    %vm3693 = vmor %vm3691, %vm3692
    %v3694 = vsel %vm3693, %v3685, %v3690
    %v3695 = vrsqrt.pop %v3680
    %v3696 = vmul.f32 %v3695, %v3680
    %v3697 = vmul.f32 %v3696, %v3695
    %v3698 = vmul.f32 0.5, %v3697
    %v3699 = vsub.f32 1.5, %v3698
    %v3700 = vmul.f32 %v3695, %v3699
    %vm3701 = vweird.f32 %v3680
    %vm3702 = vweird.f32 %v3695
    %vm3703 = vmor %vm3701, %vm3702
    %v3704 = vsel %vm3703, %v3695, %v3700
    %v3705 = vrsqrt.pop %v3681
    %v3706 = vmul.f32 %v3705, %v3681
    %v3707 = vmul.f32 %v3706, %v3705
    %v3708 = vmul.f32 0.5, %v3707
    %v3709 = vsub.f32 1.5, %v3708
    %v3710 = vmul.f32 %v3705, %v3709
    %vm3711 = vweird.f32 %v3681
    %vm3712 = vweird.f32 %v3705
    %vm3713 = vmor %vm3711, %vm3712
    %v3714 = vsel %vm3713, %v3705, %v3710
    %v3715 = vrsqrt.pop %v3682
    %v3716 = vmul.f32 %v3715, %v3682
    %v3717 = vmul.f32 %v3716, %v3715
    %v3718 = vmul.f32 0.5, %v3717
    %v3719 = vsub.f32 1.5, %v3718
    %v3720 = vmul.f32 %v3715, %v3719
    %vm3721 = vweird.f32 %v3682
    %vm3722 = vweird.f32 %v3715
    %vm3723 = vmor %vm3721, %vm3722
    %v3724 = vsel %vm3723, %v3715, %v3720
    %v3725 = vrsqrt.pop %v3683
    %v3726 = vmul.f32 %v3725, %v3683
    %v3727 = vmul.f32 %v3726, %v3725
    %v3728 = vmul.f32 0.5, %v3727
    %v3729 = vsub.f32 1.5, %v3728
    %v3730 = vmul.f32 %v3725, %v3729
    %vm3731 = vweird.f32 %v3683
    %vm3732 = vweird.f32 %v3725
    %vm3733 = vmor %vm3731, %vm3732
    %v3734 = vsel %vm3733, %v3725, %v3730
    %v3735 = vrsqrt.pop %v3684
    %v3736 = vmul.f32 %v3735, %v3684
    %v3737 = vmul.f32 %v3736, %v3735
    %v3738 = vmul.f32 0.5, %v3737
    %v3739 = vsub.f32 1.5, %v3738
    %v3740 = vmul.f32 %v3735, %v3739
    %vm3741 = vweird.f32 %v3684
    %vm3742 = vweird.f32 %v3735
    %vm3743 = vmor %vm3741, %vm3742
    %v3744 = vsel %vm3743, %v3735, %v3740
    %v3745 = vmul.f32 %v3643, %v3694
    %v3746 = vmul.f32 %v3644, %v3704
    %v3747 = vmul.f32 %v3645, %v3714
    %v3748 = vmul.f32 %v3646, %v3724
    %v3749 = vmul.f32 %v3647, %v3734
    %v3750 = vmul.f32 %v3648, %v3744
    %v3752 = vperm.slane %v3616, 0
    %v3754 = vmul.f32 %v3745, %v3752
    %v3755 = vmul.f32 %v3746, %v3752
    %v3756 = vmul.f32 %v3747, %v3752
    %v3757 = vmul.f32 %v3748, %v3752
    %v3758 = vmul.f32 %v3749, %v3752
    %v3759 = vmul.f32 %v3750, %v3752
    %v3761 = vperm.slane %v3618, 0
    %v3763 = vadd.f32 %v3754, %v3761
    %v3764 = vadd.f32 %v3755, %v3761
    %v3765 = vadd.f32 %v3756, %v3761
    %v3766 = vadd.f32 %v3757, %v3761
    %v3767 = vadd.f32 %v3758, %v3761
    %v3768 = vadd.f32 %v3759, %v3761
    %v3769 = vpack.c.bf16 %v3764, %v3763
    %v3770 = vpack.c.bf16 %v3766, %v3765
    %v3771 = vpack.c.bf16 %v3768, %v3767
    %s3772 = scalar_lea.vmem %s16, 16
    %v3773 = vld [vmem:[%s3772] sm:$0xf]
    %v3774 = vld [vmem:[%s3772 + $0x4] sm:$0xf]
    %v3775 = vld [vmem:[%s3772 + $0x8] sm:$0xf]
    %v3776 = vld [vmem:[%s3772 + $0xc] sm:$0xf]
    %s3777 = scalar_lea.vmem %s17, 1
    %v3778 = vld [vmem:[%s3777] sm:$0x1]
    %v3780 = vperm.slane %v3778, 0
    %v3786 = vunpack.c.l.b16 %v3773
    %v3787 = vunpack.c.l.b16 %v3774
    %v3788 = vunpack.c.l.b16 %v3775
    %v3789 = vunpack.c.l.b16 %v3776
    %v3790 = vpack.c.b16 %v3787, %v3786
    %v3791 = vpack.c.b16 %v3789, %v3788
    %v3795 = vsel %vm258, %v3769, 0
    %v3798 = vsel %vm258, %v3770, 0
    %v3801 = vsel %vm258, %v3771, 0
    %3803 = vmatpush.bf16.msra.mxu0 0
    %3804 = vmatpush.bf16.msra.mxu0 0
    %3805 = vmatpush.bf16.msra.mxu0 0
    %3806 = vmatpush.bf16.msra.mxu0 0
    %3807 = vmatpush.bf16.msra.mxu0 0
    %3808 = vmatpush.bf16.msra.mxu0 0
    %3809 = vmatpush.bf16.msra.mxu0 %v3791
    %3810 = vmatpush.bf16.msra.mxu0 %v3790
    %3811 = vmatmul.bf16.gmra.mxu0 %v3795
    %v3812 = vpop.f32.mrf.mxu0
    %v3813 = vadd.f32 %v3780, %v3812
    %v3814 = vpop.f32.mrf.mxu0
    %v3815 = vadd.f32 %v3780, %v3814
    %3816 = vmatmul.bf16.gmra.mxu0 %v3798
    %v3817 = vpop.f32.mrf.mxu0
    %v3818 = vadd.f32 %v3780, %v3817
    %v3819 = vpop.f32.mrf.mxu0
    %v3820 = vadd.f32 %v3780, %v3819
    %3821 = vmatmul.bf16.gmra.mxu0 %v3801
    %v3822 = vpop.f32.mrf.mxu0
    %v3823 = vadd.f32 %v3780, %v3822
    %v3824 = vpop.f32.mrf.mxu0
    %v3825 = vadd.f32 %v3780, %v3824
    %3826 = vdwg.mxu0
    %v3827 = vmul.f32 %v3813, 0.5
    %v3828 = vmul.f32 %v3815, 0.5
    %v3829 = vmul.f32 %v3818, 0.5
    %v3830 = vmul.f32 %v3820, 0.5
    %v3831 = vmul.f32 %v3823, 0.5
    %v3832 = vmul.f32 %v3825, 0.5
    %v3833 = vmul.f32 %v3813, 0.70710677
    %v3834 = vmul.f32 %v3815, 0.70710677
    %v3835 = vmul.f32 %v3818, 0.70710677
    %v3836 = vmul.f32 %v3820, 0.70710677
    %v3837 = vmul.f32 %v3823, 0.70710677
    %v3838 = vmul.f32 %v3825, 0.70710677
    %v3839 = vmul.f32 %v3833, %v3833
    %v3840 = vmin.f32 16.0, %v3839
    %v3841 = vmul.f32 %v3840, 2.1237322e-06
    %v3842 = vadd.f32 %v3841, 0.00028619796
    %v3843 = vmul.f32 %v3840, %v3842
    %v3844 = vadd.f32 %v3843, 0.0036580483
    %v3845 = vmul.f32 %v3840, %v3844
    %v3846 = vadd.f32 %v3845, 0.05243302
    %v3847 = vmul.f32 %v3840, %v3846
    %v3848 = vadd.f32 %v3847, 0.18741608
    %v3849 = vmul.f32 %v3840, %v3848
    %v3850 = vadd.f32 %v3849, 1.1283791
    %v3851 = vmul.f32 %v3833, %v3850
    %v3852 = vmul.f32 %v3840, 3.8918573e-05
    %v3853 = vadd.f32 %v3852, 0.001143296
    %v3854 = vmul.f32 %v3840, %v3853
    %v3855 = vadd.f32 %v3854, 0.014752088
    %v3856 = vmul.f32 %v3840, %v3855
    %v3857 = vadd.f32 %v3856, 0.112945676
    %v3858 = vmul.f32 %v3840, %v3857
    %v3859 = vadd.f32 %v3858, 0.4994258
    %v3860 = vmul.f32 %v3840, %v3859
    %v3861 = vadd.f32 %v3860, 1.0
    %v3862 = vrcp.pop %v3861
    %v3863 = vmul.f32 %v3861, %v3862
    %v3864 = vsub.f32 1.0, %v3863
    %v3865 = vmul.f32 %v3862, %v3864
    %v3866 = vadd.f32 %v3862, %v3865
    %vm3867 = vweird.f32 %v3861
    %vm3868 = vweird.f32 %v3862
    %vm3869 = vmor %vm3867, %vm3868
    %v3870 = vsel %vm3869, %v3862, %v3866
    %v3871 = vand.u32 2147483647, %v3861
    %vm3872 = vcmp.eq.f32.partialorder %v3871, 8.507059e+37
    %v3873 = vand.u32 %v3861, 2147483648
    %v3874 = vor.u32 1.1754944e-38, %v3873
    %v3875 = vsel %vm3872, %v3874, %v3870
    %v3876 = vmul.f32 %v3851, %v3875
    %v3877 = vmin.f32 %v3876, 1.0
    %v3878 = vmax.f32 %v3877, -1.0
    %v3879 = vmul.f32 %v3834, %v3834
    %v3880 = vmin.f32 16.0, %v3879
    %v3881 = vmul.f32 %v3880, 2.1237322e-06
    %v3882 = vadd.f32 %v3881, 0.00028619796
    %v3883 = vmul.f32 %v3880, %v3882
    %v3884 = vadd.f32 %v3883, 0.0036580483
    %v3885 = vmul.f32 %v3880, %v3884
    %v3886 = vadd.f32 %v3885, 0.05243302
    %v3887 = vmul.f32 %v3880, %v3886
    %v3888 = vadd.f32 %v3887, 0.18741608
    %v3889 = vmul.f32 %v3880, %v3888
    %v3890 = vadd.f32 %v3889, 1.1283791
    %v3891 = vmul.f32 %v3834, %v3890
    %v3892 = vmul.f32 %v3880, 3.8918573e-05
    %v3893 = vadd.f32 %v3892, 0.001143296
    %v3894 = vmul.f32 %v3880, %v3893
    %v3895 = vadd.f32 %v3894, 0.014752088
    %v3896 = vmul.f32 %v3880, %v3895
    %v3897 = vadd.f32 %v3896, 0.112945676
    %v3898 = vmul.f32 %v3880, %v3897
    %v3899 = vadd.f32 %v3898, 0.4994258
    %v3900 = vmul.f32 %v3880, %v3899
    %v3901 = vadd.f32 %v3900, 1.0
    %v3902 = vrcp.pop %v3901
    %v3903 = vmul.f32 %v3901, %v3902
    %v3904 = vsub.f32 1.0, %v3903
    %v3905 = vmul.f32 %v3902, %v3904
    %v3906 = vadd.f32 %v3902, %v3905
    %vm3907 = vweird.f32 %v3901
    %vm3908 = vweird.f32 %v3902
    %vm3909 = vmor %vm3907, %vm3908
    %v3910 = vsel %vm3909, %v3902, %v3906
    %v3911 = vand.u32 2147483647, %v3901
    %vm3912 = vcmp.eq.f32.partialorder %v3911, 8.507059e+37
    %v3913 = vand.u32 %v3901, 2147483648
    %v3914 = vor.u32 1.1754944e-38, %v3913
    %v3915 = vsel %vm3912, %v3914, %v3910
    %v3916 = vmul.f32 %v3891, %v3915
    %v3917 = vmin.f32 %v3916, 1.0
    %v3918 = vmax.f32 %v3917, -1.0
    %v3919 = vmul.f32 %v3835, %v3835
    %v3920 = vmin.f32 16.0, %v3919
    %v3921 = vmul.f32 %v3920, 2.1237322e-06
    %v3922 = vadd.f32 %v3921, 0.00028619796
    %v3923 = vmul.f32 %v3920, %v3922
    %v3924 = vadd.f32 %v3923, 0.0036580483
    %v3925 = vmul.f32 %v3920, %v3924
    %v3926 = vadd.f32 %v3925, 0.05243302
    %v3927 = vmul.f32 %v3920, %v3926
    %v3928 = vadd.f32 %v3927, 0.18741608
    %v3929 = vmul.f32 %v3920, %v3928
    %v3930 = vadd.f32 %v3929, 1.1283791
    %v3931 = vmul.f32 %v3835, %v3930
    %v3932 = vmul.f32 %v3920, 3.8918573e-05
    %v3933 = vadd.f32 %v3932, 0.001143296
    %v3934 = vmul.f32 %v3920, %v3933
    %v3935 = vadd.f32 %v3934, 0.014752088
    %v3936 = vmul.f32 %v3920, %v3935
    %v3937 = vadd.f32 %v3936, 0.112945676
    %v3938 = vmul.f32 %v3920, %v3937
    %v3939 = vadd.f32 %v3938, 0.4994258
    %v3940 = vmul.f32 %v3920, %v3939
    %v3941 = vadd.f32 %v3940, 1.0
    %v3942 = vrcp.pop %v3941
    %v3943 = vmul.f32 %v3941, %v3942
    %v3944 = vsub.f32 1.0, %v3943
    %v3945 = vmul.f32 %v3942, %v3944
    %v3946 = vadd.f32 %v3942, %v3945
    %vm3947 = vweird.f32 %v3941
    %vm3948 = vweird.f32 %v3942
    %vm3949 = vmor %vm3947, %vm3948
    %v3950 = vsel %vm3949, %v3942, %v3946
    %v3951 = vand.u32 2147483647, %v3941
    %vm3952 = vcmp.eq.f32.partialorder %v3951, 8.507059e+37
    %v3953 = vand.u32 %v3941, 2147483648
    %v3954 = vor.u32 1.1754944e-38, %v3953
    %v3955 = vsel %vm3952, %v3954, %v3950
    %v3956 = vmul.f32 %v3931, %v3955
    %v3957 = vmin.f32 %v3956, 1.0
    %v3958 = vmax.f32 %v3957, -1.0
    %v3959 = vmul.f32 %v3836, %v3836
    %v3960 = vmin.f32 16.0, %v3959
    %v3961 = vmul.f32 %v3960, 2.1237322e-06
    %v3962 = vadd.f32 %v3961, 0.00028619796
    %v3963 = vmul.f32 %v3960, %v3962
    %v3964 = vadd.f32 %v3963, 0.0036580483
    %v3965 = vmul.f32 %v3960, %v3964
    %v3966 = vadd.f32 %v3965, 0.05243302
    %v3967 = vmul.f32 %v3960, %v3966
    %v3968 = vadd.f32 %v3967, 0.18741608
    %v3969 = vmul.f32 %v3960, %v3968
    %v3970 = vadd.f32 %v3969, 1.1283791
    %v3971 = vmul.f32 %v3836, %v3970
    %v3972 = vmul.f32 %v3960, 3.8918573e-05
    %v3973 = vadd.f32 %v3972, 0.001143296
    %v3974 = vmul.f32 %v3960, %v3973
    %v3975 = vadd.f32 %v3974, 0.014752088
    %v3976 = vmul.f32 %v3960, %v3975
    %v3977 = vadd.f32 %v3976, 0.112945676
    %v3978 = vmul.f32 %v3960, %v3977
    %v3979 = vadd.f32 %v3978, 0.4994258
    %v3980 = vmul.f32 %v3960, %v3979
    %v3981 = vadd.f32 %v3980, 1.0
    %v3982 = vrcp.pop %v3981
    %v3983 = vmul.f32 %v3981, %v3982
    %v3984 = vsub.f32 1.0, %v3983
    %v3985 = vmul.f32 %v3982, %v3984
    %v3986 = vadd.f32 %v3982, %v3985
    %vm3987 = vweird.f32 %v3981
    %vm3988 = vweird.f32 %v3982
    %vm3989 = vmor %vm3987, %vm3988
    %v3990 = vsel %vm3989, %v3982, %v3986
    %v3991 = vand.u32 2147483647, %v3981
    %vm3992 = vcmp.eq.f32.partialorder %v3991, 8.507059e+37
    %v3993 = vand.u32 %v3981, 2147483648
    %v3994 = vor.u32 1.1754944e-38, %v3993
    %v3995 = vsel %vm3992, %v3994, %v3990
    %v3996 = vmul.f32 %v3971, %v3995
    %v3997 = vmin.f32 %v3996, 1.0
    %v3998 = vmax.f32 %v3997, -1.0
    %v3999 = vmul.f32 %v3837, %v3837
    %v4000 = vmin.f32 16.0, %v3999
    %v4001 = vmul.f32 %v4000, 2.1237322e-06
    %v4002 = vadd.f32 %v4001, 0.00028619796
    %v4003 = vmul.f32 %v4000, %v4002
    %v4004 = vadd.f32 %v4003, 0.0036580483
    %v4005 = vmul.f32 %v4000, %v4004
    %v4006 = vadd.f32 %v4005, 0.05243302
    %v4007 = vmul.f32 %v4000, %v4006
    %v4008 = vadd.f32 %v4007, 0.18741608
    %v4009 = vmul.f32 %v4000, %v4008
    %v4010 = vadd.f32 %v4009, 1.1283791
    %v4011 = vmul.f32 %v3837, %v4010
    %v4012 = vmul.f32 %v4000, 3.8918573e-05
    %v4013 = vadd.f32 %v4012, 0.001143296
    %v4014 = vmul.f32 %v4000, %v4013
    %v4015 = vadd.f32 %v4014, 0.014752088
    %v4016 = vmul.f32 %v4000, %v4015
    %v4017 = vadd.f32 %v4016, 0.112945676
    %v4018 = vmul.f32 %v4000, %v4017
    %v4019 = vadd.f32 %v4018, 0.4994258
    %v4020 = vmul.f32 %v4000, %v4019
    %v4021 = vadd.f32 %v4020, 1.0
    %v4022 = vrcp.pop %v4021
    %v4023 = vmul.f32 %v4021, %v4022
    %v4024 = vsub.f32 1.0, %v4023
    %v4025 = vmul.f32 %v4022, %v4024
    %v4026 = vadd.f32 %v4022, %v4025
    %vm4027 = vweird.f32 %v4021
    %vm4028 = vweird.f32 %v4022
    %vm4029 = vmor %vm4027, %vm4028
    %v4030 = vsel %vm4029, %v4022, %v4026
    %v4031 = vand.u32 2147483647, %v4021
    %vm4032 = vcmp.eq.f32.partialorder %v4031, 8.507059e+37
    %v4033 = vand.u32 %v4021, 2147483648
    %v4034 = vor.u32 1.1754944e-38, %v4033
    %v4035 = vsel %vm4032, %v4034, %v4030
    %v4036 = vmul.f32 %v4011, %v4035
    %v4037 = vmin.f32 %v4036, 1.0
    %v4038 = vmax.f32 %v4037, -1.0
    %v4039 = vmul.f32 %v3838, %v3838
    %v4040 = vmin.f32 16.0, %v4039
    %v4041 = vmul.f32 %v4040, 2.1237322e-06
    %v4042 = vadd.f32 %v4041, 0.00028619796
    %v4043 = vmul.f32 %v4040, %v4042
    %v4044 = vadd.f32 %v4043, 0.0036580483
    %v4045 = vmul.f32 %v4040, %v4044
    %v4046 = vadd.f32 %v4045, 0.05243302
    %v4047 = vmul.f32 %v4040, %v4046
    %v4048 = vadd.f32 %v4047, 0.18741608
    %v4049 = vmul.f32 %v4040, %v4048
    %v4050 = vadd.f32 %v4049, 1.1283791
    %v4051 = vmul.f32 %v3838, %v4050
    %v4052 = vmul.f32 %v4040, 3.8918573e-05
    %v4053 = vadd.f32 %v4052, 0.001143296
    %v4054 = vmul.f32 %v4040, %v4053
    %v4055 = vadd.f32 %v4054, 0.014752088
    %v4056 = vmul.f32 %v4040, %v4055
    %v4057 = vadd.f32 %v4056, 0.112945676
    %v4058 = vmul.f32 %v4040, %v4057
    %v4059 = vadd.f32 %v4058, 0.4994258
    %v4060 = vmul.f32 %v4040, %v4059
    %v4061 = vadd.f32 %v4060, 1.0
    %v4062 = vrcp.pop %v4061
    %v4063 = vmul.f32 %v4061, %v4062
    %v4064 = vsub.f32 1.0, %v4063
    %v4065 = vmul.f32 %v4062, %v4064
    %v4066 = vadd.f32 %v4062, %v4065
    %vm4067 = vweird.f32 %v4061
    %vm4068 = vweird.f32 %v4062
    %vm4069 = vmor %vm4067, %vm4068
    %v4070 = vsel %vm4069, %v4062, %v4066
    %v4071 = vand.u32 2147483647, %v4061
    %vm4072 = vcmp.eq.f32.partialorder %v4071, 8.507059e+37
    %v4073 = vand.u32 %v4061, 2147483648
    %v4074 = vor.u32 1.1754944e-38, %v4073
    %v4075 = vsel %vm4072, %v4074, %v4070
    %v4076 = vmul.f32 %v4051, %v4075
    %v4077 = vmin.f32 %v4076, 1.0
    %v4078 = vmax.f32 %v4077, -1.0
    %v4079 = vadd.f32 %v3878, 1.0
    %v4080 = vadd.f32 %v3918, 1.0
    %v4081 = vadd.f32 %v3958, 1.0
    %v4082 = vadd.f32 %v3998, 1.0
    %v4083 = vadd.f32 %v4038, 1.0
    %v4084 = vadd.f32 %v4078, 1.0
    %v4085 = vmul.f32 %v3827, %v4079
    %v4086 = vmul.f32 %v3828, %v4080
    %v4087 = vmul.f32 %v3829, %v4081
    %v4088 = vmul.f32 %v3830, %v4082
    %v4089 = vmul.f32 %v3831, %v4083
    %v4090 = vmul.f32 %v3832, %v4084
    %v4091 = vpack.c.bf16 %v4086, %v4085
    %v4092 = vpack.c.bf16 %v4088, %v4087
    %v4093 = vpack.c.bf16 %v4090, %v4089
    %s4094 = scalar_lea.vmem %s18, 32
    %v4095 = vld [vmem:[%s4094] sm:$0xf]
    %v4096 = vld [vmem:[%s4094 + $0x4] sm:$0xf]
    %v4097 = vld [vmem:[%s4094 + $0x8] sm:$0xf]
    %v4098 = vld [vmem:[%s4094 + $0xc] sm:$0xf]
    %v4099 = vld [vmem:[%s4094 + $0x10] sm:$0xf]
    %v4100 = vld [vmem:[%s4094 + $0x14] sm:$0xf]
    %v4101 = vld [vmem:[%s4094 + $0x18] sm:$0xf]
    %v4102 = vld [vmem:[%s4094 + $0x1c] sm:$0xf]
    %s4103 = scalar_lea.vmem %s19, 1
    %v4104 = vld [vmem:[%s4103] sm:$0x1]
    %v4106 = vperm.slane %v4104, 0
    %v4116 = vunpack.c.l.b16 %v4095
    %v4117 = vunpack.c.l.b16 %v4096
    %v4118 = vunpack.c.l.b16 %v4097
    %v4119 = vunpack.c.l.b16 %v4098
    %v4120 = vunpack.c.l.b16 %v4099
    %v4121 = vunpack.c.l.b16 %v4100
    %v4122 = vunpack.c.l.b16 %v4101
    %v4123 = vunpack.c.l.b16 %v4102
    %v4124 = vpack.c.b16 %v4117, %v4116
    %v4125 = vpack.c.b16 %v4119, %v4118
    %v4126 = vpack.c.b16 %v4121, %v4120
    %v4127 = vpack.c.b16 %v4123, %v4122
    %v4133 = vsel %vm83, %v4091, 0
    %v4136 = vsel %vm83, %v4092, 0
    %v4139 = vsel %vm83, %v4093, 0
    %4141 = vmatpush.bf16.msra.mxu0 0
    %4142 = vmatpush.bf16.msra.mxu0 0
    %4143 = vmatpush.bf16.msra.mxu0 0
    %4144 = vmatpush.bf16.msra.mxu0 0
    %4145 = vmatpush.bf16.msra.mxu0 %v4127
    %4146 = vmatpush.bf16.msra.mxu0 %v4126
    %4147 = vmatpush.bf16.msra.mxu0 %v4125
    %4148 = vmatpush.bf16.msra.mxu0 %v4124
    %4149 = vmatmul.bf16.gmra.mxu0 %v4133
    %v4150 = vpop.f32.mrf.mxu0
    %v4151 = vadd.f32 %v4106, %v4150
    %v4152 = vpop.f32.mrf.mxu0
    %4153 = vmatmul.bf16.gmra.mxu0 %v4136
    %v4154 = vpop.f32.mrf.mxu0
    %v4155 = vpop.f32.mrf.mxu0
    %v4156 = vadd.f32 %v4106, %v4155
    %4157 = vmatmul.bf16.gmra.mxu0 %v4139
    %v4158 = vpop.f32.mrf.mxu0
    %v4159 = vpop.f32.mrf.mxu0
    %4160 = vdwg.mxu0
    %v4161 = vadd.f32 %v4151, %v3609
    %v4162 = vadd.f32 %v4156, %v3612
    %v4163 = vld [vmem:[%s20] sm:$0x1]
    %v4164 = vld [vmem:[%s21] sm:$0x1]
    %v4167 = vrot.slane %v4162, 7
    %vm4168 = vcmask 1041409
    %v4169 = vsel %vm4168, %v4167, %v4161
    %vm4171 = vcmask 254976
    %v4172 = vsel %vm4171, %v4169, 0.0
    %4173 = vadd.xlane.f32.xlu0 %v4172
    %v4174 = vpop.xlane.xlu0 %4173
    %v4175 = vmul.f32 %v4174, %v277
    %v4177 = vrot.slane %v4175, 1
    %v4180 = vsub.f32 %v4161, %v4175
    %v4181 = vsub.f32 %v4162, %v4177
    %v4182 = vmul.f32 %v4180, %v4180
    %v4183 = vmul.f32 %v4181, %v4181
    %v4186 = vrot.slane %v4183, 7
    %v4187 = vsel %vm4168, %v4186, %v4182
    %v4189 = vsel %vm4171, %v4187, 0.0
    %4190 = vadd.xlane.f32.xlu0 %v4189
    %v4191 = vpop.xlane.xlu0 %4190
    %v4192 = vmul.f32 %v4191, %v277
    %v4193 = vadd.f32 %v4192, 1e-05
    %v4194 = vrsqrt.pop %v4193
    %v4195 = vmul.f32 %v4194, %v4193
    %v4196 = vmul.f32 %v4195, %v4194
    %v4197 = vmul.f32 0.5, %v4196
    %v4198 = vsub.f32 1.5, %v4197
    %v4199 = vmul.f32 %v4194, %v4198
    %vm4200 = vweird.f32 %v4193
    %vm4201 = vweird.f32 %v4194
    %vm4202 = vmor %vm4200, %vm4201
    %v4203 = vsel %vm4202, %v4194, %v4199
    %v4205 = vrot.slane %v4203, 1
    %v4208 = vmul.f32 %v4180, %v4203
    %v4209 = vmul.f32 %v4181, %v4205
    %v4211 = vperm.slane %v4163, 0
    %v4213 = vmul.f32 %v4208, %v4211
    %v4214 = vmul.f32 %v4209, %v4211
    %v4216 = vperm.slane %v4164, 0
    %v4218 = vadd.f32 %v4213, %v4216
    %v4219 = vadd.f32 %v4214, %v4216
    %v4222 = vrot.slane %v4219, 7
    %v4223 = vsel %vm4168, %v4222, %v4218
    %4225 = vst.msk [vmem:[#allocation2] sm:$0x3] %vm4171, %v4223
    // Predicated region
    $region90: #{vit_forward.1} parent=1 // pred_check
      _
    $region91: #{vit_forward.1} parent=1 // pred_check_branch
      %4227 = sbr.rel (0) target = $region93
    $region92: #{vit_forward.1} parent=1 // pred_region
      %4229 = vsyncadd [#allocation3], 0
      %s4231 = sshll.u32 [#allocation2], 4
      %s4232 = int_to_ptr.vmem [resolvable:$true] %s4231
      %s4233 = sshll.u32 %s22, 4
      %s4234 = int_to_ptr.hbm [resolvable:$true] %s4233
      %4236 = dma.vmem_to_hbm [thread:$0]  %s4232, 32, %s4234, [#allocation3]
    $region93: #{vit_forward.1} parent=1 // pred_fallthru
      _
    // Predicated region
    $region94: #{vit_forward.1} parent=1 // pred_check
      _
    $region95: #{vit_forward.1} parent=1 // pred_check_branch
      %4238 = sbr.rel (0) target = $region97
    $region96: #{vit_forward.1} parent=1 // pred_region
      %4240 = dma.done [#allocation3], 32
    $region97: #{vit_forward.1} parent=1 // pred_fallthru
      _
    %4241 = vsyncpa [#allocation3], 1

</llo_original>
